<compile_context>
chip_gen: v7x
topology: tpu7x:2x2x1
jax: 0.10.0
libtpu: 0.0.40
codegen_flags: <defaults>
</compile_context>

<pallas_src>
import jax
import jax.numpy as jnp
from jax.experimental import pallas as pl
from jax.experimental.pallas import tpu as pltpu


def mixed_gnn_kernel(
    a_hat_ref, a_mean_ref, x_full_ref, xw_all_ref, asrc_ref,
    att_dst_ref, b_gat_ref,
    w_gcn_ref, b_gcn_ref,
    w_sage_l_ref, w_sage_r_ref, b_sage_ref,
    bn_scale_gat_ref, bn_shift_gat_ref,
    bn_scale_gcn_ref, bn_shift_gcn_ref,
    bn_scale_sage_ref, bn_shift_sage_ref,
    w1_gat_ref, w1_gcn_ref, w1_sage_ref, b1_ref,
    w2_ref, b2_ref, w3_ref, b3_ref,
    o_ref):
    f32 = jnp.float32
    bf16 = jnp.bfloat16

    ah = a_hat_ref[...]           # (TM, NP) bf16, GCN-normalized adjacency rows (incl. self-loops)
    am = a_mean_ref[...]          # (TM, NP) bf16, row-normalized (mean) adjacency rows
    xf = x_full_ref[...]          # (NP, Fin) bf16, all node features (grid-resident)
    xw_all = xw_all_ref[...]      # (NP, H)  bf16, precomputed X @ W_gat (grid-resident)
    tm = ah.shape[0]

    # This tile's rows, sliced from the resident full arrays (no extra DMA stream).
    row0 = pl.multiple_of(pl.program_id(0) * tm, tm)
    xt = x_full_ref[pl.ds(row0, tm), :]       # (TM, Fin) bf16
    xw_t = xw_all_ref[pl.ds(row0, tm), :]     # (TM, H)   bf16

    # ---- GCN branch: (A_hat @ X) @ W + b  (reassociated: Fin < H, bf16 MXU, f32 acc) ----
    ax = jnp.dot(ah, xf, preferred_element_type=f32)                          # (TM, Fin) f32
    x_gcn = jnp.dot(ax.astype(bf16), w_gcn_ref[...],
                    preferred_element_type=f32) + b_gcn_ref[...]

    # ---- SAGE branch: (A_mean @ X) @ W_l + X_i @ W_r + b ----
    mx = jnp.dot(am, xf, preferred_element_type=f32)                          # (TM, Fin) f32
    x_sage = (jnp.dot(mx.astype(bf16), w_sage_l_ref[...], preferred_element_type=f32)
              + jnp.dot(xt, w_sage_r_ref[...], preferred_element_type=f32)
              + b_sage_ref[...])

    # ---- GAT branch (single head, dense masked softmax over in-neighbours + self) ----
    adst = jnp.sum(xw_t.astype(f32) * att_dst_ref[...], axis=1, keepdims=True)   # (TM, 1)
    scores = adst + asrc_ref[...]                                                # (TM, NP) via bcast
    scores = jnp.where(scores > 0, scores, 0.2 * scores)                         # LeakyReLU(0.2)
    mask = ah > 0                                                                # edges + self-loops
    scores = jnp.where(mask, scores, -1e9)
    mrow = jnp.max(scores, axis=1, keepdims=True)
    pexp = jnp.where(mask, jnp.exp(scores - mrow), 0.0)
    denom = jnp.sum(pexp, axis=1, keepdims=True)
    inv = pl.reciprocal(jnp.where(denom > 0, denom, 1.0), approx=True)           # EUP slot
    attn = pexp * inv
    x_gat = jnp.dot(attn.astype(bf16), xw_all, preferred_element_type=f32) + b_gat_ref[...]

    # ---- per-branch BN (eval affine) + ReLU, then lin(3H->2H) as three partial dots ----
    h_gat = jnp.maximum(x_gat * bn_scale_gat_ref[...] + bn_shift_gat_ref[...], 0.0)
    h_gcn = jnp.maximum(x_gcn * bn_scale_gcn_ref[...] + bn_shift_gcn_ref[...], 0.0)
    h_sage = jnp.maximum(x_sage * bn_scale_sage_ref[...] + bn_shift_sage_ref[...], 0.0)
    h = (jnp.dot(h_gat.astype(bf16), w1_gat_ref[...], preferred_element_type=f32)
         + jnp.dot(h_gcn.astype(bf16), w1_gcn_ref[...], preferred_element_type=f32)
         + jnp.dot(h_sage.astype(bf16), w1_sage_ref[...], preferred_element_type=f32)
         + b1_ref[...])
    h = jnp.maximum(h, 0.0)
    h = jnp.maximum(jnp.dot(h.astype(bf16), w2_ref[...], preferred_element_type=f32)
                    + b2_ref[...], 0.0)
    o_ref[...] = jnp.dot(h.astype(bf16), w3_ref[...],
                         preferred_element_type=f32) + b3_ref[...]               # (TM, 128) lane-dense


def _vmem_limit_bytes(np_, tile_m, fin, hid):
    """Rough working-set estimate; lift the 32 MiB scoped default but stay safe on v7x (64 MiB)."""
    adj = 2 * 2 * tile_m * np_ * 2                 # a_hat + a_mean row tiles, double-buffered, bf16
    resident = (np_ * max(fin, 128) + np_ * max(hid, 128)) * 2   # x_full + xw_all (lane-padded)
    interm = 4 * tile_m * np_ * 4                  # live f32 (TM, NP) softmax intermediates
    need = adj + resident + interm + (1 << 21)
    return int(min(48 * 2**20, max(32 * 2**20, 2 * need)))


def mixed_forward(a_hat, a_mean, x_pad, xw_all, asrc, p, *, tile_m=128):
    """a_hat/a_mean/x_pad/xw_all already padded to NP rows (NP % 128 == 0) and cast to bf16."""
    np_, fin = x_pad.shape
    hid = p['w_gcn'].shape[1]
    tile_m = min(tile_m, np_)
    assert np_ % 128 == 0 and np_ % tile_m == 0 and tile_m % 8 == 0
    outp = p['w3'].shape[1]
    grid = (np_ // tile_m,)

    def row_tile(shape):
        return pl.BlockSpec(shape, lambda i: (i, 0))

    def full_block(shape):
        return pl.BlockSpec(shape, lambda i: (0, 0))

    in_specs = [
        row_tile((tile_m, np_)),             # a_hat row tile
        row_tile((tile_m, np_)),             # a_mean row tile
        full_block((np_, fin)),              # x (all nodes)
        full_block((np_, hid)),              # xw_all = X @ W_gat (all nodes)
        full_block((1, np_)),                # asrc row (per-node source attention score)
        full_block(p['att_dst'].shape), full_block(p['b_gat'].shape),
        full_block(p['w_gcn'].shape), full_block(p['b_gcn'].shape),
        full_block(p['w_sage_l'].shape), full_block(p['w_sage_r'].shape),
        full_block(p['b_sage'].shape),
        full_block(p['bn_scale_gat'].shape), full_block(p['bn_shift_gat'].shape),
        full_block(p['bn_scale_gcn'].shape), full_block(p['bn_shift_gcn'].shape),
        full_block(p['bn_scale_sage'].shape), full_block(p['bn_shift_sage'].shape),
        full_block(p['w1_gat'].shape), full_block(p['w1_gcn'].shape),
        full_block(p['w1_sage'].shape), full_block(p['b1'].shape),
        full_block(p['w2'].shape), full_block(p['b2'].shape),
        full_block(p['w3'].shape), full_block(p['b3'].shape),
    ]
    out_spec = pl.BlockSpec((tile_m, outp), lambda i: (i, 0))

    return pl.pallas_call(
        mixed_gnn_kernel,
        out_shape=jax.ShapeDtypeStruct((np_, outp), jnp.float32),
        grid=grid,
        in_specs=in_specs,
        out_specs=out_spec,
        compiler_params=pltpu.CompilerParams(
            dimension_semantics=("parallel",),
            vmem_limit_bytes=_vmem_limit_bytes(np_, tile_m, fin, hid)),
    )(a_hat, a_mean, x_pad, xw_all, asrc,
      p['att_dst'], p['b_gat'],
      p['w_gcn'], p['b_gcn'],
      p['w_sage_l'], p['w_sage_r'], p['b_sage'],
      p['bn_scale_gat'], p['bn_shift_gat'],
      p['bn_scale_gcn'], p['bn_shift_gcn'],
      p['bn_scale_sage'], p['bn_shift_sage'],
      p['w1_gat'], p['w1_gcn'], p['w1_sage'], p['b1'],
      p['w2'], p['b2'], p['w3'], p['b3'])


def precompute_gat_terms(x_bf, w_gat_bf, att_src_f32):
    """Grid-invariant GAT work hoisted out of the kernel (computed once, not per row-tile)."""
    xw_all = jnp.dot(x_bf, w_gat_bf, preferred_element_type=jnp.float32)   # (NP, H) f32
    asrc = jnp.sum(xw_all * att_src_f32, axis=1)[None, :]                  # (1, NP) f32
    return xw_all.astype(jnp.bfloat16), asrc.astype(jnp.float32)


def build_graph_operators(edge_index, padded_nodes):
    """Dense message operators, rows = target node, cols = source node."""
    src, dst = edge_index[0], edge_index[1]
    a = jnp.zeros((padded_nodes, padded_nodes), jnp.float32)
    a = a.at[dst, src].set(1.0)
    diag = jnp.arange(padded_nodes)
    a_noself = a.at[diag, diag].set(0.0)           # PyG: remove then add self-loops
    a_loop = a_noself.at[diag, diag].set(1.0)
    # GCN: D^-1/2 (A + I) D^-1/2
    deg = a_loop.sum(axis=1)
    dinv = jnp.where(deg > 0, 1.0 / jnp.sqrt(deg), 0.0)
    a_hat = dinv[:, None] * a_loop * dinv[None, :]
    # SAGE: mean over incoming neighbours (no self-loops)
    indeg = a_noself.sum(axis=1, keepdims=True)
    a_mean = a_noself / jnp.where(indeg > 0, indeg, 1.0)
    return a_hat, a_mean


def reference_forward(a_hat, a_mean, x, xw_all, asrc, p):
    """Plain-JAX reference on the same bf16-rounded operands and the same bf16 intermediate casts."""
    f32, bf = jnp.float32, jnp.bfloat16
    up = lambda t: t.astype(f32)
    ah, am, xf, xw = up(a_hat), up(a_mean), up(x), up(xw_all)
    ax = ah @ xf
    x_gcn = up(ax.astype(bf)) @ up(p['w_gcn']) + p['b_gcn']
    mx = am @ xf
    x_sage = up(mx.astype(bf)) @ up(p['w_sage_l']) + xf @ up(p['w_sage_r']) + p['b_sage']
    adst = jnp.sum(xw * p['att_dst'], axis=1, keepdims=True)
    scores = adst + asrc
    scores = jnp.where(scores > 0, scores, 0.2 * scores)
    mask = ah > 0
    scores = jnp.where(mask, scores, -1e9)
    mrow = jnp.max(scores, axis=1, keepdims=True)
    pexp = jnp.where(mask, jnp.exp(scores - mrow), 0.0)
    denom = jnp.sum(pexp, axis=1, keepdims=True)
    attn = pexp / jnp.where(denom > 0, denom, 1.0)
    x_gat = up(attn.astype(bf)) @ xw + p['b_gat']
    hg = jnp.maximum(x_gat * p['bn_scale_gat'] + p['bn_shift_gat'], 0.0)
    hc = jnp.maximum(x_gcn * p['bn_scale_gcn'] + p['bn_shift_gcn'], 0.0)
    hs = jnp.maximum(x_sage * p['bn_scale_sage'] + p['bn_shift_sage'], 0.0)
    h = (up(hg.astype(bf)) @ up(p['w1_gat']) + up(hc.astype(bf)) @ up(p['w1_gcn'])
         + up(hs.astype(bf)) @ up(p['w1_sage']) + p['b1'])
    h = jnp.maximum(h, 0.0)
    h = jnp.maximum(up(h.astype(bf)) @ up(p['w2']) + p['b2'], 0.0)
    return up(h.astype(bf)) @ up(p['w3']) + p['b3']


def glorot(key, shape):
    fan_in, fan_out = shape
    lim = jnp.sqrt(6.0 / (fan_in + fan_out))
    return jax.random.uniform(key, shape, jnp.float32, -lim, lim)


if __name__ == "__main__":
    N, IN_DIM, HID, OUT_DIM = 200, 8, 32, 16
    TM = 128          # MXU-height row tile (v5e MXU width; also fine on v6e/v7x)
    LANE = 128

    key = jax.random.PRNGKey(0)
    ks = jax.random.split(key, 12)

    # node features + deterministic undirected ring graph
    x = jax.random.normal(ks[0], (N, IN_DIM), jnp.float32)
    src = jnp.arange(N, dtype=jnp.int32)
    dst = (src + 1) % N
    edge_index = jnp.stack(
        [jnp.concatenate([src, dst]), jnp.concatenate([dst, src])], axis=0)

    # ---- parameters (deterministic) ----
    w_gat = glorot(ks[1], (IN_DIM, HID))
    att_src = glorot(ks[2], (1, HID))
    att_dst = glorot(ks[3], (1, HID))
    b_gat = jnp.zeros((1, HID), jnp.float32)
    w_gcn = glorot(ks[4], (IN_DIM, HID))
    b_gcn = jnp.zeros((1, HID), jnp.float32)
    w_sage_l = glorot(ks[5], (IN_DIM, HID))
    w_sage_r = glorot(ks[6], (IN_DIM, HID))
    b_sage = jnp.zeros((1, HID), jnp.float32)
    # BatchNorm1d(3H) eval-mode (default running stats) folded to scale/shift, split per branch
    eps = 1e-5
    bn_scale = jnp.ones((1, 3 * HID), jnp.float32) / jnp.sqrt(1.0 + eps)
    bn_shift = jnp.zeros((1, 3 * HID), jnp.float32)
    w1 = glorot(ks[7], (3 * HID, 2 * HID))
    b1 = jnp.zeros((1, 2 * HID), jnp.float32)            # module: zeros_(lin.bias)
    w2 = glorot(ks[8], (2 * HID, HID))
    b2 = jax.random.uniform(ks[10], (1, HID), jnp.float32, -0.1, 0.1)
    w3 = glorot(ks[9], (HID, OUT_DIM))
    b3 = jax.random.uniform(ks[11], (1, OUT_DIM), jnp.float32, -0.1, 0.1)

    # ---- padding: node rows to a multiple of 128 (lane-dense adjacency), lanes of out to 128 ----
    NP = max(TM, ((N + LANE - 1) // LANE) * LANE)
    OUTP = ((OUT_DIM + LANE - 1) // LANE) * LANE
    x_pad = jnp.zeros((NP, IN_DIM), jnp.float32).at[:N].set(x)
    a_hat, a_mean = build_graph_operators(edge_index, NP)
    w3_pad = jnp.zeros((HID, OUTP), jnp.float32).at[:, :OUT_DIM].set(w3)
    b3_pad = jnp.zeros((1, OUTP), jnp.float32).at[:, :OUT_DIM].set(b3)

    # ---- bf16 at the kernel boundary (matmul operands); biases / BN affine / att_dst stay f32 ----
    bf = lambda t: t.astype(jnp.bfloat16)
    a_hat_b, a_mean_b, x_b = bf(a_hat), bf(a_mean), bf(x_pad)
    params = dict(
        att_dst=att_dst, b_gat=b_gat,
        w_gcn=bf(w_gcn), b_gcn=b_gcn,
        w_sage_l=bf(w_sage_l), w_sage_r=bf(w_sage_r), b_sage=b_sage,
        bn_scale_gat=bn_scale[:, :HID], bn_shift_gat=bn_shift[:, :HID],
        bn_scale_gcn=bn_scale[:, HID:2 * HID], bn_shift_gcn=bn_shift[:, HID:2 * HID],
        bn_scale_sage=bn_scale[:, 2 * HID:], bn_shift_sage=bn_shift[:, 2 * HID:],
        w1_gat=bf(w1[:HID]), w1_gcn=bf(w1[HID:2 * HID]), w1_sage=bf(w1[2 * HID:]), b1=b1,
        w2=bf(w2), b2=b2, w3=bf(w3_pad), b3=b3_pad)

    # grid-invariant GAT projection + source scores, computed once outside the kernel
    xw_all_b, asrc = precompute_gat_terms(x_b, bf(w_gat), att_src)

    out_pad = mixed_forward(a_hat_b, a_mean_b, x_b, xw_all_b, asrc, params, tile_m=TM)
    out_pad = jax.block_until_ready(out_pad)
    out = out_pad[:N, :OUT_DIM]

    # ---- plain-JAX reference on the same bf16-rounded operands / intermediate casts ----
    ref_pad = reference_forward(a_hat_b, a_mean_b, x_b, xw_all_b, asrc, params)
    ref = ref_pad[:N, :OUT_DIM]

    assert out.shape == (N, OUT_DIM)
    # tolerance covers MXU accumulation-order differences + approx EUP reciprocal in the softmax
    assert jnp.allclose(out, ref, atol=1e-2, rtol=1e-2), float(jnp.max(jnp.abs(out - ref)))

    print("KERNEL_OK")
</pallas_src>

<mosaic_0001>
module attributes {stable_mosaic.version = 11 : i64} {
  func.func @mixed_gnn_kernel(%arg0: i32, %arg1: memref<128x256xbf16, #tpu.memory_space<vmem>>, %arg2: memref<128x256xbf16, #tpu.memory_space<vmem>>, %arg3: memref<256x8xbf16, #tpu.memory_space<vmem>>, %arg4: memref<256x32xbf16, #tpu.memory_space<vmem>>, %arg5: memref<1x256xf32, #tpu.memory_space<vmem>>, %arg6: memref<1x32xf32, #tpu.memory_space<vmem>>, %arg7: memref<1x32xf32, #tpu.memory_space<vmem>>, %arg8: memref<8x32xbf16, #tpu.memory_space<vmem>>, %arg9: memref<1x32xf32, #tpu.memory_space<vmem>>, %arg10: memref<8x32xbf16, #tpu.memory_space<vmem>>, %arg11: memref<8x32xbf16, #tpu.memory_space<vmem>>, %arg12: memref<1x32xf32, #tpu.memory_space<vmem>>, %arg13: memref<1x32xf32, #tpu.memory_space<vmem>>, %arg14: memref<1x32xf32, #tpu.memory_space<vmem>>, %arg15: memref<1x32xf32, #tpu.memory_space<vmem>>, %arg16: memref<1x32xf32, #tpu.memory_space<vmem>>, %arg17: memref<1x32xf32, #tpu.memory_space<vmem>>, %arg18: memref<1x32xf32, #tpu.memory_space<vmem>>, %arg19: memref<32x64xbf16, #tpu.memory_space<vmem>>, %arg20: memref<32x64xbf16, #tpu.memory_space<vmem>>, %arg21: memref<32x64xbf16, #tpu.memory_space<vmem>>, %arg22: memref<1x64xf32, #tpu.memory_space<vmem>>, %arg23: memref<64x32xbf16, #tpu.memory_space<vmem>>, %arg24: memref<1x32xf32, #tpu.memory_space<vmem>>, %arg25: memref<32x128xbf16, #tpu.memory_space<vmem>>, %arg26: memref<1x128xf32, #tpu.memory_space<vmem>>, %arg27: memref<128x128xf32, #tpu.memory_space<vmem>>) attributes {dimension_semantics = [#tpu.dimension_semantics<parallel>], iteration_bounds = array<i64: 2>, scalar_prefetch = 0 : i64, scratch_operands = 0 : i64, tpu.core_type = #tpu.core_type<tc>, window_params = [{transform_indices = @transform_0, window_bounds = array<i64: 128, 256>}, {transform_indices = @transform_1, window_bounds = array<i64: 128, 256>}, {pipeline_mode = #tpu.pipeline_mode<synchronous>, transform_indices = @transform_2, window_bounds = array<i64: 256, 8>}, {pipeline_mode = #tpu.pipeline_mode<synchronous>, transform_indices = @transform_3, window_bounds = array<i64: 256, 32>}, {pipeline_mode = #tpu.pipeline_mode<synchronous>, transform_indices = @transform_4, window_bounds = array<i64: 1, 256>}, {pipeline_mode = #tpu.pipeline_mode<synchronous>, transform_indices = @transform_5, window_bounds = array<i64: 1, 32>}, {pipeline_mode = #tpu.pipeline_mode<synchronous>, transform_indices = @transform_6, window_bounds = array<i64: 1, 32>}, {pipeline_mode = #tpu.pipeline_mode<synchronous>, transform_indices = @transform_7, window_bounds = array<i64: 8, 32>}, {pipeline_mode = #tpu.pipeline_mode<synchronous>, transform_indices = @transform_8, window_bounds = array<i64: 1, 32>}, {pipeline_mode = #tpu.pipeline_mode<synchronous>, transform_indices = @transform_9, window_bounds = array<i64: 8, 32>}, {pipeline_mode = #tpu.pipeline_mode<synchronous>, transform_indices = @transform_10, window_bounds = array<i64: 8, 32>}, {pipeline_mode = #tpu.pipeline_mode<synchronous>, transform_indices = @transform_11, window_bounds = array<i64: 1, 32>}, {pipeline_mode = #tpu.pipeline_mode<synchronous>, transform_indices = @transform_12, window_bounds = array<i64: 1, 32>}, {pipeline_mode = #tpu.pipeline_mode<synchronous>, transform_indices = @transform_13, window_bounds = array<i64: 1, 32>}, {pipeline_mode = #tpu.pipeline_mode<synchronous>, transform_indices = @transform_14, window_bounds = array<i64: 1, 32>}, {pipeline_mode = #tpu.pipeline_mode<synchronous>, transform_indices = @transform_15, window_bounds = array<i64: 1, 32>}, {pipeline_mode = #tpu.pipeline_mode<synchronous>, transform_indices = @transform_16, window_bounds = array<i64: 1, 32>}, {pipeline_mode = #tpu.pipeline_mode<synchronous>, transform_indices = @transform_17, window_bounds = array<i64: 1, 32>}, {pipeline_mode = #tpu.pipeline_mode<synchronous>, transform_indices = @transform_18, window_bounds = array<i64: 32, 64>}, {pipeline_mode = #tpu.pipeline_mode<synchronous>, transform_indices = @transform_19, window_bounds = array<i64: 32, 64>}, {pipeline_mode = #tpu.pipeline_mode<synchronous>, transform_indices = @transform_20, window_bounds = array<i64: 32, 64>}, {pipeline_mode = #tpu.pipeline_mode<synchronous>, transform_indices = @transform_21, window_bounds = array<i64: 1, 64>}, {pipeline_mode = #tpu.pipeline_mode<synchronous>, transform_indices = @transform_22, window_bounds = array<i64: 64, 32>}, {pipeline_mode = #tpu.pipeline_mode<synchronous>, transform_indices = @transform_23, window_bounds = array<i64: 1, 32>}, {pipeline_mode = #tpu.pipeline_mode<synchronous>, transform_indices = @transform_24, window_bounds = array<i64: 32, 128>}, {pipeline_mode = #tpu.pipeline_mode<synchronous>, transform_indices = @transform_25, window_bounds = array<i64: 1, 128>}, {transform_indices = @transform_26, window_bounds = array<i64: 128, 128>}]} {
    %c0 = arith.constant 0 : index
    %c0_0 = arith.constant 0 : index
    %0 = vector.load %arg1[%c0, %c0_0] : memref<128x256xbf16, #tpu.memory_space<vmem>>, vector<128x256xbf16>
    %c0_1 = arith.constant 0 : index
    %c0_2 = arith.constant 0 : index
    %1 = vector.load %arg2[%c0_1, %c0_2] : memref<128x256xbf16, #tpu.memory_space<vmem>>, vector<128x256xbf16>
    %c0_3 = arith.constant 0 : index
    %c0_4 = arith.constant 0 : index
    %2 = vector.load %arg3[%c0_3, %c0_4] : memref<256x8xbf16, #tpu.memory_space<vmem>>, vector<256x8xbf16>
    %c0_5 = arith.constant 0 : index
    %c0_6 = arith.constant 0 : index
    %3 = vector.load %arg4[%c0_5, %c0_6] : memref<256x32xbf16, #tpu.memory_space<vmem>>, vector<256x32xbf16>
    %c128_i32 = arith.constant 128 : i32
    %4 = arith.muli %arg0, %c128_i32 : i32
    %5 = tpu.assume_multiple %4, 128 : i32
    %6 = arith.index_cast %5 : i32 to index
    %c0_7 = arith.constant 0 : index
    %7 = vector.load %arg3[%6, %c0_7] : memref<256x8xbf16, #tpu.memory_space<vmem>>, vector<128x8xbf16>
    %8 = arith.index_cast %5 : i32 to index
    %c0_8 = arith.constant 0 : index
    %9 = vector.load %arg4[%8, %c0_8] : memref<256x32xbf16, #tpu.memory_space<vmem>>, vector<128x32xbf16>
    %cst = arith.constant dense<0.000000e+00> : vector<128x8xf32>
    %10 = tpu.matmul %0, %2, %cst {dimension_numbers = #tpu.dot_dimension_numbers<[1], [0], [0], [1], [0, 0, 1, 1], [], []>} : vector<128x256xbf16>, vector<256x8xbf16>, vector<128x8xf32> -> vector<128x8xf32>
    %11 = arith.truncf %10 : vector<128x8xf32> to vector<128x8xbf16>
    %c0_9 = arith.constant 0 : index
    %c0_10 = arith.constant 0 : index
    %12 = vector.load %arg8[%c0_9, %c0_10] : memref<8x32xbf16, #tpu.memory_space<vmem>>, vector<8x32xbf16>
    %cst_11 = arith.constant dense<0.000000e+00> : vector<128x32xf32>
    %13 = tpu.matmul %11, %12, %cst_11 {dimension_numbers = #tpu.dot_dimension_numbers<[1], [0], [0], [1], [0, 0, 1, 1], [], []>} : vector<128x8xbf16>, vector<8x32xbf16>, vector<128x32xf32> -> vector<128x32xf32>
    %c0_12 = arith.constant 0 : index
    %c0_13 = arith.constant 0 : index
    %14 = vector.load %arg9[%c0_12, %c0_13] : memref<1x32xf32, #tpu.memory_space<vmem>>, vector<1x32xf32>
    %15 = vector.broadcast %14 : vector<1x32xf32> to vector<128x32xf32>
    %16 = arith.addf %13, %15 : vector<128x32xf32>
    %cst_14 = arith.constant dense<0.000000e+00> : vector<128x8xf32>
    %17 = tpu.matmul %1, %2, %cst_14 {dimension_numbers = #tpu.dot_dimension_numbers<[1], [0], [0], [1], [0, 0, 1, 1], [], []>} : vector<128x256xbf16>, vector<256x8xbf16>, vector<128x8xf32> -> vector<128x8xf32>
    %18 = arith.truncf %17 : vector<128x8xf32> to vector<128x8xbf16>
    %c0_15 = arith.constant 0 : index
    %c0_16 = arith.constant 0 : index
    %19 = vector.load %arg10[%c0_15, %c0_16] : memref<8x32xbf16, #tpu.memory_space<vmem>>, vector<8x32xbf16>
    %cst_17 = arith.constant dense<0.000000e+00> : vector<128x32xf32>
    %20 = tpu.matmul %18, %19, %cst_17 {dimension_numbers = #tpu.dot_dimension_numbers<[1], [0], [0], [1], [0, 0, 1, 1], [], []>} : vector<128x8xbf16>, vector<8x32xbf16>, vector<128x32xf32> -> vector<128x32xf32>
    %c0_18 = arith.constant 0 : index
    %c0_19 = arith.constant 0 : index
    %21 = vector.load %arg11[%c0_18, %c0_19] : memref<8x32xbf16, #tpu.memory_space<vmem>>, vector<8x32xbf16>
    %cst_20 = arith.constant dense<0.000000e+00> : vector<128x32xf32>
    %22 = tpu.matmul %7, %21, %cst_20 {dimension_numbers = #tpu.dot_dimension_numbers<[1], [0], [0], [1], [0, 0, 1, 1], [], []>} : vector<128x8xbf16>, vector<8x32xbf16>, vector<128x32xf32> -> vector<128x32xf32>
    %23 = arith.addf %20, %22 : vector<128x32xf32>
    %c0_21 = arith.constant 0 : index
    %c0_22 = arith.constant 0 : index
    %24 = vector.load %arg12[%c0_21, %c0_22] : memref<1x32xf32, #tpu.memory_space<vmem>>, vector<1x32xf32>
    %25 = vector.broadcast %24 : vector<1x32xf32> to vector<128x32xf32>
    %26 = arith.addf %23, %25 : vector<128x32xf32>
    %27 = arith.extf %9 : vector<128x32xbf16> to vector<128x32xf32>
    %c0_23 = arith.constant 0 : index
    %c0_24 = arith.constant 0 : index
    %28 = vector.load %arg6[%c0_23, %c0_24] : memref<1x32xf32, #tpu.memory_space<vmem>>, vector<1x32xf32>
    %29 = vector.broadcast %28 : vector<1x32xf32> to vector<128x32xf32>
    %30 = arith.mulf %27, %29 : vector<128x32xf32>
    %cst_25 = arith.constant dense<0.000000e+00> : vector<128xf32>
    %31 = vector.multi_reduction <add>, %30, %cst_25 [1] : vector<128x32xf32> to vector<128xf32>
    %32 = vector.shape_cast %31 : vector<128xf32> to vector<128x1xf32>
    %c0_26 = arith.constant 0 : index
    %c0_27 = arith.constant 0 : index
    %33 = vector.load %arg5[%c0_26, %c0_27] : memref<1x256xf32, #tpu.memory_space<vmem>>, vector<1x256xf32>
    %34 = vector.broadcast %32 : vector<128x1xf32> to vector<128x256xf32>
    %35 = vector.broadcast %33 : vector<1x256xf32> to vector<128x256xf32>
    %36 = arith.addf %34, %35 : vector<128x256xf32>
    %cst_28 = arith.constant 0.000000e+00 : f32
    %37 = vector.broadcast %cst_28 : f32 to vector<128x256xf32>
    %38 = arith.cmpf ogt, %36, %37 : vector<128x256xf32>
    %cst_29 = arith.constant 2.000000e-01 : f32
    %39 = vector.broadcast %cst_29 : f32 to vector<128x256xf32>
    %40 = arith.mulf %39, %36 : vector<128x256xf32>
    %41 = arith.select %38, %36, %40 : vector<128x256xi1>, vector<128x256xf32>
    %cst_30 = arith.constant 0.000000e+00 : bf16
    %42 = vector.broadcast %cst_30 : bf16 to vector<128x256xbf16>
    %43 = arith.cmpf ogt, %0, %42 : vector<128x256xbf16>
    %cst_31 = arith.constant -1.000000e+09 : f32
    %44 = vector.broadcast %cst_31 : f32 to vector<128x256xf32>
    %45 = arith.select %43, %41, %44 : vector<128x256xi1>, vector<128x256xf32>
    %cst_32 = arith.constant dense<0xFF800000> : vector<128xf32>
    %46 = vector.multi_reduction <maximumf>, %45, %cst_32 [1] : vector<128x256xf32> to vector<128xf32>
    %47 = vector.shape_cast %46 : vector<128xf32> to vector<128x1xf32>
    %48 = vector.broadcast %47 : vector<128x1xf32> to vector<128x256xf32>
    %49 = arith.subf %45, %48 : vector<128x256xf32>
    %50 = math.exp %49 : vector<128x256xf32>
    %cst_33 = arith.constant 0.000000e+00 : f32
    %51 = vector.broadcast %cst_33 : f32 to vector<128x256xf32>
    %52 = arith.select %43, %50, %51 : vector<128x256xi1>, vector<128x256xf32>
    %cst_34 = arith.constant dense<0.000000e+00> : vector<128xf32>
    %53 = vector.multi_reduction <add>, %52, %cst_34 [1] : vector<128x256xf32> to vector<128xf32>
    %54 = vector.shape_cast %53 : vector<128xf32> to vector<128x1xf32>
    %cst_35 = arith.constant 0.000000e+00 : f32
    %55 = vector.broadcast %cst_35 : f32 to vector<128x1xf32>
    %56 = arith.cmpf ogt, %54, %55 : vector<128x1xf32>
    %cst_36 = arith.constant 1.000000e+00 : f32
    %57 = vector.broadcast %cst_36 : f32 to vector<128x1xf32>
    %58 = arith.select %56, %54, %57 : vector<128x1xi1>, vector<128x1xf32>
    %59 = tpu.reciprocal %58 {approx = true} : vector<128x1xf32> -> vector<128x1xf32>
    %60 = vector.broadcast %59 : vector<128x1xf32> to vector<128x256xf32>
    %61 = arith.mulf %52, %60 : vector<128x256xf32>
    %62 = arith.truncf %61 : vector<128x256xf32> to vector<128x256xbf16>
    %cst_37 = arith.constant dense<0.000000e+00> : vector<128x32xf32>
    %63 = tpu.matmul %62, %3, %cst_37 {dimension_numbers = #tpu.dot_dimension_numbers<[1], [0], [0], [1], [0, 0, 1, 1], [], []>} : vector<128x256xbf16>, vector<256x32xbf16>, vector<128x32xf32> -> vector<128x32xf32>
    %c0_38 = arith.constant 0 : index
    %c0_39 = arith.constant 0 : index
    %64 = vector.load %arg7[%c0_38, %c0_39] : memref<1x32xf32, #tpu.memory_space<vmem>>, vector<1x32xf32>
    %65 = vector.broadcast %64 : vector<1x32xf32> to vector<128x32xf32>
    %66 = arith.addf %63, %65 : vector<128x32xf32>
    %c0_40 = arith.constant 0 : index
    %c0_41 = arith.constant 0 : index
    %67 = vector.load %arg13[%c0_40, %c0_41] : memref<1x32xf32, #tpu.memory_space<vmem>>, vector<1x32xf32>
    %68 = vector.broadcast %67 : vector<1x32xf32> to vector<128x32xf32>
    %69 = arith.mulf %66, %68 : vector<128x32xf32>
    %c0_42 = arith.constant 0 : index
    %c0_43 = arith.constant 0 : index
    %70 = vector.load %arg14[%c0_42, %c0_43] : memref<1x32xf32, #tpu.memory_space<vmem>>, vector<1x32xf32>
    %71 = vector.broadcast %70 : vector<1x32xf32> to vector<128x32xf32>
    %72 = arith.addf %69, %71 : vector<128x32xf32>
    %cst_44 = arith.constant 0.000000e+00 : f32
    %73 = vector.broadcast %cst_44 : f32 to vector<128x32xf32>
    %74 = arith.maximumf %72, %73 : vector<128x32xf32>
    %c0_45 = arith.constant 0 : index
    %c0_46 = arith.constant 0 : index
    %75 = vector.load %arg15[%c0_45, %c0_46] : memref<1x32xf32, #tpu.memory_space<vmem>>, vector<1x32xf32>
    %76 = vector.broadcast %75 : vector<1x32xf32> to vector<128x32xf32>
    %77 = arith.mulf %16, %76 : vector<128x32xf32>
    %c0_47 = arith.constant 0 : index
    %c0_48 = arith.constant 0 : index
    %78 = vector.load %arg16[%c0_47, %c0_48] : memref<1x32xf32, #tpu.memory_space<vmem>>, vector<1x32xf32>
    %79 = vector.broadcast %78 : vector<1x32xf32> to vector<128x32xf32>
    %80 = arith.addf %77, %79 : vector<128x32xf32>
    %cst_49 = arith.constant 0.000000e+00 : f32
    %81 = vector.broadcast %cst_49 : f32 to vector<128x32xf32>
    %82 = arith.maximumf %80, %81 : vector<128x32xf32>
    %c0_50 = arith.constant 0 : index
    %c0_51 = arith.constant 0 : index
    %83 = vector.load %arg17[%c0_50, %c0_51] : memref<1x32xf32, #tpu.memory_space<vmem>>, vector<1x32xf32>
    %84 = vector.broadcast %83 : vector<1x32xf32> to vector<128x32xf32>
    %85 = arith.mulf %26, %84 : vector<128x32xf32>
    %c0_52 = arith.constant 0 : index
    %c0_53 = arith.constant 0 : index
    %86 = vector.load %arg18[%c0_52, %c0_53] : memref<1x32xf32, #tpu.memory_space<vmem>>, vector<1x32xf32>
    %87 = vector.broadcast %86 : vector<1x32xf32> to vector<128x32xf32>
    %88 = arith.addf %85, %87 : vector<128x32xf32>
    %cst_54 = arith.constant 0.000000e+00 : f32
    %89 = vector.broadcast %cst_54 : f32 to vector<128x32xf32>
    %90 = arith.maximumf %88, %89 : vector<128x32xf32>
    %91 = arith.truncf %74 : vector<128x32xf32> to vector<128x32xbf16>
    %c0_55 = arith.constant 0 : index
    %c0_56 = arith.constant 0 : index
    %92 = vector.load %arg19[%c0_55, %c0_56] : memref<32x64xbf16, #tpu.memory_space<vmem>>, vector<32x64xbf16>
    %cst_57 = arith.constant dense<0.000000e+00> : vector<128x64xf32>
    %93 = tpu.matmul %91, %92, %cst_57 {dimension_numbers = #tpu.dot_dimension_numbers<[1], [0], [0], [1], [0, 0, 1, 1], [], []>} : vector<128x32xbf16>, vector<32x64xbf16>, vector<128x64xf32> -> vector<128x64xf32>
    %94 = arith.truncf %82 : vector<128x32xf32> to vector<128x32xbf16>
    %c0_58 = arith.constant 0 : index
    %c0_59 = arith.constant 0 : index
    %95 = vector.load %arg20[%c0_58, %c0_59] : memref<32x64xbf16, #tpu.memory_space<vmem>>, vector<32x64xbf16>
    %cst_60 = arith.constant dense<0.000000e+00> : vector<128x64xf32>
    %96 = tpu.matmul %94, %95, %cst_60 {dimension_numbers = #tpu.dot_dimension_numbers<[1], [0], [0], [1], [0, 0, 1, 1], [], []>} : vector<128x32xbf16>, vector<32x64xbf16>, vector<128x64xf32> -> vector<128x64xf32>
    %97 = arith.addf %93, %96 : vector<128x64xf32>
    %98 = arith.truncf %90 : vector<128x32xf32> to vector<128x32xbf16>
    %c0_61 = arith.constant 0 : index
    %c0_62 = arith.constant 0 : index
    %99 = vector.load %arg21[%c0_61, %c0_62] : memref<32x64xbf16, #tpu.memory_space<vmem>>, vector<32x64xbf16>
    %cst_63 = arith.constant dense<0.000000e+00> : vector<128x64xf32>
    %100 = tpu.matmul %98, %99, %cst_63 {dimension_numbers = #tpu.dot_dimension_numbers<[1], [0], [0], [1], [0, 0, 1, 1], [], []>} : vector<128x32xbf16>, vector<32x64xbf16>, vector<128x64xf32> -> vector<128x64xf32>
    %101 = arith.addf %97, %100 : vector<128x64xf32>
    %c0_64 = arith.constant 0 : index
    %c0_65 = arith.constant 0 : index
    %102 = vector.load %arg22[%c0_64, %c0_65] : memref<1x64xf32, #tpu.memory_space<vmem>>, vector<1x64xf32>
    %103 = vector.broadcast %102 : vector<1x64xf32> to vector<128x64xf32>
    %104 = arith.addf %101, %103 : vector<128x64xf32>
    %cst_66 = arith.constant 0.000000e+00 : f32
    %105 = vector.broadcast %cst_66 : f32 to vector<128x64xf32>
    %106 = arith.maximumf %104, %105 : vector<128x64xf32>
    %107 = arith.truncf %106 : vector<128x64xf32> to vector<128x64xbf16>
    %c0_67 = arith.constant 0 : index
    %c0_68 = arith.constant 0 : index
    %108 = vector.load %arg23[%c0_67, %c0_68] : memref<64x32xbf16, #tpu.memory_space<vmem>>, vector<64x32xbf16>
    %cst_69 = arith.constant dense<0.000000e+00> : vector<128x32xf32>
    %109 = tpu.matmul %107, %108, %cst_69 {dimension_numbers = #tpu.dot_dimension_numbers<[1], [0], [0], [1], [0, 0, 1, 1], [], []>} : vector<128x64xbf16>, vector<64x32xbf16>, vector<128x32xf32> -> vector<128x32xf32>
    %c0_70 = arith.constant 0 : index
    %c0_71 = arith.constant 0 : index
    %110 = vector.load %arg24[%c0_70, %c0_71] : memref<1x32xf32, #tpu.memory_space<vmem>>, vector<1x32xf32>
    %111 = vector.broadcast %110 : vector<1x32xf32> to vector<128x32xf32>
    %112 = arith.addf %109, %111 : vector<128x32xf32>
    %cst_72 = arith.constant 0.000000e+00 : f32
    %113 = vector.broadcast %cst_72 : f32 to vector<128x32xf32>
    %114 = arith.maximumf %112, %113 : vector<128x32xf32>
    %115 = arith.truncf %114 : vector<128x32xf32> to vector<128x32xbf16>
    %c0_73 = arith.constant 0 : index
    %c0_74 = arith.constant 0 : index
    %116 = vector.load %arg25[%c0_73, %c0_74] : memref<32x128xbf16, #tpu.memory_space<vmem>>, vector<32x128xbf16>
    %cst_75 = arith.constant dense<0.000000e+00> : vector<128x128xf32>
    %117 = tpu.matmul %115, %116, %cst_75 {dimension_numbers = #tpu.dot_dimension_numbers<[1], [0], [0], [1], [0, 0, 1, 1], [], []>} : vector<128x32xbf16>, vector<32x128xbf16>, vector<128x128xf32> -> vector<128x128xf32>
    %c0_76 = arith.constant 0 : index
    %c0_77 = arith.constant 0 : index
    %118 = vector.load %arg26[%c0_76, %c0_77] : memref<1x128xf32, #tpu.memory_space<vmem>>, vector<1x128xf32>
    %119 = vector.broadcast %118 : vector<1x128xf32> to vector<128x128xf32>
    %120 = arith.addf %117, %119 : vector<128x128xf32>
    %c0_78 = arith.constant 0 : index
    %c0_79 = arith.constant 0 : index
    %121 = vector.load %arg27[%c0_78, %c0_79] : memref<128x128xf32, #tpu.memory_space<vmem>>, vector<128x128xf32>
    tpu.vector_store %arg27[%c0_78, %c0_79], %120 {strides = array<i32>} : memref<128x128xf32, #tpu.memory_space<vmem>>, vector<128x128xf32>,
    return
  }
  func.func @transform_0(%arg0: i32) -> (i32, i32) {
    %c0_i32 = arith.constant 0 : i32
    %c0_i32_0 = arith.constant 0 : i32
    return %arg0, %c0_i32 : i32, i32
  }
  func.func @transform_1(%arg0: i32) -> (i32, i32) {
    %c0_i32 = arith.constant 0 : i32
    %c0_i32_0 = arith.constant 0 : i32
    return %arg0, %c0_i32 : i32, i32
  }
  func.func @transform_2(%arg0: i32) -> (i32, i32) {
    %c0_i32 = arith.constant 0 : i32
    %c0_i32_0 = arith.constant 0 : i32
    %c0_i32_1 = arith.constant 0 : i32
    return %c0_i32, %c0_i32_0 : i32, i32
  }
  func.func @transform_3(%arg0: i32) -> (i32, i32) {
    %c0_i32 = arith.constant 0 : i32
    %c0_i32_0 = arith.constant 0 : i32
    %c0_i32_1 = arith.constant 0 : i32
    return %c0_i32, %c0_i32_0 : i32, i32
  }
  func.func @transform_4(%arg0: i32) -> (i32, i32) {
    %c0_i32 = arith.constant 0 : i32
    %c0_i32_0 = arith.constant 0 : i32
    %c0_i32_1 = arith.constant 0 : i32
    return %c0_i32, %c0_i32_0 : i32, i32
  }
  func.func @transform_5(%arg0: i32) -> (i32, i32) {
    %c0_i32 = arith.constant 0 : i32
    %c0_i32_0 = arith.constant 0 : i32
    %c0_i32_1 = arith.constant 0 : i32
    return %c0_i32, %c0_i32_0 : i32, i32
  }
  func.func @transform_6(%arg0: i32) -> (i32, i32) {
    %c0_i32 = arith.constant 0 : i32
    %c0_i32_0 = arith.constant 0 : i32
    %c0_i32_1 = arith.constant 0 : i32
    return %c0_i32, %c0_i32_0 : i32, i32
  }
  func.func @transform_7(%arg0: i32) -> (i32, i32) {
    %c0_i32 = arith.constant 0 : i32
    %c0_i32_0 = arith.constant 0 : i32
    %c0_i32_1 = arith.constant 0 : i32
    return %c0_i32, %c0_i32_0 : i32, i32
  }
  func.func @transform_8(%arg0: i32) -> (i32, i32) {
    %c0_i32 = arith.constant 0 : i32
    %c0_i32_0 = arith.constant 0 : i32
    %c0_i32_1 = arith.constant 0 : i32
    return %c0_i32, %c0_i32_0 : i32, i32
  }
  func.func @transform_9(%arg0: i32) -> (i32, i32) {
    %c0_i32 = arith.constant 0 : i32
    %c0_i32_0 = arith.constant 0 : i32
    %c0_i32_1 = arith.constant 0 : i32
    return %c0_i32, %c0_i32_0 : i32, i32
  }
  func.func @transform_10(%arg0: i32) -> (i32, i32) {
    %c0_i32 = arith.constant 0 : i32
    %c0_i32_0 = arith.constant 0 : i32
    %c0_i32_1 = arith.constant 0 : i32
    return %c0_i32, %c0_i32_0 : i32, i32
  }
  func.func @transform_11(%arg0: i32) -> (i32, i32) {
    %c0_i32 = arith.constant 0 : i32
    %c0_i32_0 = arith.constant 0 : i32
    %c0_i32_1 = arith.constant 0 : i32
    return %c0_i32, %c0_i32_0 : i32, i32
  }
  func.func @transform_12(%arg0: i32) -> (i32, i32) {
    %c0_i32 = arith.constant 0 : i32
    %c0_i32_0 = arith.constant 0 : i32
    %c0_i32_1 = arith.constant 0 : i32
    return %c0_i32, %c0_i32_0 : i32, i32
  }
  func.func @transform_13(%arg0: i32) -> (i32, i32) {
    %c0_i32 = arith.constant 0 : i32
    %c0_i32_0 = arith.constant 0 : i32
    %c0_i32_1 = arith.constant 0 : i32
    return %c0_i32, %c0_i32_0 : i32, i32
  }
  func.func @transform_14(%arg0: i32) -> (i32, i32) {
    %c0_i32 = arith.constant 0 : i32
    %c0_i32_0 = arith.constant 0 : i32
    %c0_i32_1 = arith.constant 0 : i32
    return %c0_i32, %c0_i32_0 : i32, i32
  }
  func.func @transform_15(%arg0: i32) -> (i32, i32) {
    %c0_i32 = arith.constant 0 : i32
    %c0_i32_0 = arith.constant 0 : i32
    %c0_i32_1 = arith.constant 0 : i32
    return %c0_i32, %c0_i32_0 : i32, i32
  }
  func.func @transform_16(%arg0: i32) -> (i32, i32) {
    %c0_i32 = arith.constant 0 : i32
    %c0_i32_0 = arith.constant 0 : i32
    %c0_i32_1 = arith.constant 0 : i32
    return %c0_i32, %c0_i32_0 : i32, i32
  }
  func.func @transform_17(%arg0: i32) -> (i32, i32) {
    %c0_i32 = arith.constant 0 : i32
    %c0_i32_0 = arith.constant 0 : i32
    %c0_i32_1 = arith.constant 0 : i32
    return %c0_i32, %c0_i32_0 : i32, i32
  }
  func.func @transform_18(%arg0: i32) -> (i32, i32) {
    %c0_i32 = arith.constant 0 : i32
    %c0_i32_0 = arith.constant 0 : i32
    %c0_i32_1 = arith.constant 0 : i32
    return %c0_i32, %c0_i32_0 : i32, i32
  }
  func.func @transform_19(%arg0: i32) -> (i32, i32) {
    %c0_i32 = arith.constant 0 : i32
    %c0_i32_0 = arith.constant 0 : i32
    %c0_i32_1 = arith.constant 0 : i32
    return %c0_i32, %c0_i32_0 : i32, i32
  }
  func.func @transform_20(%arg0: i32) -> (i32, i32) {
    %c0_i32 = arith.constant 0 : i32
    %c0_i32_0 = arith.constant 0 : i32
    %c0_i32_1 = arith.constant 0 : i32
    return %c0_i32, %c0_i32_0 : i32, i32
  }
  func.func @transform_21(%arg0: i32) -> (i32, i32) {
    %c0_i32 = arith.constant 0 : i32
    %c0_i32_0 = arith.constant 0 : i32
    %c0_i32_1 = arith.constant 0 : i32
    return %c0_i32, %c0_i32_0 : i32, i32
  }
  func.func @transform_22(%arg0: i32) -> (i32, i32) {
    %c0_i32 = arith.constant 0 : i32
    %c0_i32_0 = arith.constant 0 : i32
    %c0_i32_1 = arith.constant 0 : i32
    return %c0_i32, %c0_i32_0 : i32, i32
  }
  func.func @transform_23(%arg0: i32) -> (i32, i32) {
    %c0_i32 = arith.constant 0 : i32
    %c0_i32_0 = arith.constant 0 : i32
    %c0_i32_1 = arith.constant 0 : i32
    return %c0_i32, %c0_i32_0 : i32, i32
  }
  func.func @transform_24(%arg0: i32) -> (i32, i32) {
    %c0_i32 = arith.constant 0 : i32
    %c0_i32_0 = arith.constant 0 : i32
    %c0_i32_1 = arith.constant 0 : i32
    return %c0_i32, %c0_i32_0 : i32, i32
  }
  func.func @transform_25(%arg0: i32) -> (i32, i32) {
    %c0_i32 = arith.constant 0 : i32
    %c0_i32_0 = arith.constant 0 : i32
    %c0_i32_1 = arith.constant 0 : i32
    return %c0_i32, %c0_i32_0 : i32, i32
  }
  func.func @transform_26(%arg0: i32) -> (i32, i32) {
    %c0_i32 = arith.constant 0 : i32
    %c0_i32_0 = arith.constant 0 : i32
    return %arg0, %c0_i32 : i32, i32
  }
}

</mosaic_0001>

<llo_original>
// kernel: tpu_custom_call.1
$region0: #{tpu_custom_call.1}
  #allocation0 [shape = 'u32[]', space=smem, size = 0x4, offset = 0x4, fixed_abs, tag = 'smem constant byte address 0x4 - core index']
  #allocation1 [shape = 'u32[144,128]{1,0:T(1,128)}', space=vmem, size = 0x12000, scoped, tag = 'internal scratch']
  %s0 = inlined_call_operand.vmem [shape: bf16[256,256], index: 0, kind: input, shape index: {}]
  %s1 = inlined_call_operand.hbm [shape: bf16[256,256], index: 1, kind: input, shape index: {}]
  %s2 = inlined_call_operand.vmem [shape: bf16[256,8], index: 2, kind: input, shape index: {}]
  %s3 = inlined_call_operand.vmem [shape: bf16[256,32], index: 3, kind: input, shape index: {}]
  %s4 = inlined_call_operand.hbm [shape: f32[1,256], index: 4, kind: input, shape index: {}]
  %s5 = inlined_call_operand.vmem [shape: f32[1,32], index: 5, kind: input, shape index: {}]
  %s6 = inlined_call_operand.hbm [shape: f32[1,32], index: 6, kind: input, shape index: {}]
  %s7 = inlined_call_operand.vmem [shape: bf16[8,32], index: 7, kind: input, shape index: {}]
  %s8 = inlined_call_operand.hbm [shape: f32[1,32], index: 8, kind: input, shape index: {}]
  %s9 = inlined_call_operand.vmem [shape: bf16[8,32], index: 9, kind: input, shape index: {}]
  %s10 = inlined_call_operand.vmem [shape: bf16[8,32], index: 10, kind: input, shape index: {}]
  %s11 = inlined_call_operand.hbm [shape: f32[1,32], index: 11, kind: input, shape index: {}]
  %s12 = inlined_call_operand.vmem [shape: f32[1,32], index: 12, kind: input, shape index: {}]
  %s13 = inlined_call_operand.vmem [shape: f32[1,32], index: 13, kind: input, shape index: {}]
  %s14 = inlined_call_operand.vmem [shape: f32[1,32], index: 14, kind: input, shape index: {}]
  %s15 = inlined_call_operand.vmem [shape: f32[1,32], index: 15, kind: input, shape index: {}]
  %s16 = inlined_call_operand.vmem [shape: f32[1,32], index: 16, kind: input, shape index: {}]
  %s17 = inlined_call_operand.vmem [shape: f32[1,32], index: 17, kind: input, shape index: {}]
  %s18 = inlined_call_operand.vmem [shape: bf16[32,64], index: 18, kind: input, shape index: {}]
  %s19 = inlined_call_operand.vmem [shape: bf16[32,64], index: 19, kind: input, shape index: {}]
  %s20 = inlined_call_operand.vmem [shape: bf16[32,64], index: 20, kind: input, shape index: {}]
  %s21 = inlined_call_operand.vmem [shape: f32[1,64], index: 21, kind: input, shape index: {}]
  %s22 = inlined_call_operand.vmem [shape: bf16[64,32], index: 22, kind: input, shape index: {}]
  %s23 = inlined_call_operand.vmem [shape: f32[1,32], index: 23, kind: input, shape index: {}]
  %s24 = inlined_call_operand.vmem [shape: bf16[32,128], index: 24, kind: input, shape index: {}]
  %s25 = inlined_call_operand.vmem [shape: f32[1,128], index: 25, kind: input, shape index: {}]
  %s26 = inlined_call_operand.hbm [shape: f32[256,128], index: 26, kind: output, shape index: {}]
  %s27 = sld [smem:[#allocation0]]
  $region157: #{tpu_custom_call.1} parent=0
    _
  %s29 = ssub.s32 1, %s27
  %s30 = scalar_select 0, %s29, %s27
  $region1: #{tpu_custom_call.1} parent=0
    #allocation2 [shape = 'u8[131072]{0}', space=vmem, size = 0x20000, scoped, tag = 'input window, operand 1']
    #allocation3 [shape = 's32[2]{0}', space=sflag, size = 0x8, scoped, tag = 'scoped memory for tpu_custom_call.1']
    #allocation4 [shape = 's32[2]{0}', space=sflag, size = 0x8, scoped, tag = 'scoped memory for tpu_custom_call.1']
    #allocation5 [shape = 'u8[1024]{0}', space=vmem, size = 0x400, scoped, tag = 'input window, operand 4, single buffered']
    #allocation6 [shape = 's32[1]{0}', space=sflag, size = 0x4, scoped, tag = 'scoped memory for tpu_custom_call.1']
    #allocation7 [shape = 'u8[512]{0}', space=vmem, size = 0x400, scoped, tag = 'input window, operand 6, single buffered']
    #allocation8 [shape = 'u8[512]{0}', space=vmem, size = 0x400, scoped, tag = 'input window, operand 8, single buffered']
    #allocation9 [shape = 's32[1]{0}', space=sflag, size = 0x4, scoped, tag = 'scoped memory for tpu_custom_call.1']
    #allocation10 [shape = 'u8[512]{0}', space=vmem, size = 0x400, scoped, tag = 'input window, operand 11, single buffered']
    #allocation11 [shape = 'u8[131072]{0}', space=vmem, size = 0x20000, scoped, tag = 'output window, operand 0']
    %31 = vsyncpa [#allocation3], 0
    %s32 = scalar_lea.sflag [#allocation3], 1
    %33 = vsyncpa %s32, 0
    %34 = vsyncpa [#allocation6], 0
    %35 = vsyncpa [#allocation9], 0
    %36 = vsyncpa [#allocation4], 0
    %s37 = scalar_lea.sflag [#allocation4], 1
    %38 = vsyncpa %s37, 0
    loop: start=0, step=1, limit=4
    $region2: #{tpu_custom_call.1} parent=1 // loop_pre_header
      _
    $region3: #{tpu_custom_call.1} parent=1 // loop_header
      %s40 = sphi 0, %s44
      %p41 = scmp.ge.s32.totalorder %s40, 4
      %s50 = sphi 0, %s52
      %s53 = sphi 0, %s50
      %s54 = sphi 0, %s53
      %s70 = sphi 0, %s54
      %s76 = sphi 0, %s78
      %s79 = sphi 0, %s76
      %s80 = sphi 0, %s79
      %s96 = sphi 0, %s80
      %s100 = sphi 0, %s100
      %s102 = sphi 0, %s100
      %s103 = sphi 0, %s102
      %s117 = sphi 0, %s103
      %s121 = sphi 0, %s121
      %s123 = sphi 0, %s121
      %s124 = sphi 0, %s123
      %s138 = sphi 0, %s124
      %s142 = sphi 0, %s142
      %s144 = sphi 0, %s142
      %s145 = sphi 0, %s144
      %s159 = sphi 0, %s145
      %s163 = sphi 0, %s163
      %s165 = sphi 0, %s163
      %s166 = sphi 0, %s165
      %s180 = sphi 0, %s166
      %s184 = sphi 0, %s184
      %s186 = sphi 0, %s184
      %s187 = sphi 0, %s186
      %s201 = sphi 0, %s187
      %s205 = sphi 0, %s205
      %s207 = sphi 0, %s205
      %s208 = sphi 0, %s207
      %s222 = sphi 0, %s208
      %s226 = sphi 0, %s226
      %s228 = sphi 0, %s226
      %s229 = sphi 0, %s228
      %s243 = sphi 0, %s229
      %s247 = sphi 0, %s247
      %s249 = sphi 0, %s247
      %s250 = sphi 0, %s249
      %s264 = sphi 0, %s250
      %s268 = sphi 0, %s268
      %s270 = sphi 0, %s268
      %s271 = sphi 0, %s270
      %s285 = sphi 0, %s271
      %s289 = sphi 0, %s289
      %s291 = sphi 0, %s289
      %s292 = sphi 0, %s291
      %s306 = sphi 0, %s292
      %s310 = sphi 0, %s310
      %s312 = sphi 0, %s310
      %s313 = sphi 0, %s312
      %s327 = sphi 0, %s313
      %s331 = sphi 0, %s331
      %s333 = sphi 0, %s331
      %s334 = sphi 0, %s333
      %s348 = sphi 0, %s334
      %s352 = sphi 0, %s352
      %s354 = sphi 0, %s352
      %s355 = sphi 0, %s354
      %s369 = sphi 0, %s355
      %s373 = sphi 0, %s373
      %s375 = sphi 0, %s373
      %s376 = sphi 0, %s375
      %s390 = sphi 0, %s376
      %s394 = sphi 0, %s394
      %s396 = sphi 0, %s394
      %s397 = sphi 0, %s396
      %s411 = sphi 0, %s397
      %s415 = sphi 0, %s415
      %s417 = sphi 0, %s415
      %s418 = sphi 0, %s417
      %s432 = sphi 0, %s418
      %s436 = sphi 0, %s436
      %s438 = sphi 0, %s436
      %s439 = sphi 0, %s438
      %s453 = sphi 0, %s439
      %s457 = sphi 0, %s457
      %s459 = sphi 0, %s457
      %s460 = sphi 0, %s459
      %s474 = sphi 0, %s460
      %s478 = sphi 0, %s478
      %s480 = sphi 0, %s478
      %s481 = sphi 0, %s480
      %s495 = sphi 0, %s481
      %s499 = sphi 0, %s499
      %s501 = sphi 0, %s499
      %s502 = sphi 0, %s501
      %s516 = sphi 0, %s502
      %s520 = sphi 0, %s520
      %s522 = sphi 0, %s520
      %s523 = sphi 0, %s522
      %s537 = sphi 0, %s523
      %s541 = sphi 0, %s541
      %s543 = sphi 0, %s541
      %s544 = sphi 0, %s543
      %s558 = sphi 0, %s544
      %s562 = sphi 0, %s562
      %s564 = sphi 0, %s562
      %s565 = sphi 0, %s564
      %s579 = sphi 0, %s565
      %s583 = sphi 0, %s583
      %s585 = sphi 0, %s583
      %s586 = sphi 0, %s585
      %s600 = sphi 0, %s586
      %s606 = sphi 0, %s608
      %s609 = sphi 0, %s606
      %s610 = sphi 0, %s609
      %s626 = sphi 0, %s610
    $region4: #{tpu_custom_call.1} parent=1 // loop_header_branch
      %43 = sbr.rel (%p41) target = $region8
    $region5: #{tpu_custom_call.1} parent=1 // loop_body
      %s45 = ssub.s32 %s40, 1
      %s46 = ssub.s32 %s40, 2
      %s47 = sadd.s32 %s40, 1
      %s48 = ssub.s32 %s40, %s47
      %p49 = scmp.eq.s32.totalorder %s48, 0
      %s51 = sadd.s32 %s50, 1
      %s52 = scalar_select %p49, %s50, %s51
      %p55 = pneg %p49
      %p56 = scmp.eq.s32.totalorder %s40, 1
      %p57 = por %p55, %p56
      %p58 = scmp.ne.s32.totalorder %s50, %s53
      %p59 = scmp.eq.s32.totalorder %s40, 0
      %p60 = por %p58, %p59
      %p61 = scmp.ne.s32.totalorder %s50, %s53
      %p62 = scmp.eq.s32.totalorder %s45, 1
      %p63 = por %p61, %p62
      %p64 = scmp.ne.s32.totalorder %s53, %s54
      %p65 = scmp.eq.s32.totalorder %s45, 0
      %p66 = por %p64, %p65
      %p67 = scmp.ne.s32.totalorder %s53, %s54
      %p68 = scmp.eq.s32.totalorder %s46, 1
      %p69 = por %p67, %p68
      %p71 = scmp.ne.s32.totalorder %s54, %s70
      %p72 = scmp.eq.s32.totalorder %s46, 0
      %p73 = por %p71, %p72
      %s74 = ssub.s32 %s40, %s47
      %p75 = scmp.eq.s32.totalorder %s74, 0
      %s77 = sadd.s32 %s76, 1
      %s78 = scalar_select %p75, %s76, %s77
      %p81 = pneg %p75
      %p82 = scmp.eq.s32.totalorder %s40, 1
      %p83 = por %p81, %p82
      %p84 = scmp.ne.s32.totalorder %s76, %s79
      %p85 = scmp.eq.s32.totalorder %s40, 0
      %p86 = por %p84, %p85
      %p87 = scmp.ne.s32.totalorder %s76, %s79
      %p88 = scmp.eq.s32.totalorder %s45, 1
      %p89 = por %p87, %p88
      %p90 = scmp.ne.s32.totalorder %s79, %s80
      %p91 = scmp.eq.s32.totalorder %s45, 0
      %p92 = por %p90, %p91
      %p93 = scmp.ne.s32.totalorder %s79, %s80
      %p94 = scmp.eq.s32.totalorder %s46, 1
      %p95 = por %p93, %p94
      %p97 = scmp.ne.s32.totalorder %s80, %s96
      %p98 = scmp.eq.s32.totalorder %s46, 0
      %p99 = por %p97, %p98
      %s101 = sadd.s32 %s100, 1
      %p104 = scmp.eq.s32.totalorder %s40, 1
      %p105 = scmp.ne.s32.totalorder %s100, %s102
      %p106 = scmp.eq.s32.totalorder %s40, 0
      %p107 = por %p105, %p106
      %p108 = scmp.ne.s32.totalorder %s100, %s102
      %p109 = scmp.eq.s32.totalorder %s45, 1
      %p110 = por %p108, %p109
      %p111 = scmp.ne.s32.totalorder %s102, %s103
      %p112 = scmp.eq.s32.totalorder %s45, 0
      %p113 = por %p111, %p112
      %p114 = scmp.ne.s32.totalorder %s102, %s103
      %p115 = scmp.eq.s32.totalorder %s46, 1
      %p116 = por %p114, %p115
      %p118 = scmp.ne.s32.totalorder %s103, %s117
      %p119 = scmp.eq.s32.totalorder %s46, 0
      %p120 = por %p118, %p119
      %s122 = sadd.s32 %s121, 1
      %p125 = scmp.eq.s32.totalorder %s40, 1
      %p126 = scmp.ne.s32.totalorder %s121, %s123
      %p127 = scmp.eq.s32.totalorder %s40, 0
      %p128 = por %p126, %p127
      %p129 = scmp.ne.s32.totalorder %s121, %s123
      %p130 = scmp.eq.s32.totalorder %s45, 1
      %p131 = por %p129, %p130
      %p132 = scmp.ne.s32.totalorder %s123, %s124
      %p133 = scmp.eq.s32.totalorder %s45, 0
      %p134 = por %p132, %p133
      %p135 = scmp.ne.s32.totalorder %s123, %s124
      %p136 = scmp.eq.s32.totalorder %s46, 1
      %p137 = por %p135, %p136
      %p139 = scmp.ne.s32.totalorder %s124, %s138
      %p140 = scmp.eq.s32.totalorder %s46, 0
      %p141 = por %p139, %p140
      %s143 = sadd.s32 %s142, 1
      %p146 = scmp.eq.s32.totalorder %s40, 1
      %p147 = scmp.ne.s32.totalorder %s142, %s144
      %p148 = scmp.eq.s32.totalorder %s40, 0
      %p149 = por %p147, %p148
      %p150 = scmp.ne.s32.totalorder %s142, %s144
      %p151 = scmp.eq.s32.totalorder %s45, 1
      %p152 = por %p150, %p151
      %p153 = scmp.ne.s32.totalorder %s144, %s145
      %p154 = scmp.eq.s32.totalorder %s45, 0
      %p155 = por %p153, %p154
      %p156 = scmp.ne.s32.totalorder %s144, %s145
      %p157 = scmp.eq.s32.totalorder %s46, 1
      %p158 = por %p156, %p157
      %p160 = scmp.ne.s32.totalorder %s145, %s159
      %p161 = scmp.eq.s32.totalorder %s46, 0
      %p162 = por %p160, %p161
      %s164 = sadd.s32 %s163, 1
      %p167 = scmp.eq.s32.totalorder %s40, 1
      %p168 = scmp.ne.s32.totalorder %s163, %s165
      %p169 = scmp.eq.s32.totalorder %s40, 0
      %p170 = por %p168, %p169
      %p171 = scmp.ne.s32.totalorder %s163, %s165
      %p172 = scmp.eq.s32.totalorder %s45, 1
      %p173 = por %p171, %p172
      %p174 = scmp.ne.s32.totalorder %s165, %s166
      %p175 = scmp.eq.s32.totalorder %s45, 0
      %p176 = por %p174, %p175
      %p177 = scmp.ne.s32.totalorder %s165, %s166
      %p178 = scmp.eq.s32.totalorder %s46, 1
      %p179 = por %p177, %p178
      %p181 = scmp.ne.s32.totalorder %s166, %s180
      %p182 = scmp.eq.s32.totalorder %s46, 0
      %p183 = por %p181, %p182
      %s185 = sadd.s32 %s184, 1
      %p188 = scmp.eq.s32.totalorder %s40, 1
      %p189 = scmp.ne.s32.totalorder %s184, %s186
      %p190 = scmp.eq.s32.totalorder %s40, 0
      %p191 = por %p189, %p190
      %p192 = scmp.ne.s32.totalorder %s184, %s186
      %p193 = scmp.eq.s32.totalorder %s45, 1
      %p194 = por %p192, %p193
      %p195 = scmp.ne.s32.totalorder %s186, %s187
      %p196 = scmp.eq.s32.totalorder %s45, 0
      %p197 = por %p195, %p196
      %p198 = scmp.ne.s32.totalorder %s186, %s187
      %p199 = scmp.eq.s32.totalorder %s46, 1
      %p200 = por %p198, %p199
      %p202 = scmp.ne.s32.totalorder %s187, %s201
      %p203 = scmp.eq.s32.totalorder %s46, 0
      %p204 = por %p202, %p203
      %s206 = sadd.s32 %s205, 1
      %p209 = scmp.eq.s32.totalorder %s40, 1
      %p210 = scmp.ne.s32.totalorder %s205, %s207
      %p211 = scmp.eq.s32.totalorder %s40, 0
      %p212 = por %p210, %p211
      %p213 = scmp.ne.s32.totalorder %s205, %s207
      %p214 = scmp.eq.s32.totalorder %s45, 1
      %p215 = por %p213, %p214
      %p216 = scmp.ne.s32.totalorder %s207, %s208
      %p217 = scmp.eq.s32.totalorder %s45, 0
      %p218 = por %p216, %p217
      %p219 = scmp.ne.s32.totalorder %s207, %s208
      %p220 = scmp.eq.s32.totalorder %s46, 1
      %p221 = por %p219, %p220
      %p223 = scmp.ne.s32.totalorder %s208, %s222
      %p224 = scmp.eq.s32.totalorder %s46, 0
      %p225 = por %p223, %p224
      %s227 = sadd.s32 %s226, 1
      %p230 = scmp.eq.s32.totalorder %s40, 1
      %p231 = scmp.ne.s32.totalorder %s226, %s228
      %p232 = scmp.eq.s32.totalorder %s40, 0
      %p233 = por %p231, %p232
      %p234 = scmp.ne.s32.totalorder %s226, %s228
      %p235 = scmp.eq.s32.totalorder %s45, 1
      %p236 = por %p234, %p235
      %p237 = scmp.ne.s32.totalorder %s228, %s229
      %p238 = scmp.eq.s32.totalorder %s45, 0
      %p239 = por %p237, %p238
      %p240 = scmp.ne.s32.totalorder %s228, %s229
      %p241 = scmp.eq.s32.totalorder %s46, 1
      %p242 = por %p240, %p241
      %p244 = scmp.ne.s32.totalorder %s229, %s243
      %p245 = scmp.eq.s32.totalorder %s46, 0
      %p246 = por %p244, %p245
      %s248 = sadd.s32 %s247, 1
      %p251 = scmp.eq.s32.totalorder %s40, 1
      %p252 = scmp.ne.s32.totalorder %s247, %s249
      %p253 = scmp.eq.s32.totalorder %s40, 0
      %p254 = por %p252, %p253
      %p255 = scmp.ne.s32.totalorder %s247, %s249
      %p256 = scmp.eq.s32.totalorder %s45, 1
      %p257 = por %p255, %p256
      %p258 = scmp.ne.s32.totalorder %s249, %s250
      %p259 = scmp.eq.s32.totalorder %s45, 0
      %p260 = por %p258, %p259
      %p261 = scmp.ne.s32.totalorder %s249, %s250
      %p262 = scmp.eq.s32.totalorder %s46, 1
      %p263 = por %p261, %p262
      %p265 = scmp.ne.s32.totalorder %s250, %s264
      %p266 = scmp.eq.s32.totalorder %s46, 0
      %p267 = por %p265, %p266
      %s269 = sadd.s32 %s268, 1
      %p272 = scmp.eq.s32.totalorder %s40, 1
      %p273 = scmp.ne.s32.totalorder %s268, %s270
      %p274 = scmp.eq.s32.totalorder %s40, 0
      %p275 = por %p273, %p274
      %p276 = scmp.ne.s32.totalorder %s268, %s270
      %p277 = scmp.eq.s32.totalorder %s45, 1
      %p278 = por %p276, %p277
      %p279 = scmp.ne.s32.totalorder %s270, %s271
      %p280 = scmp.eq.s32.totalorder %s45, 0
      %p281 = por %p279, %p280
      %p282 = scmp.ne.s32.totalorder %s270, %s271
      %p283 = scmp.eq.s32.totalorder %s46, 1
      %p284 = por %p282, %p283
      %p286 = scmp.ne.s32.totalorder %s271, %s285
      %p287 = scmp.eq.s32.totalorder %s46, 0
      %p288 = por %p286, %p287
      %s290 = sadd.s32 %s289, 1
      %p293 = scmp.eq.s32.totalorder %s40, 1
      %p294 = scmp.ne.s32.totalorder %s289, %s291
      %p295 = scmp.eq.s32.totalorder %s40, 0
      %p296 = por %p294, %p295
      %p297 = scmp.ne.s32.totalorder %s289, %s291
      %p298 = scmp.eq.s32.totalorder %s45, 1
      %p299 = por %p297, %p298
      %p300 = scmp.ne.s32.totalorder %s291, %s292
      %p301 = scmp.eq.s32.totalorder %s45, 0
      %p302 = por %p300, %p301
      %p303 = scmp.ne.s32.totalorder %s291, %s292
      %p304 = scmp.eq.s32.totalorder %s46, 1
      %p305 = por %p303, %p304
      %p307 = scmp.ne.s32.totalorder %s292, %s306
      %p308 = scmp.eq.s32.totalorder %s46, 0
      %p309 = por %p307, %p308
      %s311 = sadd.s32 %s310, 1
      %p314 = scmp.eq.s32.totalorder %s40, 1
      %p315 = scmp.ne.s32.totalorder %s310, %s312
      %p316 = scmp.eq.s32.totalorder %s40, 0
      %p317 = por %p315, %p316
      %p318 = scmp.ne.s32.totalorder %s310, %s312
      %p319 = scmp.eq.s32.totalorder %s45, 1
      %p320 = por %p318, %p319
      %p321 = scmp.ne.s32.totalorder %s312, %s313
      %p322 = scmp.eq.s32.totalorder %s45, 0
      %p323 = por %p321, %p322
      %p324 = scmp.ne.s32.totalorder %s312, %s313
      %p325 = scmp.eq.s32.totalorder %s46, 1
      %p326 = por %p324, %p325
      %p328 = scmp.ne.s32.totalorder %s313, %s327
      %p329 = scmp.eq.s32.totalorder %s46, 0
      %p330 = por %p328, %p329
      %s332 = sadd.s32 %s331, 1
      %p335 = scmp.eq.s32.totalorder %s40, 1
      %p336 = scmp.ne.s32.totalorder %s331, %s333
      %p337 = scmp.eq.s32.totalorder %s40, 0
      %p338 = por %p336, %p337
      %p339 = scmp.ne.s32.totalorder %s331, %s333
      %p340 = scmp.eq.s32.totalorder %s45, 1
      %p341 = por %p339, %p340
      %p342 = scmp.ne.s32.totalorder %s333, %s334
      %p343 = scmp.eq.s32.totalorder %s45, 0
      %p344 = por %p342, %p343
      %p345 = scmp.ne.s32.totalorder %s333, %s334
      %p346 = scmp.eq.s32.totalorder %s46, 1
      %p347 = por %p345, %p346
      %p349 = scmp.ne.s32.totalorder %s334, %s348
      %p350 = scmp.eq.s32.totalorder %s46, 0
      %p351 = por %p349, %p350
      %s353 = sadd.s32 %s352, 1
      %p356 = scmp.eq.s32.totalorder %s40, 1
      %p357 = scmp.ne.s32.totalorder %s352, %s354
      %p358 = scmp.eq.s32.totalorder %s40, 0
      %p359 = por %p357, %p358
      %p360 = scmp.ne.s32.totalorder %s352, %s354
      %p361 = scmp.eq.s32.totalorder %s45, 1
      %p362 = por %p360, %p361
      %p363 = scmp.ne.s32.totalorder %s354, %s355
      %p364 = scmp.eq.s32.totalorder %s45, 0
      %p365 = por %p363, %p364
      %p366 = scmp.ne.s32.totalorder %s354, %s355
      %p367 = scmp.eq.s32.totalorder %s46, 1
      %p368 = por %p366, %p367
      %p370 = scmp.ne.s32.totalorder %s355, %s369
      %p371 = scmp.eq.s32.totalorder %s46, 0
      %p372 = por %p370, %p371
      %s374 = sadd.s32 %s373, 1
      %p377 = scmp.eq.s32.totalorder %s40, 1
      %p378 = scmp.ne.s32.totalorder %s373, %s375
      %p379 = scmp.eq.s32.totalorder %s40, 0
      %p380 = por %p378, %p379
      %p381 = scmp.ne.s32.totalorder %s373, %s375
      %p382 = scmp.eq.s32.totalorder %s45, 1
      %p383 = por %p381, %p382
      %p384 = scmp.ne.s32.totalorder %s375, %s376
      %p385 = scmp.eq.s32.totalorder %s45, 0
      %p386 = por %p384, %p385
      %p387 = scmp.ne.s32.totalorder %s375, %s376
      %p388 = scmp.eq.s32.totalorder %s46, 1
      %p389 = por %p387, %p388
      %p391 = scmp.ne.s32.totalorder %s376, %s390
      %p392 = scmp.eq.s32.totalorder %s46, 0
      %p393 = por %p391, %p392
      %s395 = sadd.s32 %s394, 1
      %p398 = scmp.eq.s32.totalorder %s40, 1
      %p399 = scmp.ne.s32.totalorder %s394, %s396
      %p400 = scmp.eq.s32.totalorder %s40, 0
      %p401 = por %p399, %p400
      %p402 = scmp.ne.s32.totalorder %s394, %s396
      %p403 = scmp.eq.s32.totalorder %s45, 1
      %p404 = por %p402, %p403
      %p405 = scmp.ne.s32.totalorder %s396, %s397
      %p406 = scmp.eq.s32.totalorder %s45, 0
      %p407 = por %p405, %p406
      %p408 = scmp.ne.s32.totalorder %s396, %s397
      %p409 = scmp.eq.s32.totalorder %s46, 1
      %p410 = por %p408, %p409
      %p412 = scmp.ne.s32.totalorder %s397, %s411
      %p413 = scmp.eq.s32.totalorder %s46, 0
      %p414 = por %p412, %p413
      %s416 = sadd.s32 %s415, 1
      %p419 = scmp.eq.s32.totalorder %s40, 1
      %p420 = scmp.ne.s32.totalorder %s415, %s417
      %p421 = scmp.eq.s32.totalorder %s40, 0
      %p422 = por %p420, %p421
      %p423 = scmp.ne.s32.totalorder %s415, %s417
      %p424 = scmp.eq.s32.totalorder %s45, 1
      %p425 = por %p423, %p424
      %p426 = scmp.ne.s32.totalorder %s417, %s418
      %p427 = scmp.eq.s32.totalorder %s45, 0
      %p428 = por %p426, %p427
      %p429 = scmp.ne.s32.totalorder %s417, %s418
      %p430 = scmp.eq.s32.totalorder %s46, 1
      %p431 = por %p429, %p430
      %p433 = scmp.ne.s32.totalorder %s418, %s432
      %p434 = scmp.eq.s32.totalorder %s46, 0
      %p435 = por %p433, %p434
      %s437 = sadd.s32 %s436, 1
      %p440 = scmp.eq.s32.totalorder %s40, 1
      %p441 = scmp.ne.s32.totalorder %s436, %s438
      %p442 = scmp.eq.s32.totalorder %s40, 0
      %p443 = por %p441, %p442
      %p444 = scmp.ne.s32.totalorder %s436, %s438
      %p445 = scmp.eq.s32.totalorder %s45, 1
      %p446 = por %p444, %p445
      %p447 = scmp.ne.s32.totalorder %s438, %s439
      %p448 = scmp.eq.s32.totalorder %s45, 0
      %p449 = por %p447, %p448
      %p450 = scmp.ne.s32.totalorder %s438, %s439
      %p451 = scmp.eq.s32.totalorder %s46, 1
      %p452 = por %p450, %p451
      %p454 = scmp.ne.s32.totalorder %s439, %s453
      %p455 = scmp.eq.s32.totalorder %s46, 0
      %p456 = por %p454, %p455
      %s458 = sadd.s32 %s457, 1
      %p461 = scmp.eq.s32.totalorder %s40, 1
      %p462 = scmp.ne.s32.totalorder %s457, %s459
      %p463 = scmp.eq.s32.totalorder %s40, 0
      %p464 = por %p462, %p463
      %p465 = scmp.ne.s32.totalorder %s457, %s459
      %p466 = scmp.eq.s32.totalorder %s45, 1
      %p467 = por %p465, %p466
      %p468 = scmp.ne.s32.totalorder %s459, %s460
      %p469 = scmp.eq.s32.totalorder %s45, 0
      %p470 = por %p468, %p469
      %p471 = scmp.ne.s32.totalorder %s459, %s460
      %p472 = scmp.eq.s32.totalorder %s46, 1
      %p473 = por %p471, %p472
      %p475 = scmp.ne.s32.totalorder %s460, %s474
      %p476 = scmp.eq.s32.totalorder %s46, 0
      %p477 = por %p475, %p476
      %s479 = sadd.s32 %s478, 1
      %p482 = scmp.eq.s32.totalorder %s40, 1
      %p483 = scmp.ne.s32.totalorder %s478, %s480
      %p484 = scmp.eq.s32.totalorder %s40, 0
      %p485 = por %p483, %p484
      %p486 = scmp.ne.s32.totalorder %s478, %s480
      %p487 = scmp.eq.s32.totalorder %s45, 1
      %p488 = por %p486, %p487
      %p489 = scmp.ne.s32.totalorder %s480, %s481
      %p490 = scmp.eq.s32.totalorder %s45, 0
      %p491 = por %p489, %p490
      %p492 = scmp.ne.s32.totalorder %s480, %s481
      %p493 = scmp.eq.s32.totalorder %s46, 1
      %p494 = por %p492, %p493
      %p496 = scmp.ne.s32.totalorder %s481, %s495
      %p497 = scmp.eq.s32.totalorder %s46, 0
      %p498 = por %p496, %p497
      %s500 = sadd.s32 %s499, 1
      %p503 = scmp.eq.s32.totalorder %s40, 1
      %p504 = scmp.ne.s32.totalorder %s499, %s501
      %p505 = scmp.eq.s32.totalorder %s40, 0
      %p506 = por %p504, %p505
      %p507 = scmp.ne.s32.totalorder %s499, %s501
      %p508 = scmp.eq.s32.totalorder %s45, 1
      %p509 = por %p507, %p508
      %p510 = scmp.ne.s32.totalorder %s501, %s502
      %p511 = scmp.eq.s32.totalorder %s45, 0
      %p512 = por %p510, %p511
      %p513 = scmp.ne.s32.totalorder %s501, %s502
      %p514 = scmp.eq.s32.totalorder %s46, 1
      %p515 = por %p513, %p514
      %p517 = scmp.ne.s32.totalorder %s502, %s516
      %p518 = scmp.eq.s32.totalorder %s46, 0
      %p519 = por %p517, %p518
      %s521 = sadd.s32 %s520, 1
      %p524 = scmp.eq.s32.totalorder %s40, 1
      %p525 = scmp.ne.s32.totalorder %s520, %s522
      %p526 = scmp.eq.s32.totalorder %s40, 0
      %p527 = por %p525, %p526
      %p528 = scmp.ne.s32.totalorder %s520, %s522
      %p529 = scmp.eq.s32.totalorder %s45, 1
      %p530 = por %p528, %p529
      %p531 = scmp.ne.s32.totalorder %s522, %s523
      %p532 = scmp.eq.s32.totalorder %s45, 0
      %p533 = por %p531, %p532
      %p534 = scmp.ne.s32.totalorder %s522, %s523
      %p535 = scmp.eq.s32.totalorder %s46, 1
      %p536 = por %p534, %p535
      %p538 = scmp.ne.s32.totalorder %s523, %s537
      %p539 = scmp.eq.s32.totalorder %s46, 0
      %p540 = por %p538, %p539
      %s542 = sadd.s32 %s541, 1
      %p545 = scmp.eq.s32.totalorder %s40, 1
      %p546 = scmp.ne.s32.totalorder %s541, %s543
      %p547 = scmp.eq.s32.totalorder %s40, 0
      %p548 = por %p546, %p547
      %p549 = scmp.ne.s32.totalorder %s541, %s543
      %p550 = scmp.eq.s32.totalorder %s45, 1
      %p551 = por %p549, %p550
      %p552 = scmp.ne.s32.totalorder %s543, %s544
      %p553 = scmp.eq.s32.totalorder %s45, 0
      %p554 = por %p552, %p553
      %p555 = scmp.ne.s32.totalorder %s543, %s544
      %p556 = scmp.eq.s32.totalorder %s46, 1
      %p557 = por %p555, %p556
      %p559 = scmp.ne.s32.totalorder %s544, %s558
      %p560 = scmp.eq.s32.totalorder %s46, 0
      %p561 = por %p559, %p560
      %s563 = sadd.s32 %s562, 1
      %p566 = scmp.eq.s32.totalorder %s40, 1
      %p567 = scmp.ne.s32.totalorder %s562, %s564
      %p568 = scmp.eq.s32.totalorder %s40, 0
      %p569 = por %p567, %p568
      %p570 = scmp.ne.s32.totalorder %s562, %s564
      %p571 = scmp.eq.s32.totalorder %s45, 1
      %p572 = por %p570, %p571
      %p573 = scmp.ne.s32.totalorder %s564, %s565
      %p574 = scmp.eq.s32.totalorder %s45, 0
      %p575 = por %p573, %p574
      %p576 = scmp.ne.s32.totalorder %s564, %s565
      %p577 = scmp.eq.s32.totalorder %s46, 1
      %p578 = por %p576, %p577
      %p580 = scmp.ne.s32.totalorder %s565, %s579
      %p581 = scmp.eq.s32.totalorder %s46, 0
      %p582 = por %p580, %p581
      %s584 = sadd.s32 %s583, 1
      %p587 = scmp.eq.s32.totalorder %s40, 1
      %p588 = scmp.ne.s32.totalorder %s583, %s585
      %p589 = scmp.eq.s32.totalorder %s40, 0
      %p590 = por %p588, %p589
      %p591 = scmp.ne.s32.totalorder %s583, %s585
      %p592 = scmp.eq.s32.totalorder %s45, 1
      %p593 = por %p591, %p592
      %p594 = scmp.ne.s32.totalorder %s585, %s586
      %p595 = scmp.eq.s32.totalorder %s45, 0
      %p596 = por %p594, %p595
      %p597 = scmp.ne.s32.totalorder %s585, %s586
      %p598 = scmp.eq.s32.totalorder %s46, 1
      %p599 = por %p597, %p598
      %p601 = scmp.ne.s32.totalorder %s586, %s600
      %p602 = scmp.eq.s32.totalorder %s46, 0
      %p603 = por %p601, %p602
      %s604 = ssub.s32 %s40, %s47
      %p605 = scmp.eq.s32.totalorder %s604, 0
      %s607 = sadd.s32 %s606, 1
      %s608 = scalar_select %p605, %s606, %s607
      %p611 = pneg %p605
      %p612 = scmp.eq.s32.totalorder %s40, 1
      %p613 = por %p611, %p612
      %p614 = scmp.ne.s32.totalorder %s606, %s609
      %p615 = scmp.eq.s32.totalorder %s40, 0
      %p616 = por %p614, %p615
      %p617 = scmp.ne.s32.totalorder %s606, %s609
      %p618 = scmp.eq.s32.totalorder %s45, 1
      %p619 = por %p617, %p618
      %p620 = scmp.ne.s32.totalorder %s609, %s610
      %p621 = scmp.eq.s32.totalorder %s45, 0
      %p622 = por %p620, %p621
      %p623 = scmp.ne.s32.totalorder %s609, %s610
      %p624 = scmp.eq.s32.totalorder %s46, 1
      %p625 = por %p623, %p624
      %p627 = scmp.ne.s32.totalorder %s610, %s626
      %p628 = scmp.eq.s32.totalorder %s46, 0
      %p629 = por %p627, %p628
      %p630 = scmp.le.s32.totalorder 1, %s40
      %p631 = scmp.lt.s32.totalorder %s40, 3
      %p632 = pnand %p630, %p631
      %p633 = pneg %p632
      // Predicated region
      $region9: #{tpu_custom_call.1} parent=5 // pred_check
        _
      $region10: #{tpu_custom_call.1} parent=5 // pred_check_branch
        %635 = sbr.rel (%p632) target = $region12
      $region11: #{tpu_custom_call.1} parent=5 // pred_region
        %s636 = ssub.s32 %s40, 1
        // Predicated region
        $region13: #{tpu_custom_call.1} parent=11 // pred_check
          %p637 = pneg %p113
        $region14: #{tpu_custom_call.1} parent=11 // pred_check_branch
          %639 = sbr.rel (%p637) target = $region16
        $region15: #{tpu_custom_call.1} parent=11 // pred_region
          _
        $region16: #{tpu_custom_call.1} parent=11 // pred_fallthru
          _
        // Predicated region
        $region17: #{tpu_custom_call.1} parent=11 // pred_check
          %p640 = pneg %p134
        $region18: #{tpu_custom_call.1} parent=11 // pred_check_branch
          %642 = sbr.rel (%p640) target = $region20
        $region19: #{tpu_custom_call.1} parent=11 // pred_region
          _
        $region20: #{tpu_custom_call.1} parent=11 // pred_fallthru
          _
        // Predicated region
        $region21: #{tpu_custom_call.1} parent=11 // pred_check
          %p643 = pneg %p155
        $region22: #{tpu_custom_call.1} parent=11 // pred_check_branch
          %645 = sbr.rel (%p643) target = $region24
        $region23: #{tpu_custom_call.1} parent=11 // pred_region
          %s647 = ssub.s32 32, 32
          %648 = vsyncadd [#allocation6], %s647
          %s650 = sshll.u32 [#allocation5], 4
          %s651 = int_to_ptr.vmem [resolvable:$true] %s650
          %653 = dma.hbm_to_vmem [thread:$0]  %s4, 32, %s651, [#allocation6]
        $region24: #{tpu_custom_call.1} parent=11 // pred_fallthru
          _
        // Predicated region
        $region25: #{tpu_custom_call.1} parent=11 // pred_check
          %p654 = pneg %p176
        $region26: #{tpu_custom_call.1} parent=11 // pred_check_branch
          %656 = sbr.rel (%p654) target = $region28
        $region27: #{tpu_custom_call.1} parent=11 // pred_region
          _
        $region28: #{tpu_custom_call.1} parent=11 // pred_fallthru
          _
        // Predicated region
        $region29: #{tpu_custom_call.1} parent=11 // pred_check
          %p657 = pneg %p197
        $region30: #{tpu_custom_call.1} parent=11 // pred_check_branch
          %659 = sbr.rel (%p657) target = $region32
        $region31: #{tpu_custom_call.1} parent=11 // pred_region
          %s661 = ssub.s32 16, 16
          %662 = vsyncadd [#allocation6], %s661
          %s664 = sshll.u32 [#allocation7], 4
          %s665 = int_to_ptr.vmem [resolvable:$true] %s664
          %667 = dma.hbm_to_vmem [thread:$0]  %s6, 16, %s665, [#allocation6]
        $region32: #{tpu_custom_call.1} parent=11 // pred_fallthru
          _
        // Predicated region
        $region33: #{tpu_custom_call.1} parent=11 // pred_check
          %p668 = pneg %p218
        $region34: #{tpu_custom_call.1} parent=11 // pred_check_branch
          %670 = sbr.rel (%p668) target = $region36
        $region35: #{tpu_custom_call.1} parent=11 // pred_region
          _
        $region36: #{tpu_custom_call.1} parent=11 // pred_fallthru
          _
        // Predicated region
        $region37: #{tpu_custom_call.1} parent=11 // pred_check
          %p671 = pneg %p239
        $region38: #{tpu_custom_call.1} parent=11 // pred_check_branch
          %673 = sbr.rel (%p671) target = $region40
        $region39: #{tpu_custom_call.1} parent=11 // pred_region
          %s675 = ssub.s32 16, 16
          %676 = vsyncadd [#allocation9], %s675
          %s678 = sshll.u32 [#allocation8], 4
          %s679 = int_to_ptr.vmem [resolvable:$true] %s678
          %681 = dma.hbm_to_vmem [thread:$0]  %s8, 16, %s679, [#allocation9]
        $region40: #{tpu_custom_call.1} parent=11 // pred_fallthru
          _
        // Predicated region
        $region41: #{tpu_custom_call.1} parent=11 // pred_check
          %p682 = pneg %p260
        $region42: #{tpu_custom_call.1} parent=11 // pred_check_branch
          %684 = sbr.rel (%p682) target = $region44
        $region43: #{tpu_custom_call.1} parent=11 // pred_region
          _
        $region44: #{tpu_custom_call.1} parent=11 // pred_fallthru
          _
        // Predicated region
        $region45: #{tpu_custom_call.1} parent=11 // pred_check
          %p685 = pneg %p281
        $region46: #{tpu_custom_call.1} parent=11 // pred_check_branch
          %687 = sbr.rel (%p685) target = $region48
        $region47: #{tpu_custom_call.1} parent=11 // pred_region
          _
        $region48: #{tpu_custom_call.1} parent=11 // pred_fallthru
          _
        // Predicated region
        $region49: #{tpu_custom_call.1} parent=11 // pred_check
          %p688 = pneg %p302
        $region50: #{tpu_custom_call.1} parent=11 // pred_check_branch
          %690 = sbr.rel (%p688) target = $region52
        $region51: #{tpu_custom_call.1} parent=11 // pred_region
          %s692 = ssub.s32 16, 16
          %693 = vsyncadd [#allocation9], %s692
          %s695 = sshll.u32 [#allocation10], 4
          %s696 = int_to_ptr.vmem [resolvable:$true] %s695
          %698 = dma.hbm_to_vmem [thread:$0]  %s11, 16, %s696, [#allocation9]
        $region52: #{tpu_custom_call.1} parent=11 // pred_fallthru
          _
        // Predicated region
        $region53: #{tpu_custom_call.1} parent=11 // pred_check
          %p699 = pneg %p323
        $region54: #{tpu_custom_call.1} parent=11 // pred_check_branch
          %701 = sbr.rel (%p699) target = $region56
        $region55: #{tpu_custom_call.1} parent=11 // pred_region
          _
        $region56: #{tpu_custom_call.1} parent=11 // pred_fallthru
          _
        // Predicated region
        $region57: #{tpu_custom_call.1} parent=11 // pred_check
          %p702 = pneg %p344
        $region58: #{tpu_custom_call.1} parent=11 // pred_check_branch
          %704 = sbr.rel (%p702) target = $region60
        $region59: #{tpu_custom_call.1} parent=11 // pred_region
          _
        $region60: #{tpu_custom_call.1} parent=11 // pred_fallthru
          _
        // Predicated region
        $region61: #{tpu_custom_call.1} parent=11 // pred_check
          %p705 = pneg %p365
        $region62: #{tpu_custom_call.1} parent=11 // pred_check_branch
          %707 = sbr.rel (%p705) target = $region64
        $region63: #{tpu_custom_call.1} parent=11 // pred_region
          _
        $region64: #{tpu_custom_call.1} parent=11 // pred_fallthru
          _
        // Predicated region
        $region65: #{tpu_custom_call.1} parent=11 // pred_check
          %p708 = pneg %p386
        $region66: #{tpu_custom_call.1} parent=11 // pred_check_branch
          %710 = sbr.rel (%p708) target = $region68
        $region67: #{tpu_custom_call.1} parent=11 // pred_region
          _
        $region68: #{tpu_custom_call.1} parent=11 // pred_fallthru
          _
        // Predicated region
        $region69: #{tpu_custom_call.1} parent=11 // pred_check
          %p711 = pneg %p407
        $region70: #{tpu_custom_call.1} parent=11 // pred_check_branch
          %713 = sbr.rel (%p711) target = $region72
        $region71: #{tpu_custom_call.1} parent=11 // pred_region
          _
        $region72: #{tpu_custom_call.1} parent=11 // pred_fallthru
          _
        // Predicated region
        $region73: #{tpu_custom_call.1} parent=11 // pred_check
          %p714 = pneg %p428
        $region74: #{tpu_custom_call.1} parent=11 // pred_check_branch
          %716 = sbr.rel (%p714) target = $region76
        $region75: #{tpu_custom_call.1} parent=11 // pred_region
          _
        $region76: #{tpu_custom_call.1} parent=11 // pred_fallthru
          _
        // Predicated region
        $region77: #{tpu_custom_call.1} parent=11 // pred_check
          %p717 = pneg %p449
        $region78: #{tpu_custom_call.1} parent=11 // pred_check_branch
          %719 = sbr.rel (%p717) target = $region80
        $region79: #{tpu_custom_call.1} parent=11 // pred_region
          _
        $region80: #{tpu_custom_call.1} parent=11 // pred_fallthru
          _
        // Predicated region
        $region81: #{tpu_custom_call.1} parent=11 // pred_check
          %p720 = pneg %p470
        $region82: #{tpu_custom_call.1} parent=11 // pred_check_branch
          %722 = sbr.rel (%p720) target = $region84
        $region83: #{tpu_custom_call.1} parent=11 // pred_region
          _
        $region84: #{tpu_custom_call.1} parent=11 // pred_fallthru
          _
        // Predicated region
        $region85: #{tpu_custom_call.1} parent=11 // pred_check
          %p723 = pneg %p491
        $region86: #{tpu_custom_call.1} parent=11 // pred_check_branch
          %725 = sbr.rel (%p723) target = $region88
        $region87: #{tpu_custom_call.1} parent=11 // pred_region
          _
        $region88: #{tpu_custom_call.1} parent=11 // pred_fallthru
          _
        // Predicated region
        $region89: #{tpu_custom_call.1} parent=11 // pred_check
          %p726 = pneg %p512
        $region90: #{tpu_custom_call.1} parent=11 // pred_check_branch
          %728 = sbr.rel (%p726) target = $region92
        $region91: #{tpu_custom_call.1} parent=11 // pred_region
          _
        $region92: #{tpu_custom_call.1} parent=11 // pred_fallthru
          _
        // Predicated region
        $region93: #{tpu_custom_call.1} parent=11 // pred_check
          %p729 = pneg %p533
        $region94: #{tpu_custom_call.1} parent=11 // pred_check_branch
          %731 = sbr.rel (%p729) target = $region96
        $region95: #{tpu_custom_call.1} parent=11 // pred_region
          _
        $region96: #{tpu_custom_call.1} parent=11 // pred_fallthru
          _
        // Predicated region
        $region97: #{tpu_custom_call.1} parent=11 // pred_check
          %p732 = pneg %p554
        $region98: #{tpu_custom_call.1} parent=11 // pred_check_branch
          %734 = sbr.rel (%p732) target = $region100
        $region99: #{tpu_custom_call.1} parent=11 // pred_region
          _
        $region100: #{tpu_custom_call.1} parent=11 // pred_fallthru
          _
        // Predicated region
        $region101: #{tpu_custom_call.1} parent=11 // pred_check
          %p735 = pneg %p575
        $region102: #{tpu_custom_call.1} parent=11 // pred_check_branch
          %737 = sbr.rel (%p735) target = $region104
        $region103: #{tpu_custom_call.1} parent=11 // pred_region
          _
        $region104: #{tpu_custom_call.1} parent=11 // pred_fallthru
          _
        // Predicated region
        $region105: #{tpu_custom_call.1} parent=11 // pred_check
          %p738 = pneg %p596
        $region106: #{tpu_custom_call.1} parent=11 // pred_check_branch
          %740 = sbr.rel (%p738) target = $region108
        $region107: #{tpu_custom_call.1} parent=11 // pred_region
          _
        $region108: #{tpu_custom_call.1} parent=11 // pred_fallthru
          _
      $region12: #{tpu_custom_call.1} parent=5 // pred_fallthru
        _
      %p741 = scmp.lt.s32.totalorder %s40, 2
      // Predicated region
      $region109: #{tpu_custom_call.1} parent=5 // pred_check
        %p742 = pneg %p741
      $region110: #{tpu_custom_call.1} parent=5 // pred_check_branch
        %744 = sbr.rel (%p742) target = $region112
      $region111: #{tpu_custom_call.1} parent=5 // pred_region
        // Predicated region
        $region113: #{tpu_custom_call.1} parent=111 // pred_check
          %p745 = pneg %p60
        $region114: #{tpu_custom_call.1} parent=111 // pred_check_branch
          %747 = sbr.rel (%p745) target = $region116
        $region115: #{tpu_custom_call.1} parent=111 // pred_region
          %s748 = smul.u32 16, %s40
          %p749 = scmp.lt.s32.totalorder %s748, 31
          %s750 = scalar_select %p749, %s748, 31
          %s751 = smul.addr %s750, 2
          %s752 = smul.addr %s751, 4
          %s753 = scalar_lea.vmem %s0, %s752
          %s754 = smul.u32 16, %s40
        $region116: #{tpu_custom_call.1} parent=111 // pred_fallthru
          _
        // Predicated region
        $region117: #{tpu_custom_call.1} parent=111 // pred_check
          %p755 = pneg %p86
        $region118: #{tpu_custom_call.1} parent=111 // pred_check_branch
          %757 = sbr.rel (%p755) target = $region120
        $region119: #{tpu_custom_call.1} parent=111 // pred_region
          %s758 = sand.u32 %s76, 1
          %s759 = scalar_lea.sflag [#allocation3], %s758
          %s760 = sand.u32 %s76, 1
          %s761 = smul.addr %s760, 128
          %s762 = scalar_lea.vmem [#allocation2], %s761
          %s763 = smul.u32 16, %s40
          %s765 = ssub.s32 2048, 2048
          %766 = vsyncadd %s759, %s765
          %s767 = smul.addr %s763, 2
          %s768 = smul.addr %s767, 64
          %s769 = scalar_lea.hbm %s1, %s768
          %s770 = sshll.u32 %s762, 4
          %s771 = int_to_ptr.vmem [resolvable:$true] %s770
          %776 = dma.hbm_to_vmem [thread:$0]  %s769, 2048, %s771, %s759, 128, 128, 8
        $region120: #{tpu_custom_call.1} parent=111 // pred_fallthru
          _
      $region112: #{tpu_custom_call.1} parent=5 // pred_fallthru
        _
      %p777 = scmp.le.s32.totalorder 1, %s40
      %p778 = scmp.lt.s32.totalorder %s40, 3
      %p779 = pnand %p777, %p778
      %p780 = pneg %p779
      // Predicated region
      $region121: #{tpu_custom_call.1} parent=5 // pred_check
        _
      $region122: #{tpu_custom_call.1} parent=5 // pred_check_branch
        %782 = sbr.rel (%p779) target = $region124
      $region123: #{tpu_custom_call.1} parent=5 // pred_region
        %s783 = ssub.s32 %s40, 1
        %s784 = sand.u32 %s79, 1
        %s785 = scalar_lea.sflag [#allocation3], %s784
        %s786 = sand.u32 %s79, 1
        %s787 = smul.addr %s786, 128
        %s788 = scalar_lea.vmem [#allocation2], %s787
        // Predicated region
        $region125: #{tpu_custom_call.1} parent=123 // pred_check
          %p789 = pneg %p92
        $region126: #{tpu_custom_call.1} parent=123 // pred_check_branch
          %791 = sbr.rel (%p789) target = $region128
        $region127: #{tpu_custom_call.1} parent=123 // pred_region
          %792 = dma.done %s785, 2048
        $region128: #{tpu_custom_call.1} parent=123 // pred_fallthru
          _
        // Predicated region
        $region129: #{tpu_custom_call.1} parent=123 // pred_check
          %p793 = pneg %p155
        $region130: #{tpu_custom_call.1} parent=123 // pred_check_branch
          %795 = sbr.rel (%p793) target = $region132
        $region131: #{tpu_custom_call.1} parent=123 // pred_region
          %796 = dma.done [#allocation6], 32
        $region132: #{tpu_custom_call.1} parent=123 // pred_fallthru
          _
        // Predicated region
        $region133: #{tpu_custom_call.1} parent=123 // pred_check
          %p797 = pneg %p197
        $region134: #{tpu_custom_call.1} parent=123 // pred_check_branch
          %799 = sbr.rel (%p797) target = $region136
        $region135: #{tpu_custom_call.1} parent=123 // pred_region
          %800 = dma.done [#allocation6], 16
        $region136: #{tpu_custom_call.1} parent=123 // pred_fallthru
          _
        // Predicated region
        $region137: #{tpu_custom_call.1} parent=123 // pred_check
          %p801 = pneg %p239
        $region138: #{tpu_custom_call.1} parent=123 // pred_check_branch
          %803 = sbr.rel (%p801) target = $region140
        $region139: #{tpu_custom_call.1} parent=123 // pred_region
          %804 = dma.done [#allocation9], 16
        $region140: #{tpu_custom_call.1} parent=123 // pred_fallthru
          _
        // Predicated region
        $region141: #{tpu_custom_call.1} parent=123 // pred_check
          %p805 = pneg %p302
        $region142: #{tpu_custom_call.1} parent=123 // pred_check_branch
          %807 = sbr.rel (%p805) target = $region144
        $region143: #{tpu_custom_call.1} parent=123 // pred_region
          %808 = dma.done [#allocation9], 16
        $region144: #{tpu_custom_call.1} parent=123 // pred_fallthru
          _
        %s809 = smul.u32 16, %s45
        %p810 = scmp.lt.s32.totalorder %s809, 31
        %s811 = scalar_select %p810, %s809, 31
        %s812 = smul.addr %s811, 2
        %s813 = smul.addr %s812, 4
        %s814 = scalar_lea.vmem %s0, %s813
        %p815 = pneg %p66
        %p816 = pneg %p63
        %s817 = sand.u32 %s79, 1
        %s818 = scalar_lea.sflag [#allocation3], %s817
        %s819 = sand.u32 %s79, 1
        %s820 = smul.addr %s819, 128
        %s821 = scalar_lea.vmem [#allocation2], %s820
        %p822 = pneg %p92
        %p823 = pneg %p89
        %p824 = pneg %p113
        %p825 = pneg %p110
        %p826 = pneg %p134
        %p827 = pneg %p131
        %p828 = pneg %p155
        %p829 = pneg %p152
        %p830 = pneg %p176
        %p831 = pneg %p173
        %p832 = pneg %p197
        %p833 = pneg %p194
        %p834 = pneg %p218
        %p835 = pneg %p215
        %p836 = pneg %p239
        %p837 = pneg %p236
        %p838 = pneg %p260
        %p839 = pneg %p257
        %p840 = pneg %p281
        %p841 = pneg %p278
        %p842 = pneg %p302
        %p843 = pneg %p299
        %p844 = pneg %p323
        %p845 = pneg %p320
        %p846 = pneg %p344
        %p847 = pneg %p341
        %p848 = pneg %p365
        %p849 = pneg %p362
        %p850 = pneg %p386
        %p851 = pneg %p383
        %p852 = pneg %p407
        %p853 = pneg %p404
        %p854 = pneg %p428
        %p855 = pneg %p425
        %p856 = pneg %p449
        %p857 = pneg %p446
        %p858 = pneg %p470
        %p859 = pneg %p467
        %p860 = pneg %p491
        %p861 = pneg %p488
        %p862 = pneg %p512
        %p863 = pneg %p509
        %p864 = pneg %p533
        %p865 = pneg %p530
        %p866 = pneg %p554
        %p867 = pneg %p551
        %p868 = pneg %p575
        %p869 = pneg %p572
        %p870 = pneg %p596
        %p871 = pneg %p593
        %p872 = pneg %p622
        %p873 = pneg %p619
        %s874 = sand.u32 %s609, 1
        %s875 = scalar_lea.sflag [#allocation4], %s874
        %s876 = sand.u32 %s609, 1
        %s877 = smul.addr %s876, 128
        %s878 = scalar_lea.vmem [#allocation11], %s877
        %s879 = smul.u32 16, %s45
        %p880 = scmp.lt.s32.totalorder %s879, 31
        %s881 = scalar_select %p880, %s879, 31
        %s882 = smul.addr %s881, 2
        %s883 = smul.addr %s882, 4
        %s884 = scalar_lea.vmem %s0, %s883
        %s885 = smul.u32 16, %s45
        %s886 = smul.u32 16, %s45
        %s887 = smul.u32 16, %s45
        %v891 = vld [vmem:[%s884] sm:$0xff]
        %v892 = vld [vmem:[%s884 + $0x8] sm:$0xff]
        %v893 = vld [vmem:[%s884 + $0x10] sm:$0xff]
        %v894 = vld [vmem:[%s884 + $0x18] sm:$0xff]
        %v895 = vld [vmem:[%s884 + $0x20] sm:$0xff]
        %v896 = vld [vmem:[%s884 + $0x28] sm:$0xff]
        %v897 = vld [vmem:[%s884 + $0x30] sm:$0xff]
        %v898 = vld [vmem:[%s884 + $0x38] sm:$0xff]
        %v899 = vld [vmem:[%s884 + $0x40] sm:$0xff]
        %v900 = vld [vmem:[%s884 + $0x48] sm:$0xff]
        %v901 = vld [vmem:[%s884 + $0x50] sm:$0xff]
        %v902 = vld [vmem:[%s884 + $0x58] sm:$0xff]
        %v903 = vld [vmem:[%s884 + $0x60] sm:$0xff]
        %v904 = vld [vmem:[%s884 + $0x68] sm:$0xff]
        %v905 = vld [vmem:[%s884 + $0x70] sm:$0xff]
        %v906 = vld [vmem:[%s884 + $0x78] sm:$0xff]
        %v907 = vld [vmem:[%s788] sm:$0xff]
        %v908 = vld [vmem:[%s788 + $0x8] sm:$0xff]
        %v909 = vld [vmem:[%s788 + $0x10] sm:$0xff]
        %v910 = vld [vmem:[%s788 + $0x18] sm:$0xff]
        %v911 = vld [vmem:[%s788 + $0x20] sm:$0xff]
        %v912 = vld [vmem:[%s788 + $0x28] sm:$0xff]
        %v913 = vld [vmem:[%s788 + $0x30] sm:$0xff]
        %v914 = vld [vmem:[%s788 + $0x38] sm:$0xff]
        %v915 = vld [vmem:[%s788 + $0x40] sm:$0xff]
        %v916 = vld [vmem:[%s788 + $0x48] sm:$0xff]
        %v917 = vld [vmem:[%s788 + $0x50] sm:$0xff]
        %v918 = vld [vmem:[%s788 + $0x58] sm:$0xff]
        %v919 = vld [vmem:[%s788 + $0x60] sm:$0xff]
        %v920 = vld [vmem:[%s788 + $0x68] sm:$0xff]
        %v921 = vld [vmem:[%s788 + $0x70] sm:$0xff]
        %v922 = vld [vmem:[%s788 + $0x78] sm:$0xff]
        %v923 = vld [vmem:[%s2] sm:$0xf]
        %v924 = vld [vmem:[%s2 + $0x4] sm:$0xf]
        %v925 = vld [vmem:[%s2 + $0x8] sm:$0xf]
        %v926 = vld [vmem:[%s2 + $0xc] sm:$0xf]
        %v927 = vld [vmem:[%s2 + $0x10] sm:$0xf]
        %v928 = vld [vmem:[%s2 + $0x14] sm:$0xf]
        %v929 = vld [vmem:[%s2 + $0x18] sm:$0xf]
        %v930 = vld [vmem:[%s2 + $0x1c] sm:$0xf]
        %v931 = vld [vmem:[%s2 + $0x20] sm:$0xf]
        %v932 = vld [vmem:[%s2 + $0x24] sm:$0xf]
        %v933 = vld [vmem:[%s2 + $0x28] sm:$0xf]
        %v934 = vld [vmem:[%s2 + $0x2c] sm:$0xf]
        %v935 = vld [vmem:[%s2 + $0x30] sm:$0xf]
        %v936 = vld [vmem:[%s2 + $0x34] sm:$0xf]
        %v937 = vld [vmem:[%s2 + $0x38] sm:$0xf]
        %v938 = vld [vmem:[%s2 + $0x3c] sm:$0xf]
        %v939 = vld [vmem:[%s2 + $0x40] sm:$0xf]
        %v940 = vld [vmem:[%s2 + $0x44] sm:$0xf]
        %v941 = vld [vmem:[%s2 + $0x48] sm:$0xf]
        %v942 = vld [vmem:[%s2 + $0x4c] sm:$0xf]
        %v943 = vld [vmem:[%s2 + $0x50] sm:$0xf]
        %v944 = vld [vmem:[%s2 + $0x54] sm:$0xf]
        %v945 = vld [vmem:[%s2 + $0x58] sm:$0xf]
        %v946 = vld [vmem:[%s2 + $0x5c] sm:$0xf]
        %v947 = vld [vmem:[%s2 + $0x60] sm:$0xf]
        %v948 = vld [vmem:[%s2 + $0x64] sm:$0xf]
        %v949 = vld [vmem:[%s2 + $0x68] sm:$0xf]
        %v950 = vld [vmem:[%s2 + $0x6c] sm:$0xf]
        %v951 = vld [vmem:[%s2 + $0x70] sm:$0xf]
        %v952 = vld [vmem:[%s2 + $0x74] sm:$0xf]
        %v953 = vld [vmem:[%s2 + $0x78] sm:$0xf]
        %v954 = vld [vmem:[%s2 + $0x7c] sm:$0xf]
        %v955 = vld [vmem:[%s3] sm:$0xf]
        %v956 = vld [vmem:[%s3 + $0x4] sm:$0xf]
        %v957 = vld [vmem:[%s3 + $0x8] sm:$0xf]
        %v958 = vld [vmem:[%s3 + $0xc] sm:$0xf]
        %v959 = vld [vmem:[%s3 + $0x10] sm:$0xf]
        %v960 = vld [vmem:[%s3 + $0x14] sm:$0xf]
        %v961 = vld [vmem:[%s3 + $0x18] sm:$0xf]
        %v962 = vld [vmem:[%s3 + $0x1c] sm:$0xf]
        %v963 = vld [vmem:[%s3 + $0x20] sm:$0xf]
        %v964 = vld [vmem:[%s3 + $0x24] sm:$0xf]
        %v965 = vld [vmem:[%s3 + $0x28] sm:$0xf]
        %v966 = vld [vmem:[%s3 + $0x2c] sm:$0xf]
        %v967 = vld [vmem:[%s3 + $0x30] sm:$0xf]
        %v968 = vld [vmem:[%s3 + $0x34] sm:$0xf]
        %v969 = vld [vmem:[%s3 + $0x38] sm:$0xf]
        %v970 = vld [vmem:[%s3 + $0x3c] sm:$0xf]
        %v971 = vld [vmem:[%s3 + $0x40] sm:$0xf]
        %v972 = vld [vmem:[%s3 + $0x44] sm:$0xf]
        %v973 = vld [vmem:[%s3 + $0x48] sm:$0xf]
        %v974 = vld [vmem:[%s3 + $0x4c] sm:$0xf]
        %v975 = vld [vmem:[%s3 + $0x50] sm:$0xf]
        %v976 = vld [vmem:[%s3 + $0x54] sm:$0xf]
        %v977 = vld [vmem:[%s3 + $0x58] sm:$0xf]
        %v978 = vld [vmem:[%s3 + $0x5c] sm:$0xf]
        %v979 = vld [vmem:[%s3 + $0x60] sm:$0xf]
        %v980 = vld [vmem:[%s3 + $0x64] sm:$0xf]
        %v981 = vld [vmem:[%s3 + $0x68] sm:$0xf]
        %v982 = vld [vmem:[%s3 + $0x6c] sm:$0xf]
        %v983 = vld [vmem:[%s3 + $0x70] sm:$0xf]
        %v984 = vld [vmem:[%s3 + $0x74] sm:$0xf]
        %v985 = vld [vmem:[%s3 + $0x78] sm:$0xf]
        %v986 = vld [vmem:[%s3 + $0x7c] sm:$0xf]
        %s987 = smul.u32 %s45, 128
        %s988 = sshra.s32 %s987, 3
        %s989 = sand.u32 %s987, 7
        %s990 = smul.addr %s988, 4
        %s991 = scalar_lea.vmem %s2, %s990
        %v992 = vld [vmem:[%s991] sm:$0xf]
        %v993 = vld [vmem:[%s991 + $0x4] sm:$0xf]
        %v994 = vld [vmem:[%s991 + $0x8] sm:$0xf]
        %v995 = vld [vmem:[%s991 + $0xc] sm:$0xf]
        %v996 = vld [vmem:[%s991 + $0x10] sm:$0xf]
        %v997 = vld [vmem:[%s991 + $0x14] sm:$0xf]
        %v998 = vld [vmem:[%s991 + $0x18] sm:$0xf]
        %v999 = vld [vmem:[%s991 + $0x1c] sm:$0xf]
        %v1000 = vld [vmem:[%s991 + $0x20] sm:$0xf]
        %v1001 = vld [vmem:[%s991 + $0x24] sm:$0xf]
        %v1002 = vld [vmem:[%s991 + $0x28] sm:$0xf]
        %v1003 = vld [vmem:[%s991 + $0x2c] sm:$0xf]
        %v1004 = vld [vmem:[%s991 + $0x30] sm:$0xf]
        %v1005 = vld [vmem:[%s991 + $0x34] sm:$0xf]
        %v1006 = vld [vmem:[%s991 + $0x38] sm:$0xf]
        %v1007 = vld [vmem:[%s991 + $0x3c] sm:$0xf]
        %s1008 = smul.addr %s988, 4
        %s1009 = scalar_lea.vmem %s3, %s1008
        %v1010 = vld [vmem:[%s1009] sm:$0xf]
        %v1011 = vld [vmem:[%s1009 + $0x4] sm:$0xf]
        %v1012 = vld [vmem:[%s1009 + $0x8] sm:$0xf]
        %v1013 = vld [vmem:[%s1009 + $0xc] sm:$0xf]
        %v1014 = vld [vmem:[%s1009 + $0x10] sm:$0xf]
        %v1015 = vld [vmem:[%s1009 + $0x14] sm:$0xf]
        %v1016 = vld [vmem:[%s1009 + $0x18] sm:$0xf]
        %v1017 = vld [vmem:[%s1009 + $0x1c] sm:$0xf]
        %v1018 = vld [vmem:[%s1009 + $0x20] sm:$0xf]
        %v1019 = vld [vmem:[%s1009 + $0x24] sm:$0xf]
        %v1020 = vld [vmem:[%s1009 + $0x28] sm:$0xf]
        %v1021 = vld [vmem:[%s1009 + $0x2c] sm:$0xf]
        %v1022 = vld [vmem:[%s1009 + $0x30] sm:$0xf]
        %v1023 = vld [vmem:[%s1009 + $0x34] sm:$0xf]
        %v1024 = vld [vmem:[%s1009 + $0x38] sm:$0xf]
        %v1025 = vld [vmem:[%s1009 + $0x3c] sm:$0xf]
        %v1042 = vunpack.c.l.b16 %v891
        %v1043 = vunpack.c.h.b16 %v891
        %v1044 = vunpack.c.l.b16 %v892
        %v1045 = vunpack.c.h.b16 %v892
        %v1046 = vunpack.c.l.b16 %v893
        %v1047 = vunpack.c.h.b16 %v893
        %v1048 = vunpack.c.l.b16 %v894
        %v1049 = vunpack.c.h.b16 %v894
        %v1050 = vunpack.c.l.b16 %v895
        %v1051 = vunpack.c.h.b16 %v895
        %v1052 = vunpack.c.l.b16 %v896
        %v1053 = vunpack.c.h.b16 %v896
        %v1054 = vunpack.c.l.b16 %v897
        %v1055 = vunpack.c.h.b16 %v897
        %v1056 = vunpack.c.l.b16 %v898
        %v1057 = vunpack.c.h.b16 %v898
        %v1058 = vunpack.c.l.b16 %v899
        %v1059 = vunpack.c.h.b16 %v899
        %v1060 = vunpack.c.l.b16 %v900
        %v1061 = vunpack.c.h.b16 %v900
        %v1062 = vunpack.c.l.b16 %v901
        %v1063 = vunpack.c.h.b16 %v901
        %v1064 = vunpack.c.l.b16 %v902
        %v1065 = vunpack.c.h.b16 %v902
        %v1066 = vunpack.c.l.b16 %v903
        %v1067 = vunpack.c.h.b16 %v903
        %v1068 = vunpack.c.l.b16 %v904
        %v1069 = vunpack.c.h.b16 %v904
        %v1070 = vunpack.c.l.b16 %v905
        %v1071 = vunpack.c.h.b16 %v905
        %v1072 = vunpack.c.l.b16 %v906
        %v1073 = vunpack.c.h.b16 %v906
        %v1074 = vpack.c.b16 %v1044, %v1042
        %v1075 = vpack.c.b16 %v1045, %v1043
        %v1076 = vpack.c.b16 %v1048, %v1046
        %v1077 = vpack.c.b16 %v1049, %v1047
        %v1078 = vpack.c.b16 %v1052, %v1050
        %v1079 = vpack.c.b16 %v1053, %v1051
        %v1080 = vpack.c.b16 %v1056, %v1054
        %v1081 = vpack.c.b16 %v1057, %v1055
        %v1082 = vpack.c.b16 %v1060, %v1058
        %v1083 = vpack.c.b16 %v1061, %v1059
        %v1084 = vpack.c.b16 %v1064, %v1062
        %v1085 = vpack.c.b16 %v1065, %v1063
        %v1086 = vpack.c.b16 %v1068, %v1066
        %v1087 = vpack.c.b16 %v1069, %v1067
        %v1088 = vpack.c.b16 %v1072, %v1070
        %v1089 = vpack.c.b16 %v1073, %v1071
        %v1138 = vunpack.c.l.b16 %v923
        %v1139 = vunpack.c.l.b16 %v924
        %v1140 = vunpack.c.l.b16 %v925
        %v1141 = vunpack.c.l.b16 %v926
        %v1142 = vunpack.c.l.b16 %v927
        %v1143 = vunpack.c.l.b16 %v928
        %v1144 = vunpack.c.l.b16 %v929
        %v1145 = vunpack.c.l.b16 %v930
        %v1146 = vunpack.c.l.b16 %v931
        %v1147 = vunpack.c.l.b16 %v932
        %v1148 = vunpack.c.l.b16 %v933
        %v1149 = vunpack.c.l.b16 %v934
        %v1150 = vunpack.c.l.b16 %v935
        %v1151 = vunpack.c.l.b16 %v936
        %v1152 = vunpack.c.l.b16 %v937
        %v1153 = vunpack.c.l.b16 %v938
        %v1154 = vunpack.c.l.b16 %v939
        %v1155 = vunpack.c.l.b16 %v940
        %v1156 = vunpack.c.l.b16 %v941
        %v1157 = vunpack.c.l.b16 %v942
        %v1158 = vunpack.c.l.b16 %v943
        %v1159 = vunpack.c.l.b16 %v944
        %v1160 = vunpack.c.l.b16 %v945
        %v1161 = vunpack.c.l.b16 %v946
        %v1162 = vunpack.c.l.b16 %v947
        %v1163 = vunpack.c.l.b16 %v948
        %v1164 = vunpack.c.l.b16 %v949
        %v1165 = vunpack.c.l.b16 %v950
        %v1166 = vunpack.c.l.b16 %v951
        %v1167 = vunpack.c.l.b16 %v952
        %v1168 = vunpack.c.l.b16 %v953
        %v1169 = vunpack.c.l.b16 %v954
        %v1170 = vpack.c.b16 %v1139, %v1138
        %v1171 = vpack.c.b16 %v1141, %v1140
        %v1172 = vpack.c.b16 %v1143, %v1142
        %v1173 = vpack.c.b16 %v1145, %v1144
        %v1174 = vpack.c.b16 %v1147, %v1146
        %v1175 = vpack.c.b16 %v1149, %v1148
        %v1176 = vpack.c.b16 %v1151, %v1150
        %v1177 = vpack.c.b16 %v1153, %v1152
        %v1178 = vpack.c.b16 %v1155, %v1154
        %v1179 = vpack.c.b16 %v1157, %v1156
        %v1180 = vpack.c.b16 %v1159, %v1158
        %v1181 = vpack.c.b16 %v1161, %v1160
        %v1182 = vpack.c.b16 %v1163, %v1162
        %v1183 = vpack.c.b16 %v1165, %v1164
        %v1184 = vpack.c.b16 %v1167, %v1166
        %v1185 = vpack.c.b16 %v1169, %v1168
        %1202 = vmatprep.subr.bf16.mxu0 0
        %1203 = vmatpush1.bf16.msra.mxu0 %v1170
        %1204 = vmatprep.subr.bf16.mxu0 0
        %1205 = vmatpush1.bf16.msra.mxu0 %v1171
        %1206 = vmatprep.subr.bf16.mxu0 0
        %1207 = vmatpush1.bf16.msra.mxu0 %v1172
        %1208 = vmatprep.subr.bf16.mxu0 0
        %1209 = vmatpush1.bf16.msra.mxu0 %v1173
        %1210 = vmatprep.subr.bf16.mxu0 0
        %1211 = vmatpush1.bf16.msra.mxu0 %v1174
        %1212 = vmatprep.subr.bf16.mxu0 0
        %1213 = vmatpush1.bf16.msra.mxu0 %v1175
        %1214 = vmatprep.subr.bf16.mxu0 0
        %1215 = vmatpush1.bf16.msra.mxu0 %v1176
        %1216 = vmatprep.subr.bf16.mxu0 0
        %1217 = vmatpush1.bf16.msra.mxu0 %v1177
        %1218 = vmatprep.subr.bf16.mxu0 0
        %1219 = vmatpush1.bf16.msra.mxu0 %v1178
        %1220 = vmatprep.subr.bf16.mxu0 0
        %1221 = vmatpush1.bf16.msra.mxu0 %v1179
        %1222 = vmatprep.subr.bf16.mxu0 0
        %1223 = vmatpush1.bf16.msra.mxu0 %v1180
        %1224 = vmatprep.subr.bf16.mxu0 0
        %1225 = vmatpush1.bf16.msra.mxu0 %v1181
        %1226 = vmatprep.subr.bf16.mxu0 0
        %1227 = vmatpush1.bf16.msra.mxu0 %v1182
        %1228 = vmatprep.subr.bf16.mxu0 0
        %1229 = vmatpush1.bf16.msra.mxu0 %v1183
        %1230 = vmatprep.subr.bf16.mxu0 0
        %1231 = vmatpush1.bf16.msra.mxu0 %v1184
        %1232 = vmatprep.subr.bf16.mxu0 0
        %1233 = vmatpush1.bf16.msra.mxu0 %v1185
        %1234 = vmatprep.mubr.bf16.mxu0 %v1075
        %1235 = vmatmul.mubr.bf16.gmra.mrb[0].mxu0 %v1074
        %v1236 = vpop.f32.mrb[0].mxu0
        %v1237 = vadd.f32 0.0, %v1236
        %v1238 = vpop.f32.mrb[0].mxu0
        %v1239 = vpop.f32.mrb[0].mxu0
        %v1240 = vadd.f32 0.0, %v1239
        %v1241 = vpop.f32.mrb[0].mxu0
        %1242 = vmatprep.mubr.bf16.mxu0 %v1077
        %1243 = vmatmul.mubr.bf16.gmra.mrb[0].mxu0 %v1076
        %v1244 = vpop.f32.mrb[0].mxu0
        %v1245 = vadd.f32 0.0, %v1244
        %v1246 = vpop.f32.mrb[0].mxu0
        %v1247 = vpop.f32.mrb[0].mxu0
        %v1248 = vadd.f32 0.0, %v1247
        %v1249 = vpop.f32.mrb[0].mxu0
        %1250 = vmatprep.mubr.bf16.mxu0 %v1079
        %1251 = vmatmul.mubr.bf16.gmra.mrb[0].mxu0 %v1078
        %v1252 = vpop.f32.mrb[0].mxu0
        %v1253 = vadd.f32 0.0, %v1252
        %v1254 = vpop.f32.mrb[0].mxu0
        %v1255 = vpop.f32.mrb[0].mxu0
        %v1256 = vadd.f32 0.0, %v1255
        %v1257 = vpop.f32.mrb[0].mxu0
        %1258 = vmatprep.mubr.bf16.mxu0 %v1081
        %1259 = vmatmul.mubr.bf16.gmra.mrb[0].mxu0 %v1080
        %v1260 = vpop.f32.mrb[0].mxu0
        %v1261 = vadd.f32 0.0, %v1260
        %v1262 = vpop.f32.mrb[0].mxu0
        %v1263 = vpop.f32.mrb[0].mxu0
        %v1264 = vadd.f32 0.0, %v1263
        %v1265 = vpop.f32.mrb[0].mxu0
        %1266 = vmatprep.mubr.bf16.mxu0 %v1083
        %1267 = vmatmul.mubr.bf16.gmra.mrb[0].mxu0 %v1082
        %v1268 = vpop.f32.mrb[0].mxu0
        %v1269 = vadd.f32 0.0, %v1268
        %v1270 = vpop.f32.mrb[0].mxu0
        %v1271 = vpop.f32.mrb[0].mxu0
        %v1272 = vadd.f32 0.0, %v1271
        %v1273 = vpop.f32.mrb[0].mxu0
        %1274 = vmatprep.mubr.bf16.mxu0 %v1085
        %1275 = vmatmul.mubr.bf16.gmra.mrb[0].mxu0 %v1084
        %v1276 = vpop.f32.mrb[0].mxu0
        %v1277 = vadd.f32 0.0, %v1276
        %v1278 = vpop.f32.mrb[0].mxu0
        %v1279 = vpop.f32.mrb[0].mxu0
        %v1280 = vadd.f32 0.0, %v1279
        %v1281 = vpop.f32.mrb[0].mxu0
        %1282 = vmatprep.mubr.bf16.mxu0 %v1087
        %1283 = vmatmul.mubr.bf16.gmra.mrb[0].mxu0 %v1086
        %v1284 = vpop.f32.mrb[0].mxu0
        %v1285 = vadd.f32 0.0, %v1284
        %v1286 = vpop.f32.mrb[0].mxu0
        %v1287 = vpop.f32.mrb[0].mxu0
        %v1288 = vadd.f32 0.0, %v1287
        %v1289 = vpop.f32.mrb[0].mxu0
        %1290 = vmatprep.mubr.bf16.mxu0 %v1089
        %1291 = vmatmul.mubr.bf16.gmra.mrb[0].mxu0 %v1088
        %v1292 = vpop.f32.mrb[0].mxu0
        %v1293 = vadd.f32 0.0, %v1292
        %v1294 = vpop.f32.mrb[0].mxu0
        %v1295 = vpop.f32.mrb[0].mxu0
        %v1296 = vadd.f32 0.0, %v1295
        %v1297 = vpop.f32.mrb[0].mxu0
        %1298 = vdwg.mxu0
        %v1299 = vpack.c.bf16 %v1240, %v1237
        %v1300 = vpack.c.bf16 %v1248, %v1245
        %v1301 = vpack.c.bf16 %v1256, %v1253
        %v1302 = vpack.c.bf16 %v1264, %v1261
        %v1303 = vpack.c.bf16 %v1272, %v1269
        %v1304 = vpack.c.bf16 %v1280, %v1277
        %v1305 = vpack.c.bf16 %v1288, %v1285
        %v1306 = vpack.c.bf16 %v1296, %v1293
        %v1307 = vld [vmem:[%s7] sm:$0xf]
        %v1308 = vld [vmem:[#allocation8] sm:$0x1]
        %v1310 = vlaneseq
        %v1311 = vshrl.u32 %v1310, 7
        %v1312 = vsub.s32 0, %v1311
        %v1313 = vrot.slane %v1308, %v1312
        %vm1315 = vcmask 64512
        %v1317 = vsel %vm1315, %v1299, 0
        %v1320 = vsel %vm1315, %v1300, 0
        %v1323 = vsel %vm1315, %v1301, 0
        %v1326 = vsel %vm1315, %v1302, 0
        %v1329 = vsel %vm1315, %v1303, 0
        %v1332 = vsel %vm1315, %v1304, 0
        %v1335 = vsel %vm1315, %v1305, 0
        %v1338 = vsel %vm1315, %v1306, 0
        %vm1340 = vcmask 1043456
        %v1342 = vsel %vm1340, %v1307, 0
        %1344 = vmatprep.subr.bf16.mxu0 0
        %1345 = vmatpush1.bf16.msra.mxu0 %v1342
        %1346 = vmatprep.subr.bf16.mxu0 0
        %1347 = vmatpush1.bf16.msra.mxu0 0
        %1348 = vmatprep.subr.bf16.mxu0 0
        %1349 = vmatpush1.bf16.msra.mxu0 0
        %1350 = vmatprep.subr.bf16.mxu0 0
        %1351 = vmatpush1.bf16.msra.mxu0 0
        %1352 = vmatprep.subr.bf16.mxu0 0
        %1353 = vmatpush1.bf16.msra.mxu0 0
        %1354 = vmatprep.subr.bf16.mxu0 0
        %1355 = vmatpush1.bf16.msra.mxu0 0
        %1356 = vmatprep.subr.bf16.mxu0 0
        %1357 = vmatpush1.bf16.msra.mxu0 0
        %1358 = vmatprep.subr.bf16.mxu0 0
        %1359 = vmatpush1.bf16.msra.mxu0 0
        %1360 = vmatprep.subr.bf16.mxu0 0
        %1361 = vmatpush1.bf16.msra.mxu0 0
        %1362 = vmatprep.subr.bf16.mxu0 0
        %1363 = vmatpush1.bf16.msra.mxu0 0
        %1364 = vmatprep.subr.bf16.mxu0 0
        %1365 = vmatpush1.bf16.msra.mxu0 0
        %1366 = vmatprep.subr.bf16.mxu0 0
        %1367 = vmatpush1.bf16.msra.mxu0 0
        %1368 = vmatprep.subr.bf16.mxu0 0
        %1369 = vmatpush1.bf16.msra.mxu0 0
        %1370 = vmatprep.subr.bf16.mxu0 0
        %1371 = vmatpush1.bf16.msra.mxu0 0
        %1372 = vmatprep.subr.bf16.mxu0 0
        %1373 = vmatpush1.bf16.msra.mxu0 0
        %1374 = vmatprep.subr.bf16.mxu0 0
        %1375 = vmatpush1.bf16.msra.mxu0 0
        %1376 = vmatprep.mubr.bf16.mxu0 0
        %1377 = vmatmul.mubr.bf16.gmra.mrb[0].mxu0 %v1317
        %v1378 = vpop.f32.mrb[0].mxu0
        %v1379 = vadd.f32 %v1313, %v1378
        %v1380 = vpop.f32.mrb[0].mxu0
        %v1381 = vpop.f32.mrb[0].mxu0
        %v1382 = vadd.f32 %v1313, %v1381
        %v1383 = vpop.f32.mrb[0].mxu0
        %1384 = vmatprep.mubr.bf16.mxu0 0
        %1385 = vmatmul.mubr.bf16.gmra.mrb[0].mxu0 %v1320
        %v1386 = vpop.f32.mrb[0].mxu0
        %v1387 = vadd.f32 %v1313, %v1386
        %v1388 = vpop.f32.mrb[0].mxu0
        %v1389 = vpop.f32.mrb[0].mxu0
        %v1390 = vadd.f32 %v1313, %v1389
        %v1391 = vpop.f32.mrb[0].mxu0
        %1392 = vmatprep.mubr.bf16.mxu0 0
        %1393 = vmatmul.mubr.bf16.gmra.mrb[0].mxu0 %v1323
        %v1394 = vpop.f32.mrb[0].mxu0
        %v1395 = vadd.f32 %v1313, %v1394
        %v1396 = vpop.f32.mrb[0].mxu0
        %v1397 = vpop.f32.mrb[0].mxu0
        %v1398 = vadd.f32 %v1313, %v1397
        %v1399 = vpop.f32.mrb[0].mxu0
        %1400 = vmatprep.mubr.bf16.mxu0 0
        %1401 = vmatmul.mubr.bf16.gmra.mrb[0].mxu0 %v1326
        %v1402 = vpop.f32.mrb[0].mxu0
        %v1403 = vadd.f32 %v1313, %v1402
        %v1404 = vpop.f32.mrb[0].mxu0
        %v1405 = vpop.f32.mrb[0].mxu0
        %v1406 = vadd.f32 %v1313, %v1405
        %v1407 = vpop.f32.mrb[0].mxu0
        %1408 = vmatprep.mubr.bf16.mxu0 0
        %1409 = vmatmul.mubr.bf16.gmra.mrb[0].mxu0 %v1329
        %v1410 = vpop.f32.mrb[0].mxu0
        %v1411 = vadd.f32 %v1313, %v1410
        %v1412 = vpop.f32.mrb[0].mxu0
        %v1413 = vpop.f32.mrb[0].mxu0
        %v1414 = vadd.f32 %v1313, %v1413
        %v1415 = vpop.f32.mrb[0].mxu0
        %1416 = vmatprep.mubr.bf16.mxu0 0
        %1417 = vmatmul.mubr.bf16.gmra.mrb[0].mxu0 %v1332
        %v1418 = vpop.f32.mrb[0].mxu0
        %v1419 = vadd.f32 %v1313, %v1418
        %v1420 = vpop.f32.mrb[0].mxu0
        %v1421 = vpop.f32.mrb[0].mxu0
        %v1422 = vadd.f32 %v1313, %v1421
        %v1423 = vpop.f32.mrb[0].mxu0
        %1424 = vmatprep.mubr.bf16.mxu0 0
        %1425 = vmatmul.mubr.bf16.gmra.mrb[0].mxu0 %v1335
        %v1426 = vpop.f32.mrb[0].mxu0
        %v1427 = vadd.f32 %v1313, %v1426
        %v1428 = vpop.f32.mrb[0].mxu0
        %v1429 = vpop.f32.mrb[0].mxu0
        %v1430 = vadd.f32 %v1313, %v1429
        %v1431 = vpop.f32.mrb[0].mxu0
        %1432 = vmatprep.mubr.bf16.mxu0 0
        %1433 = vmatmul.mubr.bf16.gmra.mrb[0].mxu0 %v1338
        %v1434 = vpop.f32.mrb[0].mxu0
        %v1435 = vadd.f32 %v1313, %v1434
        %v1436 = vpop.f32.mrb[0].mxu0
        %v1437 = vpop.f32.mrb[0].mxu0
        %v1438 = vadd.f32 %v1313, %v1437
        %v1439 = vpop.f32.mrb[0].mxu0
        %1440 = vdwg.mxu0
        %v1457 = vunpack.c.l.b16 %v907
        %v1458 = vunpack.c.h.b16 %v907
        %v1459 = vunpack.c.l.b16 %v908
        %v1460 = vunpack.c.h.b16 %v908
        %v1461 = vunpack.c.l.b16 %v909
        %v1462 = vunpack.c.h.b16 %v909
        %v1463 = vunpack.c.l.b16 %v910
        %v1464 = vunpack.c.h.b16 %v910
        %v1465 = vunpack.c.l.b16 %v911
        %v1466 = vunpack.c.h.b16 %v911
        %v1467 = vunpack.c.l.b16 %v912
        %v1468 = vunpack.c.h.b16 %v912
        %v1469 = vunpack.c.l.b16 %v913
        %v1470 = vunpack.c.h.b16 %v913
        %v1471 = vunpack.c.l.b16 %v914
        %v1472 = vunpack.c.h.b16 %v914
        %v1473 = vunpack.c.l.b16 %v915
        %v1474 = vunpack.c.h.b16 %v915
        %v1475 = vunpack.c.l.b16 %v916
        %v1476 = vunpack.c.h.b16 %v916
        %v1477 = vunpack.c.l.b16 %v917
        %v1478 = vunpack.c.h.b16 %v917
        %v1479 = vunpack.c.l.b16 %v918
        %v1480 = vunpack.c.h.b16 %v918
        %v1481 = vunpack.c.l.b16 %v919
        %v1482 = vunpack.c.h.b16 %v919
        %v1483 = vunpack.c.l.b16 %v920
        %v1484 = vunpack.c.h.b16 %v920
        %v1485 = vunpack.c.l.b16 %v921
        %v1486 = vunpack.c.h.b16 %v921
        %v1487 = vunpack.c.l.b16 %v922
        %v1488 = vunpack.c.h.b16 %v922
        %v1489 = vpack.c.b16 %v1459, %v1457
        %v1490 = vpack.c.b16 %v1460, %v1458
        %v1491 = vpack.c.b16 %v1463, %v1461
        %v1492 = vpack.c.b16 %v1464, %v1462
        %v1493 = vpack.c.b16 %v1467, %v1465
        %v1494 = vpack.c.b16 %v1468, %v1466
        %v1495 = vpack.c.b16 %v1471, %v1469
        %v1496 = vpack.c.b16 %v1472, %v1470
        %v1497 = vpack.c.b16 %v1475, %v1473
        %v1498 = vpack.c.b16 %v1476, %v1474
        %v1499 = vpack.c.b16 %v1479, %v1477
        %v1500 = vpack.c.b16 %v1480, %v1478
        %v1501 = vpack.c.b16 %v1483, %v1481
        %v1502 = vpack.c.b16 %v1484, %v1482
        %v1503 = vpack.c.b16 %v1487, %v1485
        %v1504 = vpack.c.b16 %v1488, %v1486
        %1521 = vmatprep.subr.bf16.mxu0 0
        %1522 = vmatpush1.bf16.msra.mxu0 %v1170
        %1523 = vmatprep.subr.bf16.mxu0 0
        %1524 = vmatpush1.bf16.msra.mxu0 %v1171
        %1525 = vmatprep.subr.bf16.mxu0 0
        %1526 = vmatpush1.bf16.msra.mxu0 %v1172
        %1527 = vmatprep.subr.bf16.mxu0 0
        %1528 = vmatpush1.bf16.msra.mxu0 %v1173
        %1529 = vmatprep.subr.bf16.mxu0 0
        %1530 = vmatpush1.bf16.msra.mxu0 %v1174
        %1531 = vmatprep.subr.bf16.mxu0 0
        %1532 = vmatpush1.bf16.msra.mxu0 %v1175
        %1533 = vmatprep.subr.bf16.mxu0 0
        %1534 = vmatpush1.bf16.msra.mxu0 %v1176
        %1535 = vmatprep.subr.bf16.mxu0 0
        %1536 = vmatpush1.bf16.msra.mxu0 %v1177
        %1537 = vmatprep.subr.bf16.mxu0 0
        %1538 = vmatpush1.bf16.msra.mxu0 %v1178
        %1539 = vmatprep.subr.bf16.mxu0 0
        %1540 = vmatpush1.bf16.msra.mxu0 %v1179
        %1541 = vmatprep.subr.bf16.mxu0 0
        %1542 = vmatpush1.bf16.msra.mxu0 %v1180
        %1543 = vmatprep.subr.bf16.mxu0 0
        %1544 = vmatpush1.bf16.msra.mxu0 %v1181
        %1545 = vmatprep.subr.bf16.mxu0 0
        %1546 = vmatpush1.bf16.msra.mxu0 %v1182
        %1547 = vmatprep.subr.bf16.mxu0 0
        %1548 = vmatpush1.bf16.msra.mxu0 %v1183
        %1549 = vmatprep.subr.bf16.mxu0 0
        %1550 = vmatpush1.bf16.msra.mxu0 %v1184
        %1551 = vmatprep.subr.bf16.mxu0 0
        %1552 = vmatpush1.bf16.msra.mxu0 %v1185
        %1553 = vmatprep.mubr.bf16.mxu0 %v1490
        %1554 = vmatmul.mubr.bf16.gmra.mrb[0].mxu0 %v1489
        %v1555 = vpop.f32.mrb[0].mxu0
        %v1556 = vadd.f32 0.0, %v1555
        %v1557 = vpop.f32.mrb[0].mxu0
        %v1558 = vpop.f32.mrb[0].mxu0
        %v1559 = vadd.f32 0.0, %v1558
        %v1560 = vpop.f32.mrb[0].mxu0
        %1561 = vmatprep.mubr.bf16.mxu0 %v1492
        %1562 = vmatmul.mubr.bf16.gmra.mrb[0].mxu0 %v1491
        %v1563 = vpop.f32.mrb[0].mxu0
        %v1564 = vadd.f32 0.0, %v1563
        %v1565 = vpop.f32.mrb[0].mxu0
        %v1566 = vpop.f32.mrb[0].mxu0
        %v1567 = vadd.f32 0.0, %v1566
        %v1568 = vpop.f32.mrb[0].mxu0
        %1569 = vmatprep.mubr.bf16.mxu0 %v1494
        %1570 = vmatmul.mubr.bf16.gmra.mrb[0].mxu0 %v1493
        %v1571 = vpop.f32.mrb[0].mxu0
        %v1572 = vadd.f32 0.0, %v1571
        %v1573 = vpop.f32.mrb[0].mxu0
        %v1574 = vpop.f32.mrb[0].mxu0
        %v1575 = vadd.f32 0.0, %v1574
        %v1576 = vpop.f32.mrb[0].mxu0
        %1577 = vmatprep.mubr.bf16.mxu0 %v1496
        %1578 = vmatmul.mubr.bf16.gmra.mrb[0].mxu0 %v1495
        %v1579 = vpop.f32.mrb[0].mxu0
        %v1580 = vadd.f32 0.0, %v1579
        %v1581 = vpop.f32.mrb[0].mxu0
        %v1582 = vpop.f32.mrb[0].mxu0
        %v1583 = vadd.f32 0.0, %v1582
        %v1584 = vpop.f32.mrb[0].mxu0
        %1585 = vmatprep.mubr.bf16.mxu0 %v1498
        %1586 = vmatmul.mubr.bf16.gmra.mrb[0].mxu0 %v1497
        %v1587 = vpop.f32.mrb[0].mxu0
        %v1588 = vadd.f32 0.0, %v1587
        %v1589 = vpop.f32.mrb[0].mxu0
        %v1590 = vpop.f32.mrb[0].mxu0
        %v1591 = vadd.f32 0.0, %v1590
        %v1592 = vpop.f32.mrb[0].mxu0
        %1593 = vmatprep.mubr.bf16.mxu0 %v1500
        %1594 = vmatmul.mubr.bf16.gmra.mrb[0].mxu0 %v1499
        %v1595 = vpop.f32.mrb[0].mxu0
        %v1596 = vadd.f32 0.0, %v1595
        %v1597 = vpop.f32.mrb[0].mxu0
        %v1598 = vpop.f32.mrb[0].mxu0
        %v1599 = vadd.f32 0.0, %v1598
        %v1600 = vpop.f32.mrb[0].mxu0
        %1601 = vmatprep.mubr.bf16.mxu0 %v1502
        %1602 = vmatmul.mubr.bf16.gmra.mrb[0].mxu0 %v1501
        %v1603 = vpop.f32.mrb[0].mxu0
        %v1604 = vadd.f32 0.0, %v1603
        %v1605 = vpop.f32.mrb[0].mxu0
        %v1606 = vpop.f32.mrb[0].mxu0
        %v1607 = vadd.f32 0.0, %v1606
        %v1608 = vpop.f32.mrb[0].mxu0
        %1609 = vmatprep.mubr.bf16.mxu0 %v1504
        %1610 = vmatmul.mubr.bf16.gmra.mrb[0].mxu0 %v1503
        %v1611 = vpop.f32.mrb[0].mxu0
        %v1612 = vadd.f32 0.0, %v1611
        %v1613 = vpop.f32.mrb[0].mxu0
        %v1614 = vpop.f32.mrb[0].mxu0
        %v1615 = vadd.f32 0.0, %v1614
        %v1616 = vpop.f32.mrb[0].mxu0
        %1617 = vdwg.mxu0
        %v1618 = vpack.c.bf16 %v1559, %v1556
        %v1619 = vpack.c.bf16 %v1567, %v1564
        %v1620 = vpack.c.bf16 %v1575, %v1572
        %v1621 = vpack.c.bf16 %v1583, %v1580
        %v1622 = vpack.c.bf16 %v1591, %v1588
        %v1623 = vpack.c.bf16 %v1599, %v1596
        %v1624 = vpack.c.bf16 %v1607, %v1604
        %v1625 = vpack.c.bf16 %v1615, %v1612
        %v1626 = vld [vmem:[%s9] sm:$0xf]
        %v1627 = vld [vmem:[%s10] sm:$0xf]
        %v1644 = vunpack.c.l.b16 %v992
        %v1645 = vunpack.c.l.b16 %v993
        %v1646 = vunpack.c.l.b16 %v994
        %v1647 = vunpack.c.l.b16 %v995
        %v1648 = vunpack.c.l.b16 %v996
        %v1649 = vunpack.c.l.b16 %v997
        %v1650 = vunpack.c.l.b16 %v998
        %v1651 = vunpack.c.l.b16 %v999
        %v1652 = vunpack.c.l.b16 %v1000
        %v1653 = vunpack.c.l.b16 %v1001
        %v1654 = vunpack.c.l.b16 %v1002
        %v1655 = vunpack.c.l.b16 %v1003
        %v1656 = vunpack.c.l.b16 %v1004
        %v1657 = vunpack.c.l.b16 %v1005
        %v1658 = vunpack.c.l.b16 %v1006
        %v1659 = vunpack.c.l.b16 %v1007
        %v1660 = vpack.c.b16 %v1645, %v1644
        %v1661 = vpack.c.b16 %v1647, %v1646
        %v1662 = vpack.c.b16 %v1649, %v1648
        %v1663 = vpack.c.b16 %v1651, %v1650
        %v1664 = vpack.c.b16 %v1653, %v1652
        %v1665 = vpack.c.b16 %v1655, %v1654
        %v1666 = vpack.c.b16 %v1657, %v1656
        %v1667 = vpack.c.b16 %v1659, %v1658
        %v1669 = vsel %vm1315, %v1660, 0
        %v1672 = vsel %vm1315, %v1661, 0
        %v1675 = vsel %vm1315, %v1662, 0
        %v1678 = vsel %vm1315, %v1663, 0
        %v1681 = vsel %vm1315, %v1664, 0
        %v1684 = vsel %vm1315, %v1665, 0
        %v1687 = vsel %vm1315, %v1666, 0
        %v1690 = vsel %vm1315, %v1667, 0
        %v1693 = vsel %vm1340, %v1627, 0
        %1695 = vmatprep.subr.bf16.mxu0 0
        %1696 = vmatpush1.bf16.msra.mxu0 %v1693
        %1697 = vmatprep.subr.bf16.mxu0 0
        %1698 = vmatpush1.bf16.msra.mxu0 0
        %1699 = vmatprep.subr.bf16.mxu0 0
        %1700 = vmatpush1.bf16.msra.mxu0 0
        %1701 = vmatprep.subr.bf16.mxu0 0
        %1702 = vmatpush1.bf16.msra.mxu0 0
        %1703 = vmatprep.subr.bf16.mxu0 0
        %1704 = vmatpush1.bf16.msra.mxu0 0
        %1705 = vmatprep.subr.bf16.mxu0 0
        %1706 = vmatpush1.bf16.msra.mxu0 0
        %1707 = vmatprep.subr.bf16.mxu0 0
        %1708 = vmatpush1.bf16.msra.mxu0 0
        %1709 = vmatprep.subr.bf16.mxu0 0
        %1710 = vmatpush1.bf16.msra.mxu0 0
        %1711 = vmatprep.subr.bf16.mxu0 0
        %1712 = vmatpush1.bf16.msra.mxu0 0
        %1713 = vmatprep.subr.bf16.mxu0 0
        %1714 = vmatpush1.bf16.msra.mxu0 0
        %1715 = vmatprep.subr.bf16.mxu0 0
        %1716 = vmatpush1.bf16.msra.mxu0 0
        %1717 = vmatprep.subr.bf16.mxu0 0
        %1718 = vmatpush1.bf16.msra.mxu0 0
        %1719 = vmatprep.subr.bf16.mxu0 0
        %1720 = vmatpush1.bf16.msra.mxu0 0
        %1721 = vmatprep.subr.bf16.mxu0 0
        %1722 = vmatpush1.bf16.msra.mxu0 0
        %1723 = vmatprep.subr.bf16.mxu0 0
        %1724 = vmatpush1.bf16.msra.mxu0 0
        %1725 = vmatprep.subr.bf16.mxu0 0
        %1726 = vmatpush1.bf16.msra.mxu0 0
        %1727 = vmatprep.mubr.bf16.mxu0 0
        %1728 = vmatmul.mubr.bf16.gmra.mrb[0].mxu0 %v1669
        %v1729 = vpop.f32.mrb[0].mxu0
        %v1730 = vadd.f32 0.0, %v1729
        %v1731 = vpop.f32.mrb[0].mxu0
        %v1732 = vpop.f32.mrb[0].mxu0
        %v1733 = vadd.f32 0.0, %v1732
        %v1734 = vpop.f32.mrb[0].mxu0
        %1735 = vmatprep.mubr.bf16.mxu0 0
        %1736 = vmatmul.mubr.bf16.gmra.mrb[0].mxu0 %v1672
        %v1737 = vpop.f32.mrb[0].mxu0
        %v1738 = vadd.f32 0.0, %v1737
        %v1739 = vpop.f32.mrb[0].mxu0
        %v1740 = vpop.f32.mrb[0].mxu0
        %v1741 = vadd.f32 0.0, %v1740
        %v1742 = vpop.f32.mrb[0].mxu0
        %1743 = vmatprep.mubr.bf16.mxu0 0
        %1744 = vmatmul.mubr.bf16.gmra.mrb[0].mxu0 %v1675
        %v1745 = vpop.f32.mrb[0].mxu0
        %v1746 = vadd.f32 0.0, %v1745
        %v1747 = vpop.f32.mrb[0].mxu0
        %v1748 = vpop.f32.mrb[0].mxu0
        %v1749 = vadd.f32 0.0, %v1748
        %v1750 = vpop.f32.mrb[0].mxu0
        %1751 = vmatprep.mubr.bf16.mxu0 0
        %1752 = vmatmul.mubr.bf16.gmra.mrb[0].mxu0 %v1678
        %v1753 = vpop.f32.mrb[0].mxu0
        %v1754 = vadd.f32 0.0, %v1753
        %v1755 = vpop.f32.mrb[0].mxu0
        %v1756 = vpop.f32.mrb[0].mxu0
        %v1757 = vadd.f32 0.0, %v1756
        %v1758 = vpop.f32.mrb[0].mxu0
        %1759 = vmatprep.mubr.bf16.mxu0 0
        %1760 = vmatmul.mubr.bf16.gmra.mrb[0].mxu0 %v1681
        %v1761 = vpop.f32.mrb[0].mxu0
        %v1762 = vadd.f32 0.0, %v1761
        %v1763 = vpop.f32.mrb[0].mxu0
        %v1764 = vpop.f32.mrb[0].mxu0
        %v1765 = vadd.f32 0.0, %v1764
        %v1766 = vpop.f32.mrb[0].mxu0
        %1767 = vmatprep.mubr.bf16.mxu0 0
        %1768 = vmatmul.mubr.bf16.gmra.mrb[0].mxu0 %v1684
        %v1769 = vpop.f32.mrb[0].mxu0
        %v1770 = vadd.f32 0.0, %v1769
        %v1771 = vpop.f32.mrb[0].mxu0
        %v1772 = vpop.f32.mrb[0].mxu0
        %v1773 = vadd.f32 0.0, %v1772
        %v1774 = vpop.f32.mrb[0].mxu0
        %1775 = vmatprep.mubr.bf16.mxu0 0
        %1776 = vmatmul.mubr.bf16.gmra.mrb[0].mxu0 %v1687
        %v1777 = vpop.f32.mrb[0].mxu0
        %v1778 = vadd.f32 0.0, %v1777
        %v1779 = vpop.f32.mrb[0].mxu0
        %v1780 = vpop.f32.mrb[0].mxu0
        %v1781 = vadd.f32 0.0, %v1780
        %v1782 = vpop.f32.mrb[0].mxu0
        %1783 = vmatprep.mubr.bf16.mxu0 0
        %1784 = vmatmul.mubr.bf16.gmra.mrb[0].mxu0 %v1690
        %v1785 = vpop.f32.mrb[0].mxu0
        %v1786 = vadd.f32 0.0, %v1785
        %v1787 = vpop.f32.mrb[0].mxu0
        %v1788 = vpop.f32.mrb[0].mxu0
        %v1789 = vadd.f32 0.0, %v1788
        %v1790 = vpop.f32.mrb[0].mxu0
        %1791 = vdwg.mxu0
        %v1793 = vsel %vm1315, %v1618, 0
        %v1796 = vsel %vm1315, %v1619, 0
        %v1799 = vsel %vm1315, %v1620, 0
        %v1802 = vsel %vm1315, %v1621, 0
        %v1805 = vsel %vm1315, %v1622, 0
        %v1808 = vsel %vm1315, %v1623, 0
        %v1811 = vsel %vm1315, %v1624, 0
        %v1814 = vsel %vm1315, %v1625, 0
        %v1817 = vsel %vm1340, %v1626, 0
        %1819 = vmatprep.subr.bf16.mxu0 0
        %1820 = vmatpush1.bf16.msra.mxu0 %v1817
        %1821 = vmatprep.subr.bf16.mxu0 0
        %1822 = vmatpush1.bf16.msra.mxu0 0
        %1823 = vmatprep.subr.bf16.mxu0 0
        %1824 = vmatpush1.bf16.msra.mxu0 0
        %1825 = vmatprep.subr.bf16.mxu0 0
        %1826 = vmatpush1.bf16.msra.mxu0 0
        %1827 = vmatprep.subr.bf16.mxu0 0
        %1828 = vmatpush1.bf16.msra.mxu0 0
        %1829 = vmatprep.subr.bf16.mxu0 0
        %1830 = vmatpush1.bf16.msra.mxu0 0
        %1831 = vmatprep.subr.bf16.mxu0 0
        %1832 = vmatpush1.bf16.msra.mxu0 0
        %1833 = vmatprep.subr.bf16.mxu0 0
        %1834 = vmatpush1.bf16.msra.mxu0 0
        %1835 = vmatprep.subr.bf16.mxu0 0
        %1836 = vmatpush1.bf16.msra.mxu0 0
        %1837 = vmatprep.subr.bf16.mxu0 0
        %1838 = vmatpush1.bf16.msra.mxu0 0
        %1839 = vmatprep.subr.bf16.mxu0 0
        %1840 = vmatpush1.bf16.msra.mxu0 0
        %1841 = vmatprep.subr.bf16.mxu0 0
        %1842 = vmatpush1.bf16.msra.mxu0 0
        %1843 = vmatprep.subr.bf16.mxu0 0
        %1844 = vmatpush1.bf16.msra.mxu0 0
        %1845 = vmatprep.subr.bf16.mxu0 0
        %1846 = vmatpush1.bf16.msra.mxu0 0
        %1847 = vmatprep.subr.bf16.mxu0 0
        %1848 = vmatpush1.bf16.msra.mxu0 0
        %1849 = vmatprep.subr.bf16.mxu0 0
        %1850 = vmatpush1.bf16.msra.mxu0 0
        %1851 = vmatprep.mubr.bf16.mxu0 0
        %1852 = vmatmul.mubr.bf16.gmra.mrb[0].mxu0 %v1793
        %v1853 = vpop.f32.mrb[0].mxu0
        %v1854 = vadd.f32 %v1730, %v1853
        %v1855 = vpop.f32.mrb[0].mxu0
        %v1856 = vpop.f32.mrb[0].mxu0
        %v1857 = vadd.f32 %v1733, %v1856
        %v1858 = vpop.f32.mrb[0].mxu0
        %1859 = vmatprep.mubr.bf16.mxu0 0
        %1860 = vmatmul.mubr.bf16.gmra.mrb[0].mxu0 %v1796
        %v1861 = vpop.f32.mrb[0].mxu0
        %v1862 = vadd.f32 %v1738, %v1861
        %v1863 = vpop.f32.mrb[0].mxu0
        %v1864 = vpop.f32.mrb[0].mxu0
        %v1865 = vadd.f32 %v1741, %v1864
        %v1866 = vpop.f32.mrb[0].mxu0
        %1867 = vmatprep.mubr.bf16.mxu0 0
        %1868 = vmatmul.mubr.bf16.gmra.mrb[0].mxu0 %v1799
        %v1869 = vpop.f32.mrb[0].mxu0
        %v1870 = vadd.f32 %v1746, %v1869
        %v1871 = vpop.f32.mrb[0].mxu0
        %v1872 = vpop.f32.mrb[0].mxu0
        %v1873 = vadd.f32 %v1749, %v1872
        %v1874 = vpop.f32.mrb[0].mxu0
        %1875 = vmatprep.mubr.bf16.mxu0 0
        %1876 = vmatmul.mubr.bf16.gmra.mrb[0].mxu0 %v1802
        %v1877 = vpop.f32.mrb[0].mxu0
        %v1878 = vadd.f32 %v1754, %v1877
        %v1879 = vpop.f32.mrb[0].mxu0
        %v1880 = vpop.f32.mrb[0].mxu0
        %v1881 = vadd.f32 %v1757, %v1880
        %v1882 = vpop.f32.mrb[0].mxu0
        %1883 = vmatprep.mubr.bf16.mxu0 0
        %1884 = vmatmul.mubr.bf16.gmra.mrb[0].mxu0 %v1805
        %v1885 = vpop.f32.mrb[0].mxu0
        %v1886 = vadd.f32 %v1762, %v1885
        %v1887 = vpop.f32.mrb[0].mxu0
        %v1888 = vpop.f32.mrb[0].mxu0
        %v1889 = vadd.f32 %v1765, %v1888
        %v1890 = vpop.f32.mrb[0].mxu0
        %1891 = vmatprep.mubr.bf16.mxu0 0
        %1892 = vmatmul.mubr.bf16.gmra.mrb[0].mxu0 %v1808
        %v1893 = vpop.f32.mrb[0].mxu0
        %v1894 = vadd.f32 %v1770, %v1893
        %v1895 = vpop.f32.mrb[0].mxu0
        %v1896 = vpop.f32.mrb[0].mxu0
        %v1897 = vadd.f32 %v1773, %v1896
        %v1898 = vpop.f32.mrb[0].mxu0
        %1899 = vmatprep.mubr.bf16.mxu0 0
        %1900 = vmatmul.mubr.bf16.gmra.mrb[0].mxu0 %v1811
        %v1901 = vpop.f32.mrb[0].mxu0
        %v1902 = vadd.f32 %v1778, %v1901
        %v1903 = vpop.f32.mrb[0].mxu0
        %v1904 = vpop.f32.mrb[0].mxu0
        %v1905 = vadd.f32 %v1781, %v1904
        %v1906 = vpop.f32.mrb[0].mxu0
        %1907 = vmatprep.mubr.bf16.mxu0 0
        %1908 = vmatmul.mubr.bf16.gmra.mrb[0].mxu0 %v1814
        %v1909 = vpop.f32.mrb[0].mxu0
        %v1910 = vadd.f32 %v1786, %v1909
        %v1911 = vpop.f32.mrb[0].mxu0
        %v1912 = vpop.f32.mrb[0].mxu0
        %v1913 = vadd.f32 %v1789, %v1912
        %v1914 = vpop.f32.mrb[0].mxu0
        %1915 = vdwg.mxu0
        %v1916 = vld [vmem:[#allocation10] sm:$0x1]
        %v1918 = vlaneseq
        %v1919 = vshrl.u32 %v1918, 7
        %v1920 = vsub.s32 0, %v1919
        %v1921 = vrot.slane %v1916, %v1920
        %v1923 = vadd.f32 %v1854, %v1921
        %v1924 = vadd.f32 %v1857, %v1921
        %v1925 = vadd.f32 %v1862, %v1921
        %v1926 = vadd.f32 %v1865, %v1921
        %v1927 = vadd.f32 %v1870, %v1921
        %v1928 = vadd.f32 %v1873, %v1921
        %v1929 = vadd.f32 %v1878, %v1921
        %v1930 = vadd.f32 %v1881, %v1921
        %v1931 = vadd.f32 %v1886, %v1921
        %v1932 = vadd.f32 %v1889, %v1921
        %v1933 = vadd.f32 %v1894, %v1921
        %v1934 = vadd.f32 %v1897, %v1921
        %v1935 = vadd.f32 %v1902, %v1921
        %v1936 = vadd.f32 %v1905, %v1921
        %v1937 = vadd.f32 %v1910, %v1921
        %v1938 = vadd.f32 %v1913, %v1921
        %v1939 = vunpack.c.l.bf16 %v1010
        %v1940 = vunpack.c.l.bf16 %v1011
        %v1941 = vunpack.c.l.bf16 %v1012
        %v1942 = vunpack.c.l.bf16 %v1013
        %v1943 = vunpack.c.l.bf16 %v1014
        %v1944 = vunpack.c.l.bf16 %v1015
        %v1945 = vunpack.c.l.bf16 %v1016
        %v1946 = vunpack.c.l.bf16 %v1017
        %v1947 = vunpack.c.l.bf16 %v1018
        %v1948 = vunpack.c.l.bf16 %v1019
        %v1949 = vunpack.c.l.bf16 %v1020
        %v1950 = vunpack.c.l.bf16 %v1021
        %v1951 = vunpack.c.l.bf16 %v1022
        %v1952 = vunpack.c.l.bf16 %v1023
        %v1953 = vunpack.c.l.bf16 %v1024
        %v1954 = vunpack.c.l.bf16 %v1025
        %v1955 = vld [vmem:[%s5] sm:$0x1]
        %v1957 = vlaneseq
        %v1958 = vshrl.u32 %v1957, 7
        %v1959 = vsub.s32 0, %v1958
        %v1960 = vrot.slane %v1955, %v1959
        %v1962 = vmul.f32 %v1939, %v1960
        %v1963 = vmul.f32 %v1940, %v1960
        %v1964 = vmul.f32 %v1941, %v1960
        %v1965 = vmul.f32 %v1942, %v1960
        %v1966 = vmul.f32 %v1943, %v1960
        %v1967 = vmul.f32 %v1944, %v1960
        %v1968 = vmul.f32 %v1945, %v1960
        %v1969 = vmul.f32 %v1946, %v1960
        %v1970 = vmul.f32 %v1947, %v1960
        %v1971 = vmul.f32 %v1948, %v1960
        %v1972 = vmul.f32 %v1949, %v1960
        %v1973 = vmul.f32 %v1950, %v1960
        %v1974 = vmul.f32 %v1951, %v1960
        %v1975 = vmul.f32 %v1952, %v1960
        %v1976 = vmul.f32 %v1953, %v1960
        %v1977 = vmul.f32 %v1954, %v1960
        %vm1978 = vcmask 261120
        %v1979 = vsel %vm1978, %v1962, 0.0
        %1980 = vadd.xlane.f32.xlu0 %v1979
        %v1981 = vpop.xlane.xlu0 %1980
        %v1982 = vsel %vm1978, %v1963, 0.0
        %1983 = vadd.xlane.f32.xlu0 %v1982
        %v1984 = vpop.xlane.xlu0 %1983
        %v1985 = vsel %vm1978, %v1964, 0.0
        %1986 = vadd.xlane.f32.xlu0 %v1985
        %v1987 = vpop.xlane.xlu0 %1986
        %v1988 = vsel %vm1978, %v1965, 0.0
        %1989 = vadd.xlane.f32.xlu0 %v1988
        %v1990 = vpop.xlane.xlu0 %1989
        %v1991 = vsel %vm1978, %v1966, 0.0
        %1992 = vadd.xlane.f32.xlu0 %v1991
        %v1993 = vpop.xlane.xlu0 %1992
        %v1994 = vsel %vm1978, %v1967, 0.0
        %1995 = vadd.xlane.f32.xlu0 %v1994
        %v1996 = vpop.xlane.xlu0 %1995
        %v1997 = vsel %vm1978, %v1968, 0.0
        %1998 = vadd.xlane.f32.xlu0 %v1997
        %v1999 = vpop.xlane.xlu0 %1998
        %v2000 = vsel %vm1978, %v1969, 0.0
        %2001 = vadd.xlane.f32.xlu0 %v2000
        %v2002 = vpop.xlane.xlu0 %2001
        %v2003 = vsel %vm1978, %v1970, 0.0
        %2004 = vadd.xlane.f32.xlu0 %v2003
        %v2005 = vpop.xlane.xlu0 %2004
        %v2006 = vsel %vm1978, %v1971, 0.0
        %2007 = vadd.xlane.f32.xlu0 %v2006
        %v2008 = vpop.xlane.xlu0 %2007
        %v2009 = vsel %vm1978, %v1972, 0.0
        %2010 = vadd.xlane.f32.xlu0 %v2009
        %v2011 = vpop.xlane.xlu0 %2010
        %v2012 = vsel %vm1978, %v1973, 0.0
        %2013 = vadd.xlane.f32.xlu0 %v2012
        %v2014 = vpop.xlane.xlu0 %2013
        %v2015 = vsel %vm1978, %v1974, 0.0
        %2016 = vadd.xlane.f32.xlu0 %v2015
        %v2017 = vpop.xlane.xlu0 %2016
        %v2018 = vsel %vm1978, %v1975, 0.0
        %2019 = vadd.xlane.f32.xlu0 %v2018
        %v2020 = vpop.xlane.xlu0 %2019
        %v2021 = vsel %vm1978, %v1976, 0.0
        %2022 = vadd.xlane.f32.xlu0 %v2021
        %v2023 = vpop.xlane.xlu0 %2022
        %v2024 = vsel %vm1978, %v1977, 0.0
        %2025 = vadd.xlane.f32.xlu0 %v2024
        %v2026 = vpop.xlane.xlu0 %2025
        %v2027 = vld [vmem:[#allocation5] sm:$0x3]
        %v2029 = vlaneseq
        %v2030 = vshrl.u32 %v2029, 7
        %v2031 = vsub.s32 0, %v2030
        %v2032 = vrot.slane %v2027, %v2031
        %v2033 = vlaneseq
        %v2034 = vshrl.u32 %v2033, 7
        %v2035 = vsub.s32 1, %v2034
        %v2036 = vrot.slane %v2027, %v2035
        %v2039 = vadd.f32 %v1981, %v2032
        %v2040 = vadd.f32 %v1981, %v2036
        %v2041 = vadd.f32 %v1984, %v2032
        %v2042 = vadd.f32 %v1984, %v2036
        %v2043 = vadd.f32 %v1987, %v2032
        %v2044 = vadd.f32 %v1987, %v2036
        %v2045 = vadd.f32 %v1990, %v2032
        %v2046 = vadd.f32 %v1990, %v2036
        %v2047 = vadd.f32 %v1993, %v2032
        %v2048 = vadd.f32 %v1993, %v2036
        %v2049 = vadd.f32 %v1996, %v2032
        %v2050 = vadd.f32 %v1996, %v2036
        %v2051 = vadd.f32 %v1999, %v2032
        %v2052 = vadd.f32 %v1999, %v2036
        %v2053 = vadd.f32 %v2002, %v2032
        %v2054 = vadd.f32 %v2002, %v2036
        %v2055 = vadd.f32 %v2005, %v2032
        %v2056 = vadd.f32 %v2005, %v2036
        %v2057 = vadd.f32 %v2008, %v2032
        %v2058 = vadd.f32 %v2008, %v2036
        %v2059 = vadd.f32 %v2011, %v2032
        %v2060 = vadd.f32 %v2011, %v2036
        %v2061 = vadd.f32 %v2014, %v2032
        %v2062 = vadd.f32 %v2014, %v2036
        %v2063 = vadd.f32 %v2017, %v2032
        %v2064 = vadd.f32 %v2017, %v2036
        %v2065 = vadd.f32 %v2020, %v2032
        %v2066 = vadd.f32 %v2020, %v2036
        %v2067 = vadd.f32 %v2023, %v2032
        %v2068 = vadd.f32 %v2023, %v2036
        %v2069 = vadd.f32 %v2026, %v2032
        %v2070 = vadd.f32 %v2026, %v2036
        %vm2071 = vcmp.gt.f32.partialorder %v2039, 0.0
        %vm2072 = vcmp.gt.f32.partialorder %v2040, 0.0
        %vm2073 = vcmp.gt.f32.partialorder %v2041, 0.0
        %vm2074 = vcmp.gt.f32.partialorder %v2042, 0.0
        %vm2075 = vcmp.gt.f32.partialorder %v2043, 0.0
        %vm2076 = vcmp.gt.f32.partialorder %v2044, 0.0
        %vm2077 = vcmp.gt.f32.partialorder %v2045, 0.0
        %vm2078 = vcmp.gt.f32.partialorder %v2046, 0.0
        %vm2079 = vcmp.gt.f32.partialorder %v2047, 0.0
        %vm2080 = vcmp.gt.f32.partialorder %v2048, 0.0
        %vm2081 = vcmp.gt.f32.partialorder %v2049, 0.0
        %vm2082 = vcmp.gt.f32.partialorder %v2050, 0.0
        %vm2083 = vcmp.gt.f32.partialorder %v2051, 0.0
        %vm2084 = vcmp.gt.f32.partialorder %v2052, 0.0
        %vm2085 = vcmp.gt.f32.partialorder %v2053, 0.0
        %vm2086 = vcmp.gt.f32.partialorder %v2054, 0.0
        %vm2087 = vcmp.gt.f32.partialorder %v2055, 0.0
        %vm2088 = vcmp.gt.f32.partialorder %v2056, 0.0
        %vm2089 = vcmp.gt.f32.partialorder %v2057, 0.0
        %vm2090 = vcmp.gt.f32.partialorder %v2058, 0.0
        %vm2091 = vcmp.gt.f32.partialorder %v2059, 0.0
        %vm2092 = vcmp.gt.f32.partialorder %v2060, 0.0
        %vm2093 = vcmp.gt.f32.partialorder %v2061, 0.0
        %vm2094 = vcmp.gt.f32.partialorder %v2062, 0.0
        %vm2095 = vcmp.gt.f32.partialorder %v2063, 0.0
        %vm2096 = vcmp.gt.f32.partialorder %v2064, 0.0
        %vm2097 = vcmp.gt.f32.partialorder %v2065, 0.0
        %vm2098 = vcmp.gt.f32.partialorder %v2066, 0.0
        %vm2099 = vcmp.gt.f32.partialorder %v2067, 0.0
        %vm2100 = vcmp.gt.f32.partialorder %v2068, 0.0
        %vm2101 = vcmp.gt.f32.partialorder %v2069, 0.0
        %vm2102 = vcmp.gt.f32.partialorder %v2070, 0.0
        %v2103 = vmul.f32 %v2039, 0.2
        %v2104 = vmul.f32 %v2040, 0.2
        %v2105 = vmul.f32 %v2041, 0.2
        %v2106 = vmul.f32 %v2042, 0.2
        %v2107 = vmul.f32 %v2043, 0.2
        %v2108 = vmul.f32 %v2044, 0.2
        %v2109 = vmul.f32 %v2045, 0.2
        %v2110 = vmul.f32 %v2046, 0.2
        %v2111 = vmul.f32 %v2047, 0.2
        %v2112 = vmul.f32 %v2048, 0.2
        %v2113 = vmul.f32 %v2049, 0.2
        %v2114 = vmul.f32 %v2050, 0.2
        %v2115 = vmul.f32 %v2051, 0.2
        %v2116 = vmul.f32 %v2052, 0.2
        %v2117 = vmul.f32 %v2053, 0.2
        %v2118 = vmul.f32 %v2054, 0.2
        %v2119 = vmul.f32 %v2055, 0.2
        %v2120 = vmul.f32 %v2056, 0.2
        %v2121 = vmul.f32 %v2057, 0.2
        %v2122 = vmul.f32 %v2058, 0.2
        %v2123 = vmul.f32 %v2059, 0.2
        %v2124 = vmul.f32 %v2060, 0.2
        %v2125 = vmul.f32 %v2061, 0.2
        %v2126 = vmul.f32 %v2062, 0.2
        %v2127 = vmul.f32 %v2063, 0.2
        %v2128 = vmul.f32 %v2064, 0.2
        %v2129 = vmul.f32 %v2065, 0.2
        %v2130 = vmul.f32 %v2066, 0.2
        %v2131 = vmul.f32 %v2067, 0.2
        %v2132 = vmul.f32 %v2068, 0.2
        %v2133 = vmul.f32 %v2069, 0.2
        %v2134 = vmul.f32 %v2070, 0.2
        %v2135 = vsel %vm2071, %v2039, %v2103
        %v2136 = vsel %vm2072, %v2040, %v2104
        %v2137 = vsel %vm2073, %v2041, %v2105
        %v2138 = vsel %vm2074, %v2042, %v2106
        %v2139 = vsel %vm2075, %v2043, %v2107
        %v2140 = vsel %vm2076, %v2044, %v2108
        %v2141 = vsel %vm2077, %v2045, %v2109
        %v2142 = vsel %vm2078, %v2046, %v2110
        %v2143 = vsel %vm2079, %v2047, %v2111
        %v2144 = vsel %vm2080, %v2048, %v2112
        %v2145 = vsel %vm2081, %v2049, %v2113
        %v2146 = vsel %vm2082, %v2050, %v2114
        %v2147 = vsel %vm2083, %v2051, %v2115
        %v2148 = vsel %vm2084, %v2052, %v2116
        %v2149 = vsel %vm2085, %v2053, %v2117
        %v2150 = vsel %vm2086, %v2054, %v2118
        %v2151 = vsel %vm2087, %v2055, %v2119
        %v2152 = vsel %vm2088, %v2056, %v2120
        %v2153 = vsel %vm2089, %v2057, %v2121
        %v2154 = vsel %vm2090, %v2058, %v2122
        %v2155 = vsel %vm2091, %v2059, %v2123
        %v2156 = vsel %vm2092, %v2060, %v2124
        %v2157 = vsel %vm2093, %v2061, %v2125
        %v2158 = vsel %vm2094, %v2062, %v2126
        %v2159 = vsel %vm2095, %v2063, %v2127
        %v2160 = vsel %vm2096, %v2064, %v2128
        %v2161 = vsel %vm2097, %v2065, %v2129
        %v2162 = vsel %vm2098, %v2066, %v2130
        %v2163 = vsel %vm2099, %v2067, %v2131
        %v2164 = vsel %vm2100, %v2068, %v2132
        %v2165 = vsel %vm2101, %v2069, %v2133
        %v2166 = vsel %vm2102, %v2070, %v2134
        %vm2167 = vcmp.gt.bf16.partialorder %v891, 0
        %vm2168 = vcmp.gt.bf16.partialorder %v892, 0
        %vm2169 = vcmp.gt.bf16.partialorder %v893, 0
        %vm2170 = vcmp.gt.bf16.partialorder %v894, 0
        %vm2171 = vcmp.gt.bf16.partialorder %v895, 0
        %vm2172 = vcmp.gt.bf16.partialorder %v896, 0
        %vm2173 = vcmp.gt.bf16.partialorder %v897, 0
        %vm2174 = vcmp.gt.bf16.partialorder %v898, 0
        %vm2175 = vcmp.gt.bf16.partialorder %v899, 0
        %vm2176 = vcmp.gt.bf16.partialorder %v900, 0
        %vm2177 = vcmp.gt.bf16.partialorder %v901, 0
        %vm2178 = vcmp.gt.bf16.partialorder %v902, 0
        %vm2179 = vcmp.gt.bf16.partialorder %v903, 0
        %vm2180 = vcmp.gt.bf16.partialorder %v904, 0
        %vm2181 = vcmp.gt.bf16.partialorder %v905, 0
        %vm2182 = vcmp.gt.bf16.partialorder %v906, 0
        %v2183 = vsel %vm2167, 65537, 0
        %v2184 = vsel %vm2168, 65537, 0
        %v2185 = vsel %vm2169, 65537, 0
        %v2186 = vsel %vm2170, 65537, 0
        %v2187 = vsel %vm2171, 65537, 0
        %v2188 = vsel %vm2172, 65537, 0
        %v2189 = vsel %vm2173, 65537, 0
        %v2190 = vsel %vm2174, 65537, 0
        %v2191 = vsel %vm2175, 65537, 0
        %v2192 = vsel %vm2176, 65537, 0
        %v2193 = vsel %vm2177, 65537, 0
        %v2194 = vsel %vm2178, 65537, 0
        %v2195 = vsel %vm2179, 65537, 0
        %v2196 = vsel %vm2180, 65537, 0
        %v2197 = vsel %vm2181, 65537, 0
        %v2198 = vsel %vm2182, 65537, 0
        %v2199 = vunpack.c.l.b16 %v2183
        %v2200 = vunpack.c.h.b16 %v2183
        %v2201 = vunpack.c.l.b16 %v2184
        %v2202 = vunpack.c.h.b16 %v2184
        %v2203 = vunpack.c.l.b16 %v2185
        %v2204 = vunpack.c.h.b16 %v2185
        %v2205 = vunpack.c.l.b16 %v2186
        %v2206 = vunpack.c.h.b16 %v2186
        %v2207 = vunpack.c.l.b16 %v2187
        %v2208 = vunpack.c.h.b16 %v2187
        %v2209 = vunpack.c.l.b16 %v2188
        %v2210 = vunpack.c.h.b16 %v2188
        %v2211 = vunpack.c.l.b16 %v2189
        %v2212 = vunpack.c.h.b16 %v2189
        %v2213 = vunpack.c.l.b16 %v2190
        %v2214 = vunpack.c.h.b16 %v2190
        %v2215 = vunpack.c.l.b16 %v2191
        %v2216 = vunpack.c.h.b16 %v2191
        %v2217 = vunpack.c.l.b16 %v2192
        %v2218 = vunpack.c.h.b16 %v2192
        %v2219 = vunpack.c.l.b16 %v2193
        %v2220 = vunpack.c.h.b16 %v2193
        %v2221 = vunpack.c.l.b16 %v2194
        %v2222 = vunpack.c.h.b16 %v2194
        %v2223 = vunpack.c.l.b16 %v2195
        %v2224 = vunpack.c.h.b16 %v2195
        %v2225 = vunpack.c.l.b16 %v2196
        %v2226 = vunpack.c.h.b16 %v2196
        %v2227 = vunpack.c.l.b16 %v2197
        %v2228 = vunpack.c.h.b16 %v2197
        %v2229 = vunpack.c.l.b16 %v2198
        %v2230 = vunpack.c.h.b16 %v2198
        %vm2231 = vcmp.ne.s32.totalorder %v2199, 0
        %vm2232 = vcmp.ne.s32.totalorder %v2200, 0
        %vm2233 = vcmp.ne.s32.totalorder %v2201, 0
        %vm2234 = vcmp.ne.s32.totalorder %v2202, 0
        %vm2235 = vcmp.ne.s32.totalorder %v2203, 0
        %vm2236 = vcmp.ne.s32.totalorder %v2204, 0
        %vm2237 = vcmp.ne.s32.totalorder %v2205, 0
        %vm2238 = vcmp.ne.s32.totalorder %v2206, 0
        %vm2239 = vcmp.ne.s32.totalorder %v2207, 0
        %vm2240 = vcmp.ne.s32.totalorder %v2208, 0
        %vm2241 = vcmp.ne.s32.totalorder %v2209, 0
        %vm2242 = vcmp.ne.s32.totalorder %v2210, 0
        %vm2243 = vcmp.ne.s32.totalorder %v2211, 0
        %vm2244 = vcmp.ne.s32.totalorder %v2212, 0
        %vm2245 = vcmp.ne.s32.totalorder %v2213, 0
        %vm2246 = vcmp.ne.s32.totalorder %v2214, 0
        %vm2247 = vcmp.ne.s32.totalorder %v2215, 0
        %vm2248 = vcmp.ne.s32.totalorder %v2216, 0
        %vm2249 = vcmp.ne.s32.totalorder %v2217, 0
        %vm2250 = vcmp.ne.s32.totalorder %v2218, 0
        %vm2251 = vcmp.ne.s32.totalorder %v2219, 0
        %vm2252 = vcmp.ne.s32.totalorder %v2220, 0
        %vm2253 = vcmp.ne.s32.totalorder %v2221, 0
        %vm2254 = vcmp.ne.s32.totalorder %v2222, 0
        %vm2255 = vcmp.ne.s32.totalorder %v2223, 0
        %vm2256 = vcmp.ne.s32.totalorder %v2224, 0
        %vm2257 = vcmp.ne.s32.totalorder %v2225, 0
        %vm2258 = vcmp.ne.s32.totalorder %v2226, 0
        %vm2259 = vcmp.ne.s32.totalorder %v2227, 0
        %vm2260 = vcmp.ne.s32.totalorder %v2228, 0
        %vm2261 = vcmp.ne.s32.totalorder %v2229, 0
        %vm2262 = vcmp.ne.s32.totalorder %v2230, 0
        %v2263 = vsel %vm2231, %v2135, -1e+09
        %v2264 = vsel %vm2232, %v2136, -1e+09
        %v2265 = vsel %vm2233, %v2137, -1e+09
        %v2266 = vsel %vm2234, %v2138, -1e+09
        %v2267 = vsel %vm2235, %v2139, -1e+09
        %v2268 = vsel %vm2236, %v2140, -1e+09
        %v2269 = vsel %vm2237, %v2141, -1e+09
        %v2270 = vsel %vm2238, %v2142, -1e+09
        %v2271 = vsel %vm2239, %v2143, -1e+09
        %v2272 = vsel %vm2240, %v2144, -1e+09
        %v2273 = vsel %vm2241, %v2145, -1e+09
        %v2274 = vsel %vm2242, %v2146, -1e+09
        %v2275 = vsel %vm2243, %v2147, -1e+09
        %v2276 = vsel %vm2244, %v2148, -1e+09
        %v2277 = vsel %vm2245, %v2149, -1e+09
        %v2278 = vsel %vm2246, %v2150, -1e+09
        %v2279 = vsel %vm2247, %v2151, -1e+09
        %v2280 = vsel %vm2248, %v2152, -1e+09
        %v2281 = vsel %vm2249, %v2153, -1e+09
        %v2282 = vsel %vm2250, %v2154, -1e+09
        %v2283 = vsel %vm2251, %v2155, -1e+09
        %v2284 = vsel %vm2252, %v2156, -1e+09
        %v2285 = vsel %vm2253, %v2157, -1e+09
        %v2286 = vsel %vm2254, %v2158, -1e+09
        %v2287 = vsel %vm2255, %v2159, -1e+09
        %v2288 = vsel %vm2256, %v2160, -1e+09
        %v2289 = vsel %vm2257, %v2161, -1e+09
        %v2290 = vsel %vm2258, %v2162, -1e+09
        %v2291 = vsel %vm2259, %v2163, -1e+09
        %v2292 = vsel %vm2260, %v2164, -1e+09
        %v2293 = vsel %vm2261, %v2165, -1e+09
        %v2294 = vsel %vm2262, %v2166, -1e+09
        %v2295 = vmax.f32 %v2263, %v2264
        %2296 = vmax.xlane.f32.xlu0 %v2295
        %v2297 = vpop.xlane.xlu0 %2296
        %v2298 = vmax.f32 %v2265, %v2266
        %2299 = vmax.xlane.f32.xlu0 %v2298
        %v2300 = vpop.xlane.xlu0 %2299
        %v2301 = vmax.f32 %v2267, %v2268
        %2302 = vmax.xlane.f32.xlu0 %v2301
        %v2303 = vpop.xlane.xlu0 %2302
        %v2304 = vmax.f32 %v2269, %v2270
        %2305 = vmax.xlane.f32.xlu0 %v2304
        %v2306 = vpop.xlane.xlu0 %2305
        %v2307 = vmax.f32 %v2271, %v2272
        %2308 = vmax.xlane.f32.xlu0 %v2307
        %v2309 = vpop.xlane.xlu0 %2308
        %v2310 = vmax.f32 %v2273, %v2274
        %2311 = vmax.xlane.f32.xlu0 %v2310
        %v2312 = vpop.xlane.xlu0 %2311
        %v2313 = vmax.f32 %v2275, %v2276
        %2314 = vmax.xlane.f32.xlu0 %v2313
        %v2315 = vpop.xlane.xlu0 %2314
        %v2316 = vmax.f32 %v2277, %v2278
        %2317 = vmax.xlane.f32.xlu0 %v2316
        %v2318 = vpop.xlane.xlu0 %2317
        %v2319 = vmax.f32 %v2279, %v2280
        %2320 = vmax.xlane.f32.xlu0 %v2319
        %v2321 = vpop.xlane.xlu0 %2320
        %v2322 = vmax.f32 %v2281, %v2282
        %2323 = vmax.xlane.f32.xlu0 %v2322
        %v2324 = vpop.xlane.xlu0 %2323
        %v2325 = vmax.f32 %v2283, %v2284
        %2326 = vmax.xlane.f32.xlu0 %v2325
        %v2327 = vpop.xlane.xlu0 %2326
        %v2328 = vmax.f32 %v2285, %v2286
        %2329 = vmax.xlane.f32.xlu0 %v2328
        %v2330 = vpop.xlane.xlu0 %2329
        %v2331 = vmax.f32 %v2287, %v2288
        %2332 = vmax.xlane.f32.xlu0 %v2331
        %v2333 = vpop.xlane.xlu0 %2332
        %v2334 = vmax.f32 %v2289, %v2290
        %2335 = vmax.xlane.f32.xlu0 %v2334
        %v2336 = vpop.xlane.xlu0 %2335
        %v2337 = vmax.f32 %v2291, %v2292
        %2338 = vmax.xlane.f32.xlu0 %v2337
        %v2339 = vpop.xlane.xlu0 %2338
        %v2340 = vmax.f32 %v2293, %v2294
        %2341 = vmax.xlane.f32.xlu0 %v2340
        %v2342 = vpop.xlane.xlu0 %2341
        %v2343 = vsub.f32 %v2263, %v2297
        %v2344 = vsub.f32 %v2264, %v2297
        %v2345 = vsub.f32 %v2265, %v2300
        %v2346 = vsub.f32 %v2266, %v2300
        %v2347 = vsub.f32 %v2267, %v2303
        %v2348 = vsub.f32 %v2268, %v2303
        %v2349 = vsub.f32 %v2269, %v2306
        %v2350 = vsub.f32 %v2270, %v2306
        %v2351 = vsub.f32 %v2271, %v2309
        %v2352 = vsub.f32 %v2272, %v2309
        %v2353 = vsub.f32 %v2273, %v2312
        %v2354 = vsub.f32 %v2274, %v2312
        %v2355 = vsub.f32 %v2275, %v2315
        %v2356 = vsub.f32 %v2276, %v2315
        %v2357 = vsub.f32 %v2277, %v2318
        %v2358 = vsub.f32 %v2278, %v2318
        %v2359 = vsub.f32 %v2279, %v2321
        %v2360 = vsub.f32 %v2280, %v2321
        %v2361 = vsub.f32 %v2281, %v2324
        %v2362 = vsub.f32 %v2282, %v2324
        %v2363 = vsub.f32 %v2283, %v2327
        %v2364 = vsub.f32 %v2284, %v2327
        %v2365 = vsub.f32 %v2285, %v2330
        %v2366 = vsub.f32 %v2286, %v2330
        %v2367 = vsub.f32 %v2287, %v2333
        %v2368 = vsub.f32 %v2288, %v2333
        %v2369 = vsub.f32 %v2289, %v2336
        %v2370 = vsub.f32 %v2290, %v2336
        %v2371 = vsub.f32 %v2291, %v2339
        %v2372 = vsub.f32 %v2292, %v2339
        %v2373 = vsub.f32 %v2293, %v2342
        %v2374 = vsub.f32 %v2294, %v2342
        %v2375 = vmul.f32 %v2343, 1.442695
        %v2376 = vpow.pop %v2375
        %v2377 = vmul.f32 %v2344, 1.442695
        %v2378 = vpow.pop %v2377
        %v2379 = vmul.f32 %v2345, 1.442695
        %v2380 = vpow.pop %v2379
        %v2381 = vmul.f32 %v2346, 1.442695
        %v2382 = vpow.pop %v2381
        %v2383 = vmul.f32 %v2347, 1.442695
        %v2384 = vpow.pop %v2383
        %v2385 = vmul.f32 %v2348, 1.442695
        %v2386 = vpow.pop %v2385
        %v2387 = vmul.f32 %v2349, 1.442695
        %v2388 = vpow.pop %v2387
        %v2389 = vmul.f32 %v2350, 1.442695
        %v2390 = vpow.pop %v2389
        %v2391 = vmul.f32 %v2351, 1.442695
        %v2392 = vpow.pop %v2391
        %v2393 = vmul.f32 %v2352, 1.442695
        %v2394 = vpow.pop %v2393
        %v2395 = vmul.f32 %v2353, 1.442695
        %v2396 = vpow.pop %v2395
        %v2397 = vmul.f32 %v2354, 1.442695
        %v2398 = vpow.pop %v2397
        %v2399 = vmul.f32 %v2355, 1.442695
        %v2400 = vpow.pop %v2399
        %v2401 = vmul.f32 %v2356, 1.442695
        %v2402 = vpow.pop %v2401
        %v2403 = vmul.f32 %v2357, 1.442695
        %v2404 = vpow.pop %v2403
        %v2405 = vmul.f32 %v2358, 1.442695
        %v2406 = vpow.pop %v2405
        %v2407 = vmul.f32 %v2359, 1.442695
        %v2408 = vpow.pop %v2407
        %v2409 = vmul.f32 %v2360, 1.442695
        %v2410 = vpow.pop %v2409
        %v2411 = vmul.f32 %v2361, 1.442695
        %v2412 = vpow.pop %v2411
        %v2413 = vmul.f32 %v2362, 1.442695
        %v2414 = vpow.pop %v2413
        %v2415 = vmul.f32 %v2363, 1.442695
        %v2416 = vpow.pop %v2415
        %v2417 = vmul.f32 %v2364, 1.442695
        %v2418 = vpow.pop %v2417
        %v2419 = vmul.f32 %v2365, 1.442695
        %v2420 = vpow.pop %v2419
        %v2421 = vmul.f32 %v2366, 1.442695
        %v2422 = vpow.pop %v2421
        %v2423 = vmul.f32 %v2367, 1.442695
        %v2424 = vpow.pop %v2423
        %v2425 = vmul.f32 %v2368, 1.442695
        %v2426 = vpow.pop %v2425
        %v2427 = vmul.f32 %v2369, 1.442695
        %v2428 = vpow.pop %v2427
        %v2429 = vmul.f32 %v2370, 1.442695
        %v2430 = vpow.pop %v2429
        %v2431 = vmul.f32 %v2371, 1.442695
        %v2432 = vpow.pop %v2431
        %v2433 = vmul.f32 %v2372, 1.442695
        %v2434 = vpow.pop %v2433
        %v2435 = vmul.f32 %v2373, 1.442695
        %v2436 = vpow.pop %v2435
        %v2437 = vmul.f32 %v2374, 1.442695
        %v2438 = vpow.pop %v2437
        %v2439 = vsel %vm2231, %v2376, 0.0
        %v2440 = vsel %vm2232, %v2378, 0.0
        %v2441 = vsel %vm2233, %v2380, 0.0
        %v2442 = vsel %vm2234, %v2382, 0.0
        %v2443 = vsel %vm2235, %v2384, 0.0
        %v2444 = vsel %vm2236, %v2386, 0.0
        %v2445 = vsel %vm2237, %v2388, 0.0
        %v2446 = vsel %vm2238, %v2390, 0.0
        %v2447 = vsel %vm2239, %v2392, 0.0
        %v2448 = vsel %vm2240, %v2394, 0.0
        %v2449 = vsel %vm2241, %v2396, 0.0
        %v2450 = vsel %vm2242, %v2398, 0.0
        %v2451 = vsel %vm2243, %v2400, 0.0
        %v2452 = vsel %vm2244, %v2402, 0.0
        %v2453 = vsel %vm2245, %v2404, 0.0
        %v2454 = vsel %vm2246, %v2406, 0.0
        %v2455 = vsel %vm2247, %v2408, 0.0
        %v2456 = vsel %vm2248, %v2410, 0.0
        %v2457 = vsel %vm2249, %v2412, 0.0
        %v2458 = vsel %vm2250, %v2414, 0.0
        %v2459 = vsel %vm2251, %v2416, 0.0
        %v2460 = vsel %vm2252, %v2418, 0.0
        %v2461 = vsel %vm2253, %v2420, 0.0
        %v2462 = vsel %vm2254, %v2422, 0.0
        %v2463 = vsel %vm2255, %v2424, 0.0
        %v2464 = vsel %vm2256, %v2426, 0.0
        %v2465 = vsel %vm2257, %v2428, 0.0
        %v2466 = vsel %vm2258, %v2430, 0.0
        %v2467 = vsel %vm2259, %v2432, 0.0
        %v2468 = vsel %vm2260, %v2434, 0.0
        %v2469 = vsel %vm2261, %v2436, 0.0
        %v2470 = vsel %vm2262, %v2438, 0.0
        %v2471 = vadd.f32 %v2439, %v2440
        %2472 = vadd.xlane.f32.xlu0 %v2471
        %v2473 = vpop.xlane.xlu0 %2472
        %v2474 = vadd.f32 %v2441, %v2442
        %2475 = vadd.xlane.f32.xlu0 %v2474
        %v2476 = vpop.xlane.xlu0 %2475
        %v2477 = vadd.f32 %v2443, %v2444
        %2478 = vadd.xlane.f32.xlu0 %v2477
        %v2479 = vpop.xlane.xlu0 %2478
        %v2480 = vadd.f32 %v2445, %v2446
        %2481 = vadd.xlane.f32.xlu0 %v2480
        %v2482 = vpop.xlane.xlu0 %2481
        %v2483 = vadd.f32 %v2447, %v2448
        %2484 = vadd.xlane.f32.xlu0 %v2483
        %v2485 = vpop.xlane.xlu0 %2484
        %v2486 = vadd.f32 %v2449, %v2450
        %2487 = vadd.xlane.f32.xlu0 %v2486
        %v2488 = vpop.xlane.xlu0 %2487
        %v2489 = vadd.f32 %v2451, %v2452
        %2490 = vadd.xlane.f32.xlu0 %v2489
        %v2491 = vpop.xlane.xlu0 %2490
        %v2492 = vadd.f32 %v2453, %v2454
        %2493 = vadd.xlane.f32.xlu0 %v2492
        %v2494 = vpop.xlane.xlu0 %2493
        %v2495 = vadd.f32 %v2455, %v2456
        %2496 = vadd.xlane.f32.xlu0 %v2495
        %v2497 = vpop.xlane.xlu0 %2496
        %v2498 = vadd.f32 %v2457, %v2458
        %2499 = vadd.xlane.f32.xlu0 %v2498
        %v2500 = vpop.xlane.xlu0 %2499
        %v2501 = vadd.f32 %v2459, %v2460
        %2502 = vadd.xlane.f32.xlu0 %v2501
        %v2503 = vpop.xlane.xlu0 %2502
        %v2504 = vadd.f32 %v2461, %v2462
        %2505 = vadd.xlane.f32.xlu0 %v2504
        %v2506 = vpop.xlane.xlu0 %2505
        %v2507 = vadd.f32 %v2463, %v2464
        %2508 = vadd.xlane.f32.xlu0 %v2507
        %v2509 = vpop.xlane.xlu0 %2508
        %v2510 = vadd.f32 %v2465, %v2466
        %2511 = vadd.xlane.f32.xlu0 %v2510
        %v2512 = vpop.xlane.xlu0 %2511
        %v2513 = vadd.f32 %v2467, %v2468
        %2514 = vadd.xlane.f32.xlu0 %v2513
        %v2515 = vpop.xlane.xlu0 %2514
        %v2516 = vadd.f32 %v2469, %v2470
        %2517 = vadd.xlane.f32.xlu0 %v2516
        %v2518 = vpop.xlane.xlu0 %2517
        %vm2519 = vcmp.gt.f32.partialorder %v2473, 0.0
        %vm2520 = vcmp.gt.f32.partialorder %v2476, 0.0
        %vm2521 = vcmp.gt.f32.partialorder %v2479, 0.0
        %vm2522 = vcmp.gt.f32.partialorder %v2482, 0.0
        %vm2523 = vcmp.gt.f32.partialorder %v2485, 0.0
        %vm2524 = vcmp.gt.f32.partialorder %v2488, 0.0
        %vm2525 = vcmp.gt.f32.partialorder %v2491, 0.0
        %vm2526 = vcmp.gt.f32.partialorder %v2494, 0.0
        %vm2527 = vcmp.gt.f32.partialorder %v2497, 0.0
        %vm2528 = vcmp.gt.f32.partialorder %v2500, 0.0
        %vm2529 = vcmp.gt.f32.partialorder %v2503, 0.0
        %vm2530 = vcmp.gt.f32.partialorder %v2506, 0.0
        %vm2531 = vcmp.gt.f32.partialorder %v2509, 0.0
        %vm2532 = vcmp.gt.f32.partialorder %v2512, 0.0
        %vm2533 = vcmp.gt.f32.partialorder %v2515, 0.0
        %vm2534 = vcmp.gt.f32.partialorder %v2518, 0.0
        %v2535 = vsel %vm2519, %v2473, 1.0
        %v2536 = vsel %vm2520, %v2476, 1.0
        %v2537 = vsel %vm2521, %v2479, 1.0
        %v2538 = vsel %vm2522, %v2482, 1.0
        %v2539 = vsel %vm2523, %v2485, 1.0
        %v2540 = vsel %vm2524, %v2488, 1.0
        %v2541 = vsel %vm2525, %v2491, 1.0
        %v2542 = vsel %vm2526, %v2494, 1.0
        %v2543 = vsel %vm2527, %v2497, 1.0
        %v2544 = vsel %vm2528, %v2500, 1.0
        %v2545 = vsel %vm2529, %v2503, 1.0
        %v2546 = vsel %vm2530, %v2506, 1.0
        %v2547 = vsel %vm2531, %v2509, 1.0
        %v2548 = vsel %vm2532, %v2512, 1.0
        %v2549 = vsel %vm2533, %v2515, 1.0
        %v2550 = vsel %vm2534, %v2518, 1.0
        %v2551 = vrcp.pop %v2535
        %v2552 = vrcp.pop %v2536
        %v2553 = vrcp.pop %v2537
        %v2554 = vrcp.pop %v2538
        %v2555 = vrcp.pop %v2539
        %v2556 = vrcp.pop %v2540
        %v2557 = vrcp.pop %v2541
        %v2558 = vrcp.pop %v2542
        %v2559 = vrcp.pop %v2543
        %v2560 = vrcp.pop %v2544
        %v2561 = vrcp.pop %v2545
        %v2562 = vrcp.pop %v2546
        %v2563 = vrcp.pop %v2547
        %v2564 = vrcp.pop %v2548
        %v2565 = vrcp.pop %v2549
        %v2566 = vrcp.pop %v2550
        %v2567 = vmul.f32 %v2439, %v2551
        %v2568 = vmul.f32 %v2440, %v2551
        %v2569 = vmul.f32 %v2441, %v2552
        %v2570 = vmul.f32 %v2442, %v2552
        %v2571 = vmul.f32 %v2443, %v2553
        %v2572 = vmul.f32 %v2444, %v2553
        %v2573 = vmul.f32 %v2445, %v2554
        %v2574 = vmul.f32 %v2446, %v2554
        %v2575 = vmul.f32 %v2447, %v2555
        %v2576 = vmul.f32 %v2448, %v2555
        %v2577 = vmul.f32 %v2449, %v2556
        %v2578 = vmul.f32 %v2450, %v2556
        %v2579 = vmul.f32 %v2451, %v2557
        %v2580 = vmul.f32 %v2452, %v2557
        %v2581 = vmul.f32 %v2453, %v2558
        %v2582 = vmul.f32 %v2454, %v2558
        %v2583 = vmul.f32 %v2455, %v2559
        %v2584 = vmul.f32 %v2456, %v2559
        %v2585 = vmul.f32 %v2457, %v2560
        %v2586 = vmul.f32 %v2458, %v2560
        %v2587 = vmul.f32 %v2459, %v2561
        %v2588 = vmul.f32 %v2460, %v2561
        %v2589 = vmul.f32 %v2461, %v2562
        %v2590 = vmul.f32 %v2462, %v2562
        %v2591 = vmul.f32 %v2463, %v2563
        %v2592 = vmul.f32 %v2464, %v2563
        %v2593 = vmul.f32 %v2465, %v2564
        %v2594 = vmul.f32 %v2466, %v2564
        %v2595 = vmul.f32 %v2467, %v2565
        %v2596 = vmul.f32 %v2468, %v2565
        %v2597 = vmul.f32 %v2469, %v2566
        %v2598 = vmul.f32 %v2470, %v2566
        %v2599 = vpack.c.bf16 %v2569, %v2567
        %v2600 = vpack.c.bf16 %v2570, %v2568
        %v2601 = vpack.c.bf16 %v2573, %v2571
        %v2602 = vpack.c.bf16 %v2574, %v2572
        %v2603 = vpack.c.bf16 %v2577, %v2575
        %v2604 = vpack.c.bf16 %v2578, %v2576
        %v2605 = vpack.c.bf16 %v2581, %v2579
        %v2606 = vpack.c.bf16 %v2582, %v2580
        %v2607 = vpack.c.bf16 %v2585, %v2583
        %v2608 = vpack.c.bf16 %v2586, %v2584
        %v2609 = vpack.c.bf16 %v2589, %v2587
        %v2610 = vpack.c.bf16 %v2590, %v2588
        %v2611 = vpack.c.bf16 %v2593, %v2591
        %v2612 = vpack.c.bf16 %v2594, %v2592
        %v2613 = vpack.c.bf16 %v2597, %v2595
        %v2614 = vpack.c.bf16 %v2598, %v2596
        %v2615 = vld [vmem:[#allocation7] sm:$0x1]
        %v2617 = vlaneseq
        %v2618 = vshrl.u32 %v2617, 7
        %v2619 = vsub.s32 0, %v2618
        %v2620 = vrot.slane %v2615, %v2619
        %v2654 = vunpack.c.l.b16 %v955
        %v2655 = vunpack.c.l.b16 %v956
        %v2656 = vunpack.c.l.b16 %v957
        %v2657 = vunpack.c.l.b16 %v958
        %v2658 = vunpack.c.l.b16 %v959
        %v2659 = vunpack.c.l.b16 %v960
        %v2660 = vunpack.c.l.b16 %v961
        %v2661 = vunpack.c.l.b16 %v962
        %v2662 = vunpack.c.l.b16 %v963
        %v2663 = vunpack.c.l.b16 %v964
        %v2664 = vunpack.c.l.b16 %v965
        %v2665 = vunpack.c.l.b16 %v966
        %v2666 = vunpack.c.l.b16 %v967
        %v2667 = vunpack.c.l.b16 %v968
        %v2668 = vunpack.c.l.b16 %v969
        %v2669 = vunpack.c.l.b16 %v970
        %v2670 = vunpack.c.l.b16 %v971
        %v2671 = vunpack.c.l.b16 %v972
        %v2672 = vunpack.c.l.b16 %v973
        %v2673 = vunpack.c.l.b16 %v974
        %v2674 = vunpack.c.l.b16 %v975
        %v2675 = vunpack.c.l.b16 %v976
        %v2676 = vunpack.c.l.b16 %v977
        %v2677 = vunpack.c.l.b16 %v978
        %v2678 = vunpack.c.l.b16 %v979
        %v2679 = vunpack.c.l.b16 %v980
        %v2680 = vunpack.c.l.b16 %v981
        %v2681 = vunpack.c.l.b16 %v982
        %v2682 = vunpack.c.l.b16 %v983
        %v2683 = vunpack.c.l.b16 %v984
        %v2684 = vunpack.c.l.b16 %v985
        %v2685 = vunpack.c.l.b16 %v986
        %v2686 = vpack.c.b16 %v2655, %v2654
        %v2687 = vpack.c.b16 %v2657, %v2656
        %v2688 = vpack.c.b16 %v2659, %v2658
        %v2689 = vpack.c.b16 %v2661, %v2660
        %v2690 = vpack.c.b16 %v2663, %v2662
        %v2691 = vpack.c.b16 %v2665, %v2664
        %v2692 = vpack.c.b16 %v2667, %v2666
        %v2693 = vpack.c.b16 %v2669, %v2668
        %v2694 = vpack.c.b16 %v2671, %v2670
        %v2695 = vpack.c.b16 %v2673, %v2672
        %v2696 = vpack.c.b16 %v2675, %v2674
        %v2697 = vpack.c.b16 %v2677, %v2676
        %v2698 = vpack.c.b16 %v2679, %v2678
        %v2699 = vpack.c.b16 %v2681, %v2680
        %v2700 = vpack.c.b16 %v2683, %v2682
        %v2701 = vpack.c.b16 %v2685, %v2684
        %2718 = vmatprep.subr.bf16.mxu0 0
        %2719 = vmatpush1.bf16.msra.mxu0 %v2686
        %2720 = vmatprep.subr.bf16.mxu0 0
        %2721 = vmatpush1.bf16.msra.mxu0 %v2687
        %2722 = vmatprep.subr.bf16.mxu0 0
        %2723 = vmatpush1.bf16.msra.mxu0 %v2688
        %2724 = vmatprep.subr.bf16.mxu0 0
        %2725 = vmatpush1.bf16.msra.mxu0 %v2689
        %2726 = vmatprep.subr.bf16.mxu0 0
        %2727 = vmatpush1.bf16.msra.mxu0 %v2690
        %2728 = vmatprep.subr.bf16.mxu0 0
        %2729 = vmatpush1.bf16.msra.mxu0 %v2691
        %2730 = vmatprep.subr.bf16.mxu0 0
        %2731 = vmatpush1.bf16.msra.mxu0 %v2692
        %2732 = vmatprep.subr.bf16.mxu0 0
        %2733 = vmatpush1.bf16.msra.mxu0 %v2693
        %2734 = vmatprep.subr.bf16.mxu0 0
        %2735 = vmatpush1.bf16.msra.mxu0 %v2694
        %2736 = vmatprep.subr.bf16.mxu0 0
        %2737 = vmatpush1.bf16.msra.mxu0 %v2695
        %2738 = vmatprep.subr.bf16.mxu0 0
        %2739 = vmatpush1.bf16.msra.mxu0 %v2696
        %2740 = vmatprep.subr.bf16.mxu0 0
        %2741 = vmatpush1.bf16.msra.mxu0 %v2697
        %2742 = vmatprep.subr.bf16.mxu0 0
        %2743 = vmatpush1.bf16.msra.mxu0 %v2698
        %2744 = vmatprep.subr.bf16.mxu0 0
        %2745 = vmatpush1.bf16.msra.mxu0 %v2699
        %2746 = vmatprep.subr.bf16.mxu0 0
        %2747 = vmatpush1.bf16.msra.mxu0 %v2700
        %2748 = vmatprep.subr.bf16.mxu0 0
        %2749 = vmatpush1.bf16.msra.mxu0 %v2701
        %2750 = vmatprep.mubr.bf16.mxu0 %v2600
        %2751 = vmatmul.mubr.bf16.gmra.mrb[0].mxu0 %v2599
        %v2752 = vpop.f32.mrb[0].mxu0
        %v2753 = vadd.f32 %v2620, %v2752
        %v2754 = vpop.f32.mrb[0].mxu0
        %v2755 = vpop.f32.mrb[0].mxu0
        %v2756 = vadd.f32 %v2620, %v2755
        %v2757 = vpop.f32.mrb[0].mxu0
        %2758 = vmatprep.mubr.bf16.mxu0 %v2602
        %2759 = vmatmul.mubr.bf16.gmra.mrb[0].mxu0 %v2601
        %v2760 = vpop.f32.mrb[0].mxu0
        %v2761 = vadd.f32 %v2620, %v2760
        %v2762 = vpop.f32.mrb[0].mxu0
        %v2763 = vpop.f32.mrb[0].mxu0
        %v2764 = vadd.f32 %v2620, %v2763
        %v2765 = vpop.f32.mrb[0].mxu0
        %2766 = vmatprep.mubr.bf16.mxu0 %v2604
        %2767 = vmatmul.mubr.bf16.gmra.mrb[0].mxu0 %v2603
        %v2768 = vpop.f32.mrb[0].mxu0
        %v2769 = vadd.f32 %v2620, %v2768
        %v2770 = vpop.f32.mrb[0].mxu0
        %v2771 = vpop.f32.mrb[0].mxu0
        %v2772 = vadd.f32 %v2620, %v2771
        %v2773 = vpop.f32.mrb[0].mxu0
        %2774 = vmatprep.mubr.bf16.mxu0 %v2606
        %2775 = vmatmul.mubr.bf16.gmra.mrb[0].mxu0 %v2605
        %v2776 = vpop.f32.mrb[0].mxu0
        %v2777 = vadd.f32 %v2620, %v2776
        %v2778 = vpop.f32.mrb[0].mxu0
        %v2779 = vpop.f32.mrb[0].mxu0
        %v2780 = vadd.f32 %v2620, %v2779
        %v2781 = vpop.f32.mrb[0].mxu0
        %2782 = vmatprep.mubr.bf16.mxu0 %v2608
        %2783 = vmatmul.mubr.bf16.gmra.mrb[0].mxu0 %v2607
        %v2784 = vpop.f32.mrb[0].mxu0
        %v2785 = vadd.f32 %v2620, %v2784
        %v2786 = vpop.f32.mrb[0].mxu0
        %v2787 = vpop.f32.mrb[0].mxu0
        %v2788 = vadd.f32 %v2620, %v2787
        %v2789 = vpop.f32.mrb[0].mxu0
        %2790 = vmatprep.mubr.bf16.mxu0 %v2610
        %2791 = vmatmul.mubr.bf16.gmra.mrb[0].mxu0 %v2609
        %v2792 = vpop.f32.mrb[0].mxu0
        %v2793 = vadd.f32 %v2620, %v2792
        %v2794 = vpop.f32.mrb[0].mxu0
        %v2795 = vpop.f32.mrb[0].mxu0
        %v2796 = vadd.f32 %v2620, %v2795
        %v2797 = vpop.f32.mrb[0].mxu0
        %2798 = vmatprep.mubr.bf16.mxu0 %v2612
        %2799 = vmatmul.mubr.bf16.gmra.mrb[0].mxu0 %v2611
        %v2800 = vpop.f32.mrb[0].mxu0
        %v2801 = vadd.f32 %v2620, %v2800
        %v2802 = vpop.f32.mrb[0].mxu0
        %v2803 = vpop.f32.mrb[0].mxu0
        %v2804 = vadd.f32 %v2620, %v2803
        %v2805 = vpop.f32.mrb[0].mxu0
        %2806 = vmatprep.mubr.bf16.mxu0 %v2614
        %2807 = vmatmul.mubr.bf16.gmra.mrb[0].mxu0 %v2613
        %v2808 = vpop.f32.mrb[0].mxu0
        %v2809 = vadd.f32 %v2620, %v2808
        %v2810 = vpop.f32.mrb[0].mxu0
        %v2811 = vpop.f32.mrb[0].mxu0
        %v2812 = vadd.f32 %v2620, %v2811
        %v2813 = vpop.f32.mrb[0].mxu0
        %2814 = vdwg.mxu0
        %v2815 = vld [vmem:[%s12] sm:$0x1]
        %v2817 = vlaneseq
        %v2818 = vshrl.u32 %v2817, 7
        %v2819 = vsub.s32 0, %v2818
        %v2820 = vrot.slane %v2815, %v2819
        %v2822 = vmul.f32 %v2753, %v2820
        %v2823 = vmul.f32 %v2756, %v2820
        %v2824 = vmul.f32 %v2761, %v2820
        %v2825 = vmul.f32 %v2764, %v2820
        %v2826 = vmul.f32 %v2769, %v2820
        %v2827 = vmul.f32 %v2772, %v2820
        %v2828 = vmul.f32 %v2777, %v2820
        %v2829 = vmul.f32 %v2780, %v2820
        %v2830 = vmul.f32 %v2785, %v2820
        %v2831 = vmul.f32 %v2788, %v2820
        %v2832 = vmul.f32 %v2793, %v2820
        %v2833 = vmul.f32 %v2796, %v2820
        %v2834 = vmul.f32 %v2801, %v2820
        %v2835 = vmul.f32 %v2804, %v2820
        %v2836 = vmul.f32 %v2809, %v2820
        %v2837 = vmul.f32 %v2812, %v2820
        %v2838 = vld [vmem:[%s13] sm:$0x1]
        %v2840 = vlaneseq
        %v2841 = vshrl.u32 %v2840, 7
        %v2842 = vsub.s32 0, %v2841
        %v2843 = vrot.slane %v2838, %v2842
        %v2845 = vadd.f32 %v2822, %v2843
        %v2846 = vadd.f32 %v2823, %v2843
        %v2847 = vadd.f32 %v2824, %v2843
        %v2848 = vadd.f32 %v2825, %v2843
        %v2849 = vadd.f32 %v2826, %v2843
        %v2850 = vadd.f32 %v2827, %v2843
        %v2851 = vadd.f32 %v2828, %v2843
        %v2852 = vadd.f32 %v2829, %v2843
        %v2853 = vadd.f32 %v2830, %v2843
        %v2854 = vadd.f32 %v2831, %v2843
        %v2855 = vadd.f32 %v2832, %v2843
        %v2856 = vadd.f32 %v2833, %v2843
        %v2857 = vadd.f32 %v2834, %v2843
        %v2858 = vadd.f32 %v2835, %v2843
        %v2859 = vadd.f32 %v2836, %v2843
        %v2860 = vadd.f32 %v2837, %v2843
        %v2861 = vmax.f32 %v2845, 0.0
        %v2862 = vmax.f32 %v2846, 0.0
        %v2863 = vmax.f32 %v2847, 0.0
        %v2864 = vmax.f32 %v2848, 0.0
        %v2865 = vmax.f32 %v2849, 0.0
        %v2866 = vmax.f32 %v2850, 0.0
        %v2867 = vmax.f32 %v2851, 0.0
        %v2868 = vmax.f32 %v2852, 0.0
        %v2869 = vmax.f32 %v2853, 0.0
        %v2870 = vmax.f32 %v2854, 0.0
        %v2871 = vmax.f32 %v2855, 0.0
        %v2872 = vmax.f32 %v2856, 0.0
        %v2873 = vmax.f32 %v2857, 0.0
        %v2874 = vmax.f32 %v2858, 0.0
        %v2875 = vmax.f32 %v2859, 0.0
        %v2876 = vmax.f32 %v2860, 0.0
        %v2877 = vld [vmem:[%s14] sm:$0x1]
        %v2879 = vlaneseq
        %v2880 = vshrl.u32 %v2879, 7
        %v2881 = vsub.s32 0, %v2880
        %v2882 = vrot.slane %v2877, %v2881
        %v2884 = vmul.f32 %v1379, %v2882
        %v2885 = vmul.f32 %v1382, %v2882
        %v2886 = vmul.f32 %v1387, %v2882
        %v2887 = vmul.f32 %v1390, %v2882
        %v2888 = vmul.f32 %v1395, %v2882
        %v2889 = vmul.f32 %v1398, %v2882
        %v2890 = vmul.f32 %v1403, %v2882
        %v2891 = vmul.f32 %v1406, %v2882
        %v2892 = vmul.f32 %v1411, %v2882
        %v2893 = vmul.f32 %v1414, %v2882
        %v2894 = vmul.f32 %v1419, %v2882
        %v2895 = vmul.f32 %v1422, %v2882
        %v2896 = vmul.f32 %v1427, %v2882
        %v2897 = vmul.f32 %v1430, %v2882
        %v2898 = vmul.f32 %v1435, %v2882
        %v2899 = vmul.f32 %v1438, %v2882
        %v2900 = vld [vmem:[%s15] sm:$0x1]
        %v2902 = vlaneseq
        %v2903 = vshrl.u32 %v2902, 7
        %v2904 = vsub.s32 0, %v2903
        %v2905 = vrot.slane %v2900, %v2904
        %v2907 = vadd.f32 %v2884, %v2905
        %v2908 = vadd.f32 %v2885, %v2905
        %v2909 = vadd.f32 %v2886, %v2905
        %v2910 = vadd.f32 %v2887, %v2905
        %v2911 = vadd.f32 %v2888, %v2905
        %v2912 = vadd.f32 %v2889, %v2905
        %v2913 = vadd.f32 %v2890, %v2905
        %v2914 = vadd.f32 %v2891, %v2905
        %v2915 = vadd.f32 %v2892, %v2905
        %v2916 = vadd.f32 %v2893, %v2905
        %v2917 = vadd.f32 %v2894, %v2905
        %v2918 = vadd.f32 %v2895, %v2905
        %v2919 = vadd.f32 %v2896, %v2905
        %v2920 = vadd.f32 %v2897, %v2905
        %v2921 = vadd.f32 %v2898, %v2905
        %v2922 = vadd.f32 %v2899, %v2905
        %v2923 = vmax.f32 %v2907, 0.0
        %v2924 = vmax.f32 %v2908, 0.0
        %v2925 = vmax.f32 %v2909, 0.0
        %v2926 = vmax.f32 %v2910, 0.0
        %v2927 = vmax.f32 %v2911, 0.0
        %v2928 = vmax.f32 %v2912, 0.0
        %v2929 = vmax.f32 %v2913, 0.0
        %v2930 = vmax.f32 %v2914, 0.0
        %v2931 = vmax.f32 %v2915, 0.0
        %v2932 = vmax.f32 %v2916, 0.0
        %v2933 = vmax.f32 %v2917, 0.0
        %v2934 = vmax.f32 %v2918, 0.0
        %v2935 = vmax.f32 %v2919, 0.0
        %v2936 = vmax.f32 %v2920, 0.0
        %v2937 = vmax.f32 %v2921, 0.0
        %v2938 = vmax.f32 %v2922, 0.0
        %v2939 = vld [vmem:[%s16] sm:$0x1]
        %v2941 = vlaneseq
        %v2942 = vshrl.u32 %v2941, 7
        %v2943 = vsub.s32 0, %v2942
        %v2944 = vrot.slane %v2939, %v2943
        %v2946 = vmul.f32 %v1923, %v2944
        %v2947 = vmul.f32 %v1924, %v2944
        %v2948 = vmul.f32 %v1925, %v2944
        %v2949 = vmul.f32 %v1926, %v2944
        %v2950 = vmul.f32 %v1927, %v2944
        %v2951 = vmul.f32 %v1928, %v2944
        %v2952 = vmul.f32 %v1929, %v2944
        %v2953 = vmul.f32 %v1930, %v2944
        %v2954 = vmul.f32 %v1931, %v2944
        %v2955 = vmul.f32 %v1932, %v2944
        %v2956 = vmul.f32 %v1933, %v2944
        %v2957 = vmul.f32 %v1934, %v2944
        %v2958 = vmul.f32 %v1935, %v2944
        %v2959 = vmul.f32 %v1936, %v2944
        %v2960 = vmul.f32 %v1937, %v2944
        %v2961 = vmul.f32 %v1938, %v2944
        %v2962 = vld [vmem:[%s17] sm:$0x1]
        %v2964 = vlaneseq
        %v2965 = vshrl.u32 %v2964, 7
        %v2966 = vsub.s32 0, %v2965
        %v2967 = vrot.slane %v2962, %v2966
        %v2969 = vadd.f32 %v2946, %v2967
        %v2970 = vadd.f32 %v2947, %v2967
        %v2971 = vadd.f32 %v2948, %v2967
        %v2972 = vadd.f32 %v2949, %v2967
        %v2973 = vadd.f32 %v2950, %v2967
        %v2974 = vadd.f32 %v2951, %v2967
        %v2975 = vadd.f32 %v2952, %v2967
        %v2976 = vadd.f32 %v2953, %v2967
        %v2977 = vadd.f32 %v2954, %v2967
        %v2978 = vadd.f32 %v2955, %v2967
        %v2979 = vadd.f32 %v2956, %v2967
        %v2980 = vadd.f32 %v2957, %v2967
        %v2981 = vadd.f32 %v2958, %v2967
        %v2982 = vadd.f32 %v2959, %v2967
        %v2983 = vadd.f32 %v2960, %v2967
        %v2984 = vadd.f32 %v2961, %v2967
        %v2985 = vmax.f32 %v2969, 0.0
        %v2986 = vmax.f32 %v2970, 0.0
        %v2987 = vmax.f32 %v2971, 0.0
        %v2988 = vmax.f32 %v2972, 0.0
        %v2989 = vmax.f32 %v2973, 0.0
        %v2990 = vmax.f32 %v2974, 0.0
        %v2991 = vmax.f32 %v2975, 0.0
        %v2992 = vmax.f32 %v2976, 0.0
        %v2993 = vmax.f32 %v2977, 0.0
        %v2994 = vmax.f32 %v2978, 0.0
        %v2995 = vmax.f32 %v2979, 0.0
        %v2996 = vmax.f32 %v2980, 0.0
        %v2997 = vmax.f32 %v2981, 0.0
        %v2998 = vmax.f32 %v2982, 0.0
        %v2999 = vmax.f32 %v2983, 0.0
        %v3000 = vmax.f32 %v2984, 0.0
        %v3001 = vpack.c.bf16 %v2862, %v2861
        %v3002 = vpack.c.bf16 %v2864, %v2863
        %v3003 = vpack.c.bf16 %v2866, %v2865
        %v3004 = vpack.c.bf16 %v2868, %v2867
        %v3005 = vpack.c.bf16 %v2870, %v2869
        %v3006 = vpack.c.bf16 %v2872, %v2871
        %v3007 = vpack.c.bf16 %v2874, %v2873
        %v3008 = vpack.c.bf16 %v2876, %v2875
        %v3009 = vld [vmem:[%s18] sm:$0xf]
        %v3010 = vld [vmem:[%s18 + $0x4] sm:$0xf]
        %v3011 = vld [vmem:[%s18 + $0x8] sm:$0xf]
        %v3012 = vld [vmem:[%s18 + $0xc] sm:$0xf]
        %v3013 = vpack.c.bf16 %v2924, %v2923
        %v3014 = vpack.c.bf16 %v2926, %v2925
        %v3015 = vpack.c.bf16 %v2928, %v2927
        %v3016 = vpack.c.bf16 %v2930, %v2929
        %v3017 = vpack.c.bf16 %v2932, %v2931
        %v3018 = vpack.c.bf16 %v2934, %v2933
        %v3019 = vpack.c.bf16 %v2936, %v2935
        %v3020 = vpack.c.bf16 %v2938, %v2937
        %v3021 = vld [vmem:[%s19] sm:$0xf]
        %v3022 = vld [vmem:[%s19 + $0x4] sm:$0xf]
        %v3023 = vld [vmem:[%s19 + $0x8] sm:$0xf]
        %v3024 = vld [vmem:[%s19 + $0xc] sm:$0xf]
        %v3029 = vunpack.c.l.b16 %v3021
        %v3030 = vunpack.c.l.b16 %v3022
        %v3031 = vunpack.c.l.b16 %v3023
        %v3032 = vunpack.c.l.b16 %v3024
        %v3033 = vpack.c.b16 %v3030, %v3029
        %v3034 = vpack.c.b16 %v3032, %v3031
        %v3038 = vsel %vm1978, %v3013, 0
        %v3041 = vsel %vm1978, %v3014, 0
        %v3044 = vsel %vm1978, %v3015, 0
        %v3047 = vsel %vm1978, %v3016, 0
        %v3050 = vsel %vm1978, %v3017, 0
        %v3053 = vsel %vm1978, %v3018, 0
        %v3056 = vsel %vm1978, %v3019, 0
        %v3059 = vsel %vm1978, %v3020, 0
        %3061 = vmatprep.subr.bf16.mxu0 0
        %3062 = vmatpush1.bf16.msra.mxu0 %v3033
        %3063 = vmatprep.subr.bf16.mxu0 0
        %3064 = vmatpush1.bf16.msra.mxu0 %v3034
        %3065 = vmatprep.subr.bf16.mxu0 0
        %3066 = vmatpush1.bf16.msra.mxu0 0
        %3067 = vmatprep.subr.bf16.mxu0 0
        %3068 = vmatpush1.bf16.msra.mxu0 0
        %3069 = vmatprep.subr.bf16.mxu0 0
        %3070 = vmatpush1.bf16.msra.mxu0 0
        %3071 = vmatprep.subr.bf16.mxu0 0
        %3072 = vmatpush1.bf16.msra.mxu0 0
        %3073 = vmatprep.subr.bf16.mxu0 0
        %3074 = vmatpush1.bf16.msra.mxu0 0
        %3075 = vmatprep.subr.bf16.mxu0 0
        %3076 = vmatpush1.bf16.msra.mxu0 0
        %3077 = vmatprep.subr.bf16.mxu0 0
        %3078 = vmatpush1.bf16.msra.mxu0 0
        %3079 = vmatprep.subr.bf16.mxu0 0
        %3080 = vmatpush1.bf16.msra.mxu0 0
        %3081 = vmatprep.subr.bf16.mxu0 0
        %3082 = vmatpush1.bf16.msra.mxu0 0
        %3083 = vmatprep.subr.bf16.mxu0 0
        %3084 = vmatpush1.bf16.msra.mxu0 0
        %3085 = vmatprep.subr.bf16.mxu0 0
        %3086 = vmatpush1.bf16.msra.mxu0 0
        %3087 = vmatprep.subr.bf16.mxu0 0
        %3088 = vmatpush1.bf16.msra.mxu0 0
        %3089 = vmatprep.subr.bf16.mxu0 0
        %3090 = vmatpush1.bf16.msra.mxu0 0
        %3091 = vmatprep.subr.bf16.mxu0 0
        %3092 = vmatpush1.bf16.msra.mxu0 0
        %3093 = vmatprep.mubr.bf16.mxu0 0
        %3094 = vmatmul.mubr.bf16.gmra.mrb[0].mxu0 %v3038
        %v3095 = vpop.f32.mrb[0].mxu0
        %v3096 = vadd.f32 0.0, %v3095
        %v3097 = vpop.f32.mrb[0].mxu0
        %v3098 = vpop.f32.mrb[0].mxu0
        %v3099 = vadd.f32 0.0, %v3098
        %v3100 = vpop.f32.mrb[0].mxu0
        %3101 = vmatprep.mubr.bf16.mxu0 0
        %3102 = vmatmul.mubr.bf16.gmra.mrb[0].mxu0 %v3041
        %v3103 = vpop.f32.mrb[0].mxu0
        %v3104 = vadd.f32 0.0, %v3103
        %v3105 = vpop.f32.mrb[0].mxu0
        %v3106 = vpop.f32.mrb[0].mxu0
        %v3107 = vadd.f32 0.0, %v3106
        %v3108 = vpop.f32.mrb[0].mxu0
        %3109 = vmatprep.mubr.bf16.mxu0 0
        %3110 = vmatmul.mubr.bf16.gmra.mrb[0].mxu0 %v3044
        %v3111 = vpop.f32.mrb[0].mxu0
        %v3112 = vadd.f32 0.0, %v3111
        %v3113 = vpop.f32.mrb[0].mxu0
        %v3114 = vpop.f32.mrb[0].mxu0
        %v3115 = vadd.f32 0.0, %v3114
        %v3116 = vpop.f32.mrb[0].mxu0
        %3117 = vmatprep.mubr.bf16.mxu0 0
        %3118 = vmatmul.mubr.bf16.gmra.mrb[0].mxu0 %v3047
        %v3119 = vpop.f32.mrb[0].mxu0
        %v3120 = vadd.f32 0.0, %v3119
        %v3121 = vpop.f32.mrb[0].mxu0
        %v3122 = vpop.f32.mrb[0].mxu0
        %v3123 = vadd.f32 0.0, %v3122
        %v3124 = vpop.f32.mrb[0].mxu0
        %3125 = vmatprep.mubr.bf16.mxu0 0
        %3126 = vmatmul.mubr.bf16.gmra.mrb[0].mxu0 %v3050
        %v3127 = vpop.f32.mrb[0].mxu0
        %v3128 = vadd.f32 0.0, %v3127
        %v3129 = vpop.f32.mrb[0].mxu0
        %v3130 = vpop.f32.mrb[0].mxu0
        %v3131 = vadd.f32 0.0, %v3130
        %v3132 = vpop.f32.mrb[0].mxu0
        %3133 = vmatprep.mubr.bf16.mxu0 0
        %3134 = vmatmul.mubr.bf16.gmra.mrb[0].mxu0 %v3053
        %v3135 = vpop.f32.mrb[0].mxu0
        %v3136 = vadd.f32 0.0, %v3135
        %v3137 = vpop.f32.mrb[0].mxu0
        %v3138 = vpop.f32.mrb[0].mxu0
        %v3139 = vadd.f32 0.0, %v3138
        %v3140 = vpop.f32.mrb[0].mxu0
        %3141 = vmatprep.mubr.bf16.mxu0 0
        %3142 = vmatmul.mubr.bf16.gmra.mrb[0].mxu0 %v3056
        %v3143 = vpop.f32.mrb[0].mxu0
        %v3144 = vadd.f32 0.0, %v3143
        %v3145 = vpop.f32.mrb[0].mxu0
        %v3146 = vpop.f32.mrb[0].mxu0
        %v3147 = vadd.f32 0.0, %v3146
        %v3148 = vpop.f32.mrb[0].mxu0
        %3149 = vmatprep.mubr.bf16.mxu0 0
        %3150 = vmatmul.mubr.bf16.gmra.mrb[0].mxu0 %v3059
        %v3151 = vpop.f32.mrb[0].mxu0
        %v3152 = vadd.f32 0.0, %v3151
        %v3153 = vpop.f32.mrb[0].mxu0
        %v3154 = vpop.f32.mrb[0].mxu0
        %v3155 = vadd.f32 0.0, %v3154
        %v3156 = vpop.f32.mrb[0].mxu0
        %3157 = vdwg.mxu0
        %v3162 = vunpack.c.l.b16 %v3009
        %v3163 = vunpack.c.l.b16 %v3010
        %v3164 = vunpack.c.l.b16 %v3011
        %v3165 = vunpack.c.l.b16 %v3012
        %v3166 = vpack.c.b16 %v3163, %v3162
        %v3167 = vpack.c.b16 %v3165, %v3164
        %v3171 = vsel %vm1978, %v3001, 0
        %v3174 = vsel %vm1978, %v3002, 0
        %v3177 = vsel %vm1978, %v3003, 0
        %v3180 = vsel %vm1978, %v3004, 0
        %v3183 = vsel %vm1978, %v3005, 0
        %v3186 = vsel %vm1978, %v3006, 0
        %v3189 = vsel %vm1978, %v3007, 0
        %v3192 = vsel %vm1978, %v3008, 0
        %3194 = vmatprep.subr.bf16.mxu0 0
        %3195 = vmatpush1.bf16.msra.mxu0 %v3166
        %3196 = vmatprep.subr.bf16.mxu0 0
        %3197 = vmatpush1.bf16.msra.mxu0 %v3167
        %3198 = vmatprep.subr.bf16.mxu0 0
        %3199 = vmatpush1.bf16.msra.mxu0 0
        %3200 = vmatprep.subr.bf16.mxu0 0
        %3201 = vmatpush1.bf16.msra.mxu0 0
        %3202 = vmatprep.subr.bf16.mxu0 0
        %3203 = vmatpush1.bf16.msra.mxu0 0
        %3204 = vmatprep.subr.bf16.mxu0 0
        %3205 = vmatpush1.bf16.msra.mxu0 0
        %3206 = vmatprep.subr.bf16.mxu0 0
        %3207 = vmatpush1.bf16.msra.mxu0 0
        %3208 = vmatprep.subr.bf16.mxu0 0
        %3209 = vmatpush1.bf16.msra.mxu0 0
        %3210 = vmatprep.subr.bf16.mxu0 0
        %3211 = vmatpush1.bf16.msra.mxu0 0
        %3212 = vmatprep.subr.bf16.mxu0 0
        %3213 = vmatpush1.bf16.msra.mxu0 0
        %3214 = vmatprep.subr.bf16.mxu0 0
        %3215 = vmatpush1.bf16.msra.mxu0 0
        %3216 = vmatprep.subr.bf16.mxu0 0
        %3217 = vmatpush1.bf16.msra.mxu0 0
        %3218 = vmatprep.subr.bf16.mxu0 0
        %3219 = vmatpush1.bf16.msra.mxu0 0
        %3220 = vmatprep.subr.bf16.mxu0 0
        %3221 = vmatpush1.bf16.msra.mxu0 0
        %3222 = vmatprep.subr.bf16.mxu0 0
        %3223 = vmatpush1.bf16.msra.mxu0 0
        %3224 = vmatprep.subr.bf16.mxu0 0
        %3225 = vmatpush1.bf16.msra.mxu0 0
        %3226 = vmatprep.mubr.bf16.mxu0 0
        %3227 = vmatmul.mubr.bf16.gmra.mrb[0].mxu0 %v3171
        %v3228 = vpop.f32.mrb[0].mxu0
        %v3229 = vadd.f32 %v3096, %v3228
        %v3230 = vpop.f32.mrb[0].mxu0
        %v3231 = vpop.f32.mrb[0].mxu0
        %v3232 = vadd.f32 %v3099, %v3231
        %v3233 = vpop.f32.mrb[0].mxu0
        %3234 = vmatprep.mubr.bf16.mxu0 0
        %3235 = vmatmul.mubr.bf16.gmra.mrb[0].mxu0 %v3174
        %v3236 = vpop.f32.mrb[0].mxu0
        %v3237 = vadd.f32 %v3104, %v3236
        %v3238 = vpop.f32.mrb[0].mxu0
        %v3239 = vpop.f32.mrb[0].mxu0
        %v3240 = vadd.f32 %v3107, %v3239
        %v3241 = vpop.f32.mrb[0].mxu0
        %3242 = vmatprep.mubr.bf16.mxu0 0
        %3243 = vmatmul.mubr.bf16.gmra.mrb[0].mxu0 %v3177
        %v3244 = vpop.f32.mrb[0].mxu0
        %v3245 = vadd.f32 %v3112, %v3244
        %v3246 = vpop.f32.mrb[0].mxu0
        %v3247 = vpop.f32.mrb[0].mxu0
        %v3248 = vadd.f32 %v3115, %v3247
        %v3249 = vpop.f32.mrb[0].mxu0
        %3250 = vmatprep.mubr.bf16.mxu0 0
        %3251 = vmatmul.mubr.bf16.gmra.mrb[0].mxu0 %v3180
        %v3252 = vpop.f32.mrb[0].mxu0
        %v3253 = vadd.f32 %v3120, %v3252
        %v3254 = vpop.f32.mrb[0].mxu0
        %v3255 = vpop.f32.mrb[0].mxu0
        %v3256 = vadd.f32 %v3123, %v3255
        %v3257 = vpop.f32.mrb[0].mxu0
        %3258 = vmatprep.mubr.bf16.mxu0 0
        %3259 = vmatmul.mubr.bf16.gmra.mrb[0].mxu0 %v3183
        %v3260 = vpop.f32.mrb[0].mxu0
        %v3261 = vadd.f32 %v3128, %v3260
        %v3262 = vpop.f32.mrb[0].mxu0
        %v3263 = vpop.f32.mrb[0].mxu0
        %v3264 = vadd.f32 %v3131, %v3263
        %v3265 = vpop.f32.mrb[0].mxu0
        %3266 = vmatprep.mubr.bf16.mxu0 0
        %3267 = vmatmul.mubr.bf16.gmra.mrb[0].mxu0 %v3186
        %v3268 = vpop.f32.mrb[0].mxu0
        %v3269 = vadd.f32 %v3136, %v3268
        %v3270 = vpop.f32.mrb[0].mxu0
        %v3271 = vpop.f32.mrb[0].mxu0
        %v3272 = vadd.f32 %v3139, %v3271
        %v3273 = vpop.f32.mrb[0].mxu0
        %3274 = vmatprep.mubr.bf16.mxu0 0
        %3275 = vmatmul.mubr.bf16.gmra.mrb[0].mxu0 %v3189
        %v3276 = vpop.f32.mrb[0].mxu0
        %v3277 = vadd.f32 %v3144, %v3276
        %v3278 = vpop.f32.mrb[0].mxu0
        %v3279 = vpop.f32.mrb[0].mxu0
        %v3280 = vadd.f32 %v3147, %v3279
        %v3281 = vpop.f32.mrb[0].mxu0
        %3282 = vmatprep.mubr.bf16.mxu0 0
        %3283 = vmatmul.mubr.bf16.gmra.mrb[0].mxu0 %v3192
        %v3284 = vpop.f32.mrb[0].mxu0
        %v3285 = vadd.f32 %v3152, %v3284
        %v3286 = vpop.f32.mrb[0].mxu0
        %v3287 = vpop.f32.mrb[0].mxu0
        %v3288 = vadd.f32 %v3155, %v3287
        %v3289 = vpop.f32.mrb[0].mxu0
        %3290 = vdwg.mxu0
        %v3291 = vpack.c.bf16 %v2986, %v2985
        %v3292 = vpack.c.bf16 %v2988, %v2987
        %v3293 = vpack.c.bf16 %v2990, %v2989
        %v3294 = vpack.c.bf16 %v2992, %v2991
        %v3295 = vpack.c.bf16 %v2994, %v2993
        %v3296 = vpack.c.bf16 %v2996, %v2995
        %v3297 = vpack.c.bf16 %v2998, %v2997
        %v3298 = vpack.c.bf16 %v3000, %v2999
        %v3299 = vld [vmem:[%s20] sm:$0xf]
        %v3300 = vld [vmem:[%s20 + $0x4] sm:$0xf]
        %v3301 = vld [vmem:[%s20 + $0x8] sm:$0xf]
        %v3302 = vld [vmem:[%s20 + $0xc] sm:$0xf]
        %v3307 = vunpack.c.l.b16 %v3299
        %v3308 = vunpack.c.l.b16 %v3300
        %v3309 = vunpack.c.l.b16 %v3301
        %v3310 = vunpack.c.l.b16 %v3302
        %v3311 = vpack.c.b16 %v3308, %v3307
        %v3312 = vpack.c.b16 %v3310, %v3309
        %v3316 = vsel %vm1978, %v3291, 0
        %v3319 = vsel %vm1978, %v3292, 0
        %v3322 = vsel %vm1978, %v3293, 0
        %v3325 = vsel %vm1978, %v3294, 0
        %v3328 = vsel %vm1978, %v3295, 0
        %v3331 = vsel %vm1978, %v3296, 0
        %v3334 = vsel %vm1978, %v3297, 0
        %v3337 = vsel %vm1978, %v3298, 0
        %3339 = vmatprep.subr.bf16.mxu0 0
        %3340 = vmatpush1.bf16.msra.mxu0 %v3311
        %3341 = vmatprep.subr.bf16.mxu0 0
        %3342 = vmatpush1.bf16.msra.mxu0 %v3312
        %3343 = vmatprep.subr.bf16.mxu0 0
        %3344 = vmatpush1.bf16.msra.mxu0 0
        %3345 = vmatprep.subr.bf16.mxu0 0
        %3346 = vmatpush1.bf16.msra.mxu0 0
        %3347 = vmatprep.subr.bf16.mxu0 0
        %3348 = vmatpush1.bf16.msra.mxu0 0
        %3349 = vmatprep.subr.bf16.mxu0 0
        %3350 = vmatpush1.bf16.msra.mxu0 0
        %3351 = vmatprep.subr.bf16.mxu0 0
        %3352 = vmatpush1.bf16.msra.mxu0 0
        %3353 = vmatprep.subr.bf16.mxu0 0
        %3354 = vmatpush1.bf16.msra.mxu0 0
        %3355 = vmatprep.subr.bf16.mxu0 0
        %3356 = vmatpush1.bf16.msra.mxu0 0
        %3357 = vmatprep.subr.bf16.mxu0 0
        %3358 = vmatpush1.bf16.msra.mxu0 0
        %3359 = vmatprep.subr.bf16.mxu0 0
        %3360 = vmatpush1.bf16.msra.mxu0 0
        %3361 = vmatprep.subr.bf16.mxu0 0
        %3362 = vmatpush1.bf16.msra.mxu0 0
        %3363 = vmatprep.subr.bf16.mxu0 0
        %3364 = vmatpush1.bf16.msra.mxu0 0
        %3365 = vmatprep.subr.bf16.mxu0 0
        %3366 = vmatpush1.bf16.msra.mxu0 0
        %3367 = vmatprep.subr.bf16.mxu0 0
        %3368 = vmatpush1.bf16.msra.mxu0 0
        %3369 = vmatprep.subr.bf16.mxu0 0
        %3370 = vmatpush1.bf16.msra.mxu0 0
        %3371 = vmatprep.mubr.bf16.mxu0 0
        %3372 = vmatmul.mubr.bf16.gmra.mrb[0].mxu0 %v3316
        %v3373 = vpop.f32.mrb[0].mxu0
        %v3374 = vadd.f32 0.0, %v3373
        %v3375 = vpop.f32.mrb[0].mxu0
        %v3376 = vpop.f32.mrb[0].mxu0
        %v3377 = vadd.f32 0.0, %v3376
        %v3378 = vpop.f32.mrb[0].mxu0
        %3379 = vmatprep.mubr.bf16.mxu0 0
        %3380 = vmatmul.mubr.bf16.gmra.mrb[0].mxu0 %v3319
        %v3381 = vpop.f32.mrb[0].mxu0
        %v3382 = vadd.f32 0.0, %v3381
        %v3383 = vpop.f32.mrb[0].mxu0
        %v3384 = vpop.f32.mrb[0].mxu0
        %v3385 = vadd.f32 0.0, %v3384
        %v3386 = vpop.f32.mrb[0].mxu0
        %3387 = vmatprep.mubr.bf16.mxu0 0
        %3388 = vmatmul.mubr.bf16.gmra.mrb[0].mxu0 %v3322
        %v3389 = vpop.f32.mrb[0].mxu0
        %v3390 = vadd.f32 0.0, %v3389
        %v3391 = vpop.f32.mrb[0].mxu0
        %v3392 = vpop.f32.mrb[0].mxu0
        %v3393 = vadd.f32 0.0, %v3392
        %v3394 = vpop.f32.mrb[0].mxu0
        %3395 = vmatprep.mubr.bf16.mxu0 0
        %3396 = vmatmul.mubr.bf16.gmra.mrb[0].mxu0 %v3325
        %v3397 = vpop.f32.mrb[0].mxu0
        %v3398 = vadd.f32 0.0, %v3397
        %v3399 = vpop.f32.mrb[0].mxu0
        %v3400 = vpop.f32.mrb[0].mxu0
        %v3401 = vadd.f32 0.0, %v3400
        %v3402 = vpop.f32.mrb[0].mxu0
        %3403 = vmatprep.mubr.bf16.mxu0 0
        %3404 = vmatmul.mubr.bf16.gmra.mrb[0].mxu0 %v3328
        %v3405 = vpop.f32.mrb[0].mxu0
        %v3406 = vadd.f32 0.0, %v3405
        %v3407 = vpop.f32.mrb[0].mxu0
        %v3408 = vpop.f32.mrb[0].mxu0
        %v3409 = vadd.f32 0.0, %v3408
        %v3410 = vpop.f32.mrb[0].mxu0
        %3411 = vmatprep.mubr.bf16.mxu0 0
        %3412 = vmatmul.mubr.bf16.gmra.mrb[0].mxu0 %v3331
        %v3413 = vpop.f32.mrb[0].mxu0
        %v3414 = vadd.f32 0.0, %v3413
        %v3415 = vpop.f32.mrb[0].mxu0
        %v3416 = vpop.f32.mrb[0].mxu0
        %v3417 = vadd.f32 0.0, %v3416
        %v3418 = vpop.f32.mrb[0].mxu0
        %3419 = vmatprep.mubr.bf16.mxu0 0
        %3420 = vmatmul.mubr.bf16.gmra.mrb[0].mxu0 %v3334
        %v3421 = vpop.f32.mrb[0].mxu0
        %v3422 = vadd.f32 0.0, %v3421
        %v3423 = vpop.f32.mrb[0].mxu0
        %v3424 = vpop.f32.mrb[0].mxu0
        %v3425 = vadd.f32 0.0, %v3424
        %v3426 = vpop.f32.mrb[0].mxu0
        %3427 = vmatprep.mubr.bf16.mxu0 0
        %3428 = vmatmul.mubr.bf16.gmra.mrb[0].mxu0 %v3337
        %v3429 = vpop.f32.mrb[0].mxu0
        %v3430 = vadd.f32 0.0, %v3429
        %v3431 = vpop.f32.mrb[0].mxu0
        %v3432 = vpop.f32.mrb[0].mxu0
        %v3433 = vadd.f32 0.0, %v3432
        %v3434 = vpop.f32.mrb[0].mxu0
        %3435 = vdwg.mxu0
        %v3436 = vadd.f32 %v3229, %v3374
        %v3437 = vadd.f32 %v3232, %v3377
        %v3438 = vadd.f32 %v3237, %v3382
        %v3439 = vadd.f32 %v3240, %v3385
        %v3440 = vadd.f32 %v3245, %v3390
        %v3441 = vadd.f32 %v3248, %v3393
        %v3442 = vadd.f32 %v3253, %v3398
        %v3443 = vadd.f32 %v3256, %v3401
        %v3444 = vadd.f32 %v3261, %v3406
        %v3445 = vadd.f32 %v3264, %v3409
        %v3446 = vadd.f32 %v3269, %v3414
        %v3447 = vadd.f32 %v3272, %v3417
        %v3448 = vadd.f32 %v3277, %v3422
        %v3449 = vadd.f32 %v3280, %v3425
        %v3450 = vadd.f32 %v3285, %v3430
        %v3451 = vadd.f32 %v3288, %v3433
        %v3452 = vld [vmem:[%s21] sm:$0x1]
        %v3454 = vlaneseq
        %v3455 = vshrl.u32 %v3454, 7
        %v3456 = vsub.s32 0, %v3455
        %v3457 = vrot.slane %v3452, %v3456
        %v3459 = vadd.f32 %v3436, %v3457
        %v3460 = vadd.f32 %v3437, %v3457
        %v3461 = vadd.f32 %v3438, %v3457
        %v3462 = vadd.f32 %v3439, %v3457
        %v3463 = vadd.f32 %v3440, %v3457
        %v3464 = vadd.f32 %v3441, %v3457
        %v3465 = vadd.f32 %v3442, %v3457
        %v3466 = vadd.f32 %v3443, %v3457
        %v3467 = vadd.f32 %v3444, %v3457
        %v3468 = vadd.f32 %v3445, %v3457
        %v3469 = vadd.f32 %v3446, %v3457
        %v3470 = vadd.f32 %v3447, %v3457
        %v3471 = vadd.f32 %v3448, %v3457
        %v3472 = vadd.f32 %v3449, %v3457
        %v3473 = vadd.f32 %v3450, %v3457
        %v3474 = vadd.f32 %v3451, %v3457
        %v3475 = vmax.f32 %v3459, 0.0
        %v3476 = vmax.f32 %v3460, 0.0
        %v3477 = vmax.f32 %v3461, 0.0
        %v3478 = vmax.f32 %v3462, 0.0
        %v3479 = vmax.f32 %v3463, 0.0
        %v3480 = vmax.f32 %v3464, 0.0
        %v3481 = vmax.f32 %v3465, 0.0
        %v3482 = vmax.f32 %v3466, 0.0
        %v3483 = vmax.f32 %v3467, 0.0
        %v3484 = vmax.f32 %v3468, 0.0
        %v3485 = vmax.f32 %v3469, 0.0
        %v3486 = vmax.f32 %v3470, 0.0
        %v3487 = vmax.f32 %v3471, 0.0
        %v3488 = vmax.f32 %v3472, 0.0
        %v3489 = vmax.f32 %v3473, 0.0
        %v3490 = vmax.f32 %v3474, 0.0
        %v3491 = vpack.c.bf16 %v3476, %v3475
        %v3492 = vpack.c.bf16 %v3478, %v3477
        %v3493 = vpack.c.bf16 %v3480, %v3479
        %v3494 = vpack.c.bf16 %v3482, %v3481
        %v3495 = vpack.c.bf16 %v3484, %v3483
        %v3496 = vpack.c.bf16 %v3486, %v3485
        %v3497 = vpack.c.bf16 %v3488, %v3487
        %v3498 = vpack.c.bf16 %v3490, %v3489
        %v3499 = vld [vmem:[%s22] sm:$0xf]
        %v3500 = vld [vmem:[%s22 + $0x4] sm:$0xf]
        %v3501 = vld [vmem:[%s22 + $0x8] sm:$0xf]
        %v3502 = vld [vmem:[%s22 + $0xc] sm:$0xf]
        %v3503 = vld [vmem:[%s22 + $0x10] sm:$0xf]
        %v3504 = vld [vmem:[%s22 + $0x14] sm:$0xf]
        %v3505 = vld [vmem:[%s22 + $0x18] sm:$0xf]
        %v3506 = vld [vmem:[%s22 + $0x1c] sm:$0xf]
        %v3507 = vld [vmem:[%s23] sm:$0x1]
        %v3509 = vlaneseq
        %v3510 = vshrl.u32 %v3509, 7
        %v3511 = vsub.s32 0, %v3510
        %v3512 = vrot.slane %v3507, %v3511
        %v3522 = vunpack.c.l.b16 %v3499
        %v3523 = vunpack.c.l.b16 %v3500
        %v3524 = vunpack.c.l.b16 %v3501
        %v3525 = vunpack.c.l.b16 %v3502
        %v3526 = vunpack.c.l.b16 %v3503
        %v3527 = vunpack.c.l.b16 %v3504
        %v3528 = vunpack.c.l.b16 %v3505
        %v3529 = vunpack.c.l.b16 %v3506
        %v3530 = vpack.c.b16 %v3523, %v3522
        %v3531 = vpack.c.b16 %v3525, %v3524
        %v3532 = vpack.c.b16 %v3527, %v3526
        %v3533 = vpack.c.b16 %v3529, %v3528
        %vm3538 = vcmask 523264
        %v3540 = vsel %vm3538, %v3491, 0
        %v3543 = vsel %vm3538, %v3492, 0
        %v3546 = vsel %vm3538, %v3493, 0
        %v3549 = vsel %vm3538, %v3494, 0
        %v3552 = vsel %vm3538, %v3495, 0
        %v3555 = vsel %vm3538, %v3496, 0
        %v3558 = vsel %vm3538, %v3497, 0
        %v3561 = vsel %vm3538, %v3498, 0
        %3563 = vmatprep.subr.bf16.mxu0 0
        %3564 = vmatpush1.bf16.msra.mxu0 %v3530
        %3565 = vmatprep.subr.bf16.mxu0 0
        %3566 = vmatpush1.bf16.msra.mxu0 %v3531
        %3567 = vmatprep.subr.bf16.mxu0 0
        %3568 = vmatpush1.bf16.msra.mxu0 %v3532
        %3569 = vmatprep.subr.bf16.mxu0 0
        %3570 = vmatpush1.bf16.msra.mxu0 %v3533
        %3571 = vmatprep.subr.bf16.mxu0 0
        %3572 = vmatpush1.bf16.msra.mxu0 0
        %3573 = vmatprep.subr.bf16.mxu0 0
        %3574 = vmatpush1.bf16.msra.mxu0 0
        %3575 = vmatprep.subr.bf16.mxu0 0
        %3576 = vmatpush1.bf16.msra.mxu0 0
        %3577 = vmatprep.subr.bf16.mxu0 0
        %3578 = vmatpush1.bf16.msra.mxu0 0
        %3579 = vmatprep.subr.bf16.mxu0 0
        %3580 = vmatpush1.bf16.msra.mxu0 0
        %3581 = vmatprep.subr.bf16.mxu0 0
        %3582 = vmatpush1.bf16.msra.mxu0 0
        %3583 = vmatprep.subr.bf16.mxu0 0
        %3584 = vmatpush1.bf16.msra.mxu0 0
        %3585 = vmatprep.subr.bf16.mxu0 0
        %3586 = vmatpush1.bf16.msra.mxu0 0
        %3587 = vmatprep.subr.bf16.mxu0 0
        %3588 = vmatpush1.bf16.msra.mxu0 0
        %3589 = vmatprep.subr.bf16.mxu0 0
        %3590 = vmatpush1.bf16.msra.mxu0 0
        %3591 = vmatprep.subr.bf16.mxu0 0
        %3592 = vmatpush1.bf16.msra.mxu0 0
        %3593 = vmatprep.subr.bf16.mxu0 0
        %3594 = vmatpush1.bf16.msra.mxu0 0
        %3595 = vmatprep.mubr.bf16.mxu0 0
        %3596 = vmatmul.mubr.bf16.gmra.mrb[0].mxu0 %v3540
        %v3597 = vpop.f32.mrb[0].mxu0
        %v3598 = vadd.f32 %v3512, %v3597
        %v3599 = vpop.f32.mrb[0].mxu0
        %v3600 = vpop.f32.mrb[0].mxu0
        %v3601 = vadd.f32 %v3512, %v3600
        %v3602 = vpop.f32.mrb[0].mxu0
        %3603 = vmatprep.mubr.bf16.mxu0 0
        %3604 = vmatmul.mubr.bf16.gmra.mrb[0].mxu0 %v3543
        %v3605 = vpop.f32.mrb[0].mxu0
        %v3606 = vadd.f32 %v3512, %v3605
        %v3607 = vpop.f32.mrb[0].mxu0
        %v3608 = vpop.f32.mrb[0].mxu0
        %v3609 = vadd.f32 %v3512, %v3608
        %v3610 = vpop.f32.mrb[0].mxu0
        %3611 = vmatprep.mubr.bf16.mxu0 0
        %3612 = vmatmul.mubr.bf16.gmra.mrb[0].mxu0 %v3546
        %v3613 = vpop.f32.mrb[0].mxu0
        %v3614 = vadd.f32 %v3512, %v3613
        %v3615 = vpop.f32.mrb[0].mxu0
        %v3616 = vpop.f32.mrb[0].mxu0
        %v3617 = vadd.f32 %v3512, %v3616
        %v3618 = vpop.f32.mrb[0].mxu0
        %3619 = vmatprep.mubr.bf16.mxu0 0
        %3620 = vmatmul.mubr.bf16.gmra.mrb[0].mxu0 %v3549
        %v3621 = vpop.f32.mrb[0].mxu0
        %v3622 = vadd.f32 %v3512, %v3621
        %v3623 = vpop.f32.mrb[0].mxu0
        %v3624 = vpop.f32.mrb[0].mxu0
        %v3625 = vadd.f32 %v3512, %v3624
        %v3626 = vpop.f32.mrb[0].mxu0
        %3627 = vmatprep.mubr.bf16.mxu0 0
        %3628 = vmatmul.mubr.bf16.gmra.mrb[0].mxu0 %v3552
        %v3629 = vpop.f32.mrb[0].mxu0
        %v3630 = vadd.f32 %v3512, %v3629
        %v3631 = vpop.f32.mrb[0].mxu0
        %v3632 = vpop.f32.mrb[0].mxu0
        %v3633 = vadd.f32 %v3512, %v3632
        %v3634 = vpop.f32.mrb[0].mxu0
        %3635 = vmatprep.mubr.bf16.mxu0 0
        %3636 = vmatmul.mubr.bf16.gmra.mrb[0].mxu0 %v3555
        %v3637 = vpop.f32.mrb[0].mxu0
        %v3638 = vadd.f32 %v3512, %v3637
        %v3639 = vpop.f32.mrb[0].mxu0
        %v3640 = vpop.f32.mrb[0].mxu0
        %v3641 = vadd.f32 %v3512, %v3640
        %v3642 = vpop.f32.mrb[0].mxu0
        %3643 = vmatprep.mubr.bf16.mxu0 0
        %3644 = vmatmul.mubr.bf16.gmra.mrb[0].mxu0 %v3558
        %v3645 = vpop.f32.mrb[0].mxu0
        %v3646 = vadd.f32 %v3512, %v3645
        %v3647 = vpop.f32.mrb[0].mxu0
        %v3648 = vpop.f32.mrb[0].mxu0
        %v3649 = vadd.f32 %v3512, %v3648
        %v3650 = vpop.f32.mrb[0].mxu0
        %3651 = vmatprep.mubr.bf16.mxu0 0
        %3652 = vmatmul.mubr.bf16.gmra.mrb[0].mxu0 %v3561
        %v3653 = vpop.f32.mrb[0].mxu0
        %v3654 = vadd.f32 %v3512, %v3653
        %v3655 = vpop.f32.mrb[0].mxu0
        %v3656 = vpop.f32.mrb[0].mxu0
        %v3657 = vadd.f32 %v3512, %v3656
        %v3658 = vpop.f32.mrb[0].mxu0
        %3659 = vdwg.mxu0
        %v3660 = vmax.f32 %v3598, 0.0
        %v3661 = vmax.f32 %v3601, 0.0
        %v3662 = vmax.f32 %v3606, 0.0
        %v3663 = vmax.f32 %v3609, 0.0
        %v3664 = vmax.f32 %v3614, 0.0
        %v3665 = vmax.f32 %v3617, 0.0
        %v3666 = vmax.f32 %v3622, 0.0
        %v3667 = vmax.f32 %v3625, 0.0
        %v3668 = vmax.f32 %v3630, 0.0
        %v3669 = vmax.f32 %v3633, 0.0
        %v3670 = vmax.f32 %v3638, 0.0
        %v3671 = vmax.f32 %v3641, 0.0
        %v3672 = vmax.f32 %v3646, 0.0
        %v3673 = vmax.f32 %v3649, 0.0
        %v3674 = vmax.f32 %v3654, 0.0
        %v3675 = vmax.f32 %v3657, 0.0
        %v3676 = vpack.c.bf16 %v3661, %v3660
        %v3677 = vpack.c.bf16 %v3663, %v3662
        %v3678 = vpack.c.bf16 %v3665, %v3664
        %v3679 = vpack.c.bf16 %v3667, %v3666
        %v3680 = vpack.c.bf16 %v3669, %v3668
        %v3681 = vpack.c.bf16 %v3671, %v3670
        %v3682 = vpack.c.bf16 %v3673, %v3672
        %v3683 = vpack.c.bf16 %v3675, %v3674
        %v3684 = vld [vmem:[%s24] sm:$0xf]
        %v3685 = vld [vmem:[%s24 + $0x4] sm:$0xf]
        %v3686 = vld [vmem:[%s24 + $0x8] sm:$0xf]
        %v3687 = vld [vmem:[%s24 + $0xc] sm:$0xf]
        %v3688 = vld [vmem:[%s25] sm:$0x1]
        %v3690 = vlaneseq
        %v3691 = vshrl.u32 %v3690, 7
        %v3692 = vsub.s32 0, %v3691
        %v3693 = vrot.slane %v3688, %v3692
        %v3699 = vunpack.c.l.b16 %v3684
        %v3700 = vunpack.c.l.b16 %v3685
        %v3701 = vunpack.c.l.b16 %v3686
        %v3702 = vunpack.c.l.b16 %v3687
        %v3703 = vpack.c.b16 %v3700, %v3699
        %v3704 = vpack.c.b16 %v3702, %v3701
        %v3708 = vsel %vm1978, %v3676, 0
        %v3711 = vsel %vm1978, %v3677, 0
        %v3714 = vsel %vm1978, %v3678, 0
        %v3717 = vsel %vm1978, %v3679, 0
        %v3720 = vsel %vm1978, %v3680, 0
        %v3723 = vsel %vm1978, %v3681, 0
        %v3726 = vsel %vm1978, %v3682, 0
        %v3729 = vsel %vm1978, %v3683, 0
        %3731 = vmatprep.subr.bf16.mxu0 0
        %3732 = vmatpush1.bf16.msra.mxu0 %v3703
        %3733 = vmatprep.subr.bf16.mxu0 0
        %3734 = vmatpush1.bf16.msra.mxu0 %v3704
        %3735 = vmatprep.subr.bf16.mxu0 0
        %3736 = vmatpush1.bf16.msra.mxu0 0
        %3737 = vmatprep.subr.bf16.mxu0 0
        %3738 = vmatpush1.bf16.msra.mxu0 0
        %3739 = vmatprep.subr.bf16.mxu0 0
        %3740 = vmatpush1.bf16.msra.mxu0 0
        %3741 = vmatprep.subr.bf16.mxu0 0
        %3742 = vmatpush1.bf16.msra.mxu0 0
        %3743 = vmatprep.subr.bf16.mxu0 0
        %3744 = vmatpush1.bf16.msra.mxu0 0
        %3745 = vmatprep.subr.bf16.mxu0 0
        %3746 = vmatpush1.bf16.msra.mxu0 0
        %3747 = vmatprep.subr.bf16.mxu0 0
        %3748 = vmatpush1.bf16.msra.mxu0 0
        %3749 = vmatprep.subr.bf16.mxu0 0
        %3750 = vmatpush1.bf16.msra.mxu0 0
        %3751 = vmatprep.subr.bf16.mxu0 0
        %3752 = vmatpush1.bf16.msra.mxu0 0
        %3753 = vmatprep.subr.bf16.mxu0 0
        %3754 = vmatpush1.bf16.msra.mxu0 0
        %3755 = vmatprep.subr.bf16.mxu0 0
        %3756 = vmatpush1.bf16.msra.mxu0 0
        %3757 = vmatprep.subr.bf16.mxu0 0
        %3758 = vmatpush1.bf16.msra.mxu0 0
        %3759 = vmatprep.subr.bf16.mxu0 0
        %3760 = vmatpush1.bf16.msra.mxu0 0
        %3761 = vmatprep.subr.bf16.mxu0 0
        %3762 = vmatpush1.bf16.msra.mxu0 0
        %3763 = vmatprep.mubr.bf16.mxu0 0
        %3764 = vmatmul.mubr.bf16.gmra.mrb[0].mxu0 %v3708
        %v3765 = vpop.f32.mrb[0].mxu0
        %v3766 = vadd.f32 %v3693, %v3765
        %v3767 = vpop.f32.mrb[0].mxu0
        %v3768 = vpop.f32.mrb[0].mxu0
        %v3769 = vadd.f32 %v3693, %v3768
        %v3770 = vpop.f32.mrb[0].mxu0
        %3771 = vmatprep.mubr.bf16.mxu0 0
        %3772 = vmatmul.mubr.bf16.gmra.mrb[0].mxu0 %v3711
        %v3773 = vpop.f32.mrb[0].mxu0
        %v3774 = vadd.f32 %v3693, %v3773
        %v3775 = vpop.f32.mrb[0].mxu0
        %v3776 = vpop.f32.mrb[0].mxu0
        %v3777 = vadd.f32 %v3693, %v3776
        %v3778 = vpop.f32.mrb[0].mxu0
        %3779 = vmatprep.mubr.bf16.mxu0 0
        %3780 = vmatmul.mubr.bf16.gmra.mrb[0].mxu0 %v3714
        %v3781 = vpop.f32.mrb[0].mxu0
        %v3782 = vadd.f32 %v3693, %v3781
        %v3783 = vpop.f32.mrb[0].mxu0
        %v3784 = vpop.f32.mrb[0].mxu0
        %v3785 = vadd.f32 %v3693, %v3784
        %v3786 = vpop.f32.mrb[0].mxu0
        %3787 = vmatprep.mubr.bf16.mxu0 0
        %3788 = vmatmul.mubr.bf16.gmra.mrb[0].mxu0 %v3717
        %v3789 = vpop.f32.mrb[0].mxu0
        %v3790 = vadd.f32 %v3693, %v3789
        %v3791 = vpop.f32.mrb[0].mxu0
        %v3792 = vpop.f32.mrb[0].mxu0
        %v3793 = vadd.f32 %v3693, %v3792
        %v3794 = vpop.f32.mrb[0].mxu0
        %3795 = vmatprep.mubr.bf16.mxu0 0
        %3796 = vmatmul.mubr.bf16.gmra.mrb[0].mxu0 %v3720
        %v3797 = vpop.f32.mrb[0].mxu0
        %v3798 = vadd.f32 %v3693, %v3797
        %v3799 = vpop.f32.mrb[0].mxu0
        %v3800 = vpop.f32.mrb[0].mxu0
        %v3801 = vadd.f32 %v3693, %v3800
        %v3802 = vpop.f32.mrb[0].mxu0
        %3803 = vmatprep.mubr.bf16.mxu0 0
        %3804 = vmatmul.mubr.bf16.gmra.mrb[0].mxu0 %v3723
        %v3805 = vpop.f32.mrb[0].mxu0
        %v3806 = vadd.f32 %v3693, %v3805
        %v3807 = vpop.f32.mrb[0].mxu0
        %v3808 = vpop.f32.mrb[0].mxu0
        %v3809 = vadd.f32 %v3693, %v3808
        %v3810 = vpop.f32.mrb[0].mxu0
        %3811 = vmatprep.mubr.bf16.mxu0 0
        %3812 = vmatmul.mubr.bf16.gmra.mrb[0].mxu0 %v3726
        %v3813 = vpop.f32.mrb[0].mxu0
        %v3814 = vadd.f32 %v3693, %v3813
        %v3815 = vpop.f32.mrb[0].mxu0
        %v3816 = vpop.f32.mrb[0].mxu0
        %v3817 = vadd.f32 %v3693, %v3816
        %v3818 = vpop.f32.mrb[0].mxu0
        %3819 = vmatprep.mubr.bf16.mxu0 0
        %3820 = vmatmul.mubr.bf16.gmra.mrb[0].mxu0 %v3729
        %v3821 = vpop.f32.mrb[0].mxu0
        %v3822 = vadd.f32 %v3693, %v3821
        %v3823 = vpop.f32.mrb[0].mxu0
        %v3824 = vpop.f32.mrb[0].mxu0
        %v3825 = vadd.f32 %v3693, %v3824
        %v3826 = vpop.f32.mrb[0].mxu0
        %3827 = vdwg.mxu0
        %3828 = vst [vmem:[%s878] sm:$0xff] %v3766
        %3829 = vst [vmem:[%s878 + $0x8] sm:$0xff] %v3769
        %3830 = vst [vmem:[%s878 + $0x10] sm:$0xff] %v3774
        %3831 = vst [vmem:[%s878 + $0x18] sm:$0xff] %v3777
        %3832 = vst [vmem:[%s878 + $0x20] sm:$0xff] %v3782
        %3833 = vst [vmem:[%s878 + $0x28] sm:$0xff] %v3785
        %3834 = vst [vmem:[%s878 + $0x30] sm:$0xff] %v3790
        %3835 = vst [vmem:[%s878 + $0x38] sm:$0xff] %v3793
        %3836 = vst [vmem:[%s878 + $0x40] sm:$0xff] %v3798
        %3837 = vst [vmem:[%s878 + $0x48] sm:$0xff] %v3801
        %3838 = vst [vmem:[%s878 + $0x50] sm:$0xff] %v3806
        %3839 = vst [vmem:[%s878 + $0x58] sm:$0xff] %v3809
        %3840 = vst [vmem:[%s878 + $0x60] sm:$0xff] %v3814
        %3841 = vst [vmem:[%s878 + $0x68] sm:$0xff] %v3817
        %3842 = vst [vmem:[%s878 + $0x70] sm:$0xff] %v3822
        %3843 = vst [vmem:[%s878 + $0x78] sm:$0xff] %v3825
        %s3844 = sand.u32 %s609, 1
        %s3845 = scalar_lea.sflag [#allocation4], %s3844
        %s3846 = sand.u32 %s609, 1
        %s3847 = smul.addr %s3846, 128
        %s3848 = scalar_lea.vmem [#allocation11], %s3847
        // Predicated region
        $region145: #{tpu_custom_call.1} parent=123 // pred_check
          %p3849 = pneg %p619
        $region146: #{tpu_custom_call.1} parent=123 // pred_check_branch
          %3851 = sbr.rel (%p3849) target = $region148
        $region147: #{tpu_custom_call.1} parent=123 // pred_region
          %s3852 = smul.u32 16, %s45
          %s3854 = ssub.s32 2048, 2048
          %3855 = vsyncadd %s3845, %s3854
          %s3856 = smul.addr %s3852, 128
          %s3857 = scalar_lea.hbm %s26, %s3856
          %s3858 = sshll.u32 %s3848, 4
          %s3859 = int_to_ptr.vmem [resolvable:$true] %s3858
          %3864 = dma.vmem_to_hbm [thread:$0]  %s3859, 2048, %s3857, %s3845, 128, 128, 8
        $region148: #{tpu_custom_call.1} parent=123 // pred_fallthru
          _
      $region124: #{tpu_custom_call.1} parent=5 // pred_fallthru
        _
      %p3865 = scmp.le.s32.totalorder 2, %s40
      // Predicated region
      $region149: #{tpu_custom_call.1} parent=5 // pred_check
        %p3866 = pneg %p3865
      $region150: #{tpu_custom_call.1} parent=5 // pred_check_branch
        %3868 = sbr.rel (%p3866) target = $region152
      $region151: #{tpu_custom_call.1} parent=5 // pred_region
        %s3869 = ssub.s32 %s40, 2
        // Predicated region
        $region153: #{tpu_custom_call.1} parent=151 // pred_check
          %p3870 = pneg %p625
        $region154: #{tpu_custom_call.1} parent=151 // pred_check_branch
          %3872 = sbr.rel (%p3870) target = $region156
        $region155: #{tpu_custom_call.1} parent=151 // pred_region
          %s3873 = sand.u32 %s610, 1
          %s3874 = scalar_lea.sflag [#allocation4], %s3873
          %s3875 = sand.u32 %s610, 1
          %s3876 = smul.addr %s3875, 128
          %s3877 = scalar_lea.vmem [#allocation11], %s3876
          %3878 = dma.done %s3874, 2048
        $region156: #{tpu_custom_call.1} parent=151 // pred_fallthru
          _
      $region152: #{tpu_custom_call.1} parent=5 // pred_fallthru
        _
    $region6: #{tpu_custom_call.1} parent=1 // loop_footer
      %s44 = sadd.s32 1, %s40
    $region7: #{tpu_custom_call.1} parent=1 // loop_footer_branch
      %39 = sbr.rel target = $region3
    $region8: #{tpu_custom_call.1} parent=1 // loop_exit
      _
    %3879 = vsyncpa [#allocation3], 1
    %s3880 = scalar_lea.sflag [#allocation3], 1
    %3881 = vsyncpa %s3880, 1
    %3882 = vsyncpa [#allocation6], 1
    %3883 = vsyncpa [#allocation9], 1
    %3884 = vsyncpa [#allocation4], 1
    %s3885 = scalar_lea.sflag [#allocation4], 1
    %3886 = vsyncpa %s3885, 1

</llo_original>
